<compile_context>
chip_gen: v5e
topology: v5e:2x2
jax: 0.10.0
libtpu: 0.0.40
codegen_flags: <defaults>
</compile_context>

<pallas_src>
import functools

import jax
import jax.numpy as jnp
from jax.experimental import pallas as pl
from jax.experimental.pallas import tpu as pltpu

D_IN = 128 * 3      # 384 (nn.Flatten of (128, 3))
D_HID = 512
D_OUT = 16
MAX_TB = 512        # cap on batch-tile rows


def _round_up(n, m):
    return ((n + m - 1) // m) * m


def _choose_tile(batch):
    """Pick the batch tile.

    Tiny batches (< 16) get a single round_up(B, 8) tile (no useless padded
    MXU rows). Otherwise aim for >= 2 grid tiles so v7x's two TensorCores can
    split the grid, capped at 512 rows per tile (keeps VMEM ~ a few MiB and
    amortizes per-step pipeline overhead on v5e/v6e).
    """
    b8 = _round_up(max(batch, 1), 8)
    if batch < 16:
        return b8
    return min(MAX_TB, _round_up((b8 + 1) // 2, 8))


def _mlp_kernel(x_ref, w1_ref, b1_ref, w2_ref, b2_ref,
                w3_ref, b3_ref, w4_ref, b4_ref, o_ref, h_ref):
    # In-kernel bf16 cast of the f32 input tile (saves a wrapper HBM pass).
    x = x_ref[...].astype(jnp.bfloat16)
    # Layer 1: (TB, 384) @ (384, 512), f32 accumulate, +bias, ReLU -> bf16 scratch
    h = jnp.dot(x, w1_ref[...], preferred_element_type=jnp.float32)
    h_ref[...] = jnp.maximum(h + b1_ref[...], 0.0).astype(h_ref.dtype)
    # Layer 2: (TB, 512) @ (512, 512)
    h = jnp.dot(h_ref[...], w2_ref[...], preferred_element_type=jnp.float32)
    h_ref[...] = jnp.maximum(h + b2_ref[...], 0.0).astype(h_ref.dtype)
    # Layer 3: (TB, 512) @ (512, 512)
    h = jnp.dot(h_ref[...], w3_ref[...], preferred_element_type=jnp.float32)
    h_ref[...] = jnp.maximum(h + b3_ref[...], 0.0).astype(h_ref.dtype)
    # Layer 4 (logits): (TB, 512) @ (512, 16); the narrow 16-lane store is
    # fully hidden under this matmul.
    h = jnp.dot(h_ref[...], w4_ref[...], preferred_element_type=jnp.float32)
    o_ref[...] = (h + b4_ref[...]).astype(o_ref.dtype)


@functools.partial(jax.jit, static_argnames=("resident_weights",))
def pc_encoder_forward(x, kparams, resident_weights=True):
    """x: (B, 128, 3) float32 -> logits (B, 16) float32.

    kparams: ((w1,b1),(w2,b2),(w3,b3),(w4,b4)) with weights bf16 (in,out),
             biases f32 (1,out).
    """
    (w1, b1), (w2, b2), (w3, b3), (w4, b4) = kparams
    B = x.shape[0]
    x_flat = x.reshape(B, D_IN)                      # nn.Flatten (row-major)

    tb = _choose_tile(B)
    nb = pl.cdiv(B, tb)
    b_pad = nb * tb
    if b_pad != B:
        x_flat = jnp.pad(x_flat, ((0, b_pad - B), (0, 0)))

    if resident_weights:
        # Single VMEM-resident copy of every weight/bias for the whole kernel
        # (no per-grid-step double buffering of constant blocks).
        wspec = lambda arr: pl.BlockSpec(memory_space=pltpu.MemorySpace.VMEM)
    else:
        # Fallback: full block, same block index every grid step.
        wspec = lambda arr: pl.BlockSpec(arr.shape, lambda i: (0, 0))

    flops = 2 * b_pad * (D_IN * D_HID + 2 * D_HID * D_HID + D_HID * D_OUT)
    weight_bytes = sum(int(a.size) * a.dtype.itemsize
                       for pair in kparams for a in pair)
    bytes_accessed = (int(x_flat.size) * 4            # f32 input read
                      + b_pad * D_OUT * 4             # f32 logits write
                      + weight_bytes)                 # one-time weight fetch

    out = pl.pallas_call(
        _mlp_kernel,
        out_shape=jax.ShapeDtypeStruct((b_pad, D_OUT), jnp.float32),
        grid=(nb,),
        in_specs=[pl.BlockSpec((tb, D_IN), lambda i: (i, 0)),   # x tile (f32)
                  wspec(w1), wspec(b1),
                  wspec(w2), wspec(b2),
                  wspec(w3), wspec(b3),
                  wspec(w4), wspec(b4)],
        out_specs=pl.BlockSpec((tb, D_OUT), lambda i: (i, 0)),
        scratch_shapes=[pltpu.VMEM((tb, D_HID), jnp.bfloat16)],
        compiler_params=pltpu.CompilerParams(
            dimension_semantics=("parallel",)),
        cost_estimate=pl.CostEstimate(
            flops=flops, transcendentals=0, bytes_accessed=bytes_accessed),
    )(x_flat, w1, b1, w2, b2, w3, b3, w4, b4)

    return out[:B] if b_pad != B else out


def init_params_f32(key):
    """PyTorch-Linear-like init (U(-1/sqrt(fan_in), +)), weights stored (in, out)."""
    dims = [(D_IN, D_HID), (D_HID, D_HID), (D_HID, D_HID), (D_HID, D_OUT)]
    params = []
    for fan_in, fan_out in dims:
        key, kw, kb = jax.random.split(key, 3)
        bound = 1.0 / (fan_in ** 0.5)
        w = jax.random.uniform(kw, (fan_in, fan_out), jnp.float32, -bound, bound)
        b = jax.random.uniform(kb, (1, fan_out), jnp.float32, -bound, bound)
        params.append((w, b))
    return params


def to_kernel_params(params_f32):
    """bf16 weights (in,out), f32 biases (1,out). No lane padding needed."""
    return tuple((w.astype(jnp.bfloat16), b) for w, b in params_f32)


def reference_forward_bf16(x, kparams):
    """Reference with identical bf16/f32-accumulate numerics."""
    (w1, b1), (w2, b2), (w3, b3), (w4, b4) = kparams
    h = x.reshape(x.shape[0], -1).astype(jnp.bfloat16)
    h = jnp.maximum(jnp.dot(h, w1, preferred_element_type=jnp.float32) + b1, 0.0)
    h = jnp.maximum(jnp.dot(h.astype(jnp.bfloat16), w2,
                            preferred_element_type=jnp.float32) + b2, 0.0)
    h = jnp.maximum(jnp.dot(h.astype(jnp.bfloat16), w3,
                            preferred_element_type=jnp.float32) + b3, 0.0)
    return jnp.dot(h.astype(jnp.bfloat16), w4,
                   preferred_element_type=jnp.float32) + b4


def reference_forward_f32(x, params_f32):
    """Full-precision reference (matches the PyTorch module exactly)."""
    (w1, b1), (w2, b2), (w3, b3), (w4, b4) = params_f32
    h = x.reshape(x.shape[0], -1)
    h = jnp.maximum(h @ w1 + b1, 0.0)
    h = jnp.maximum(h @ w2 + b2, 0.0)
    h = jnp.maximum(h @ w3 + b3, 0.0)
    return h @ w4 + b4


if __name__ == "__main__":
    key = jax.random.PRNGKey(0)
    key, kx = jax.random.split(key)
    B = 2
    x = jax.random.normal(kx, (B, 128, 3), jnp.float32)   # point-cloud input

    params_f32 = init_params_f32(key)
    kparams = to_kernel_params(params_f32)

    try:
        logits = jax.block_until_ready(
            pc_encoder_forward(x, kparams, resident_weights=True))
    except Exception:
        # Fallback to constant-index full-block weight specs (verified-clean
        # layout) if whole-operand VMEM residency is unavailable.
        logits = jax.block_until_ready(
            pc_encoder_forward(x, kparams, resident_weights=False))

    assert logits.shape == (B, D_OUT)
    assert logits.dtype == jnp.float32

    # Same-numerics (bf16 weights/activations, f32 accumulation) reference.
    ref_bf16 = reference_forward_bf16(x, kparams)
    assert jnp.allclose(logits, ref_bf16, atol=1e-2, rtol=1e-2), (
        float(jnp.max(jnp.abs(logits - ref_bf16))))

    # Loose sanity check against the exact f32 PyTorch-equivalent math
    # (bf16 weights introduce ~0.4% relative rounding per element).
    ref_f32 = reference_forward_f32(x, params_f32)
    assert jnp.allclose(logits, ref_f32, atol=1e-1), (
        float(jnp.max(jnp.abs(logits - ref_f32))))

    print("KERNEL_OK")
</pallas_src>

<mosaic_0001>
module attributes {stable_mosaic.version = 11 : i64} {
  func.func @_mlp_kernel(%arg0: i32, %arg1: memref<8x384xf32, #tpu.memory_space<vmem>>, %arg2: memref<384x512xbf16, #tpu.memory_space<vmem>>, %arg3: memref<1x512xf32, #tpu.memory_space<vmem>>, %arg4: memref<512x512xbf16, #tpu.memory_space<vmem>>, %arg5: memref<1x512xf32, #tpu.memory_space<vmem>>, %arg6: memref<512x512xbf16, #tpu.memory_space<vmem>>, %arg7: memref<1x512xf32, #tpu.memory_space<vmem>>, %arg8: memref<512x16xbf16, #tpu.memory_space<vmem>>, %arg9: memref<1x16xf32, #tpu.memory_space<vmem>>, %arg10: memref<8x16xf32, #tpu.memory_space<vmem>>, %arg11: memref<8x512xbf16, #tpu.memory_space<vmem>>) attributes {dimension_semantics = [#tpu.dimension_semantics<parallel>], iteration_bounds = array<i64: 1>, scalar_prefetch = 0 : i64, scratch_operands = 1 : i64, tpu.core_type = #tpu.core_type<tc>, window_params = [{transform_indices = @transform_0, window_bounds = array<i64: 8, 384>}, {pipeline_mode = #tpu.pipeline_mode<synchronous>, transform_indices = @transform_1, window_bounds = array<i64: 384, 512>}, {pipeline_mode = #tpu.pipeline_mode<synchronous>, transform_indices = @transform_2, window_bounds = array<i64: 1, 512>}, {pipeline_mode = #tpu.pipeline_mode<synchronous>, transform_indices = @transform_3, window_bounds = array<i64: 512, 512>}, {pipeline_mode = #tpu.pipeline_mode<synchronous>, transform_indices = @transform_4, window_bounds = array<i64: 1, 512>}, {pipeline_mode = #tpu.pipeline_mode<synchronous>, transform_indices = @transform_5, window_bounds = array<i64: 512, 512>}, {pipeline_mode = #tpu.pipeline_mode<synchronous>, transform_indices = @transform_6, window_bounds = array<i64: 1, 512>}, {pipeline_mode = #tpu.pipeline_mode<synchronous>, transform_indices = @transform_7, window_bounds = array<i64: 512, 16>}, {pipeline_mode = #tpu.pipeline_mode<synchronous>, transform_indices = @transform_8, window_bounds = array<i64: 1, 16>}, {transform_indices = @transform_9, window_bounds = array<i64: 8, 16>}]} {
    %c0 = arith.constant 0 : index
    %c0_0 = arith.constant 0 : index
    %0 = vector.load %arg1[%c0, %c0_0] : memref<8x384xf32, #tpu.memory_space<vmem>>, vector<8x384xf32>
    %1 = arith.truncf %0 : vector<8x384xf32> to vector<8x384xbf16>
    %c0_1 = arith.constant 0 : index
    %c0_2 = arith.constant 0 : index
    %2 = vector.load %arg2[%c0_1, %c0_2] : memref<384x512xbf16, #tpu.memory_space<vmem>>, vector<384x512xbf16>
    %cst = arith.constant dense<0.000000e+00> : vector<8x512xf32>
    %3 = tpu.matmul %1, %2, %cst {dimension_numbers = #tpu.dot_dimension_numbers<[1], [0], [0], [1], [0, 0, 1, 1], [], []>} : vector<8x384xbf16>, vector<384x512xbf16>, vector<8x512xf32> -> vector<8x512xf32>
    %c0_3 = arith.constant 0 : index
    %c0_4 = arith.constant 0 : index
    %4 = vector.load %arg3[%c0_3, %c0_4] : memref<1x512xf32, #tpu.memory_space<vmem>>, vector<1x512xf32>
    %5 = vector.broadcast %4 : vector<1x512xf32> to vector<8x512xf32>
    %6 = arith.addf %3, %5 : vector<8x512xf32>
    %cst_5 = arith.constant 0.000000e+00 : f32
    %7 = vector.broadcast %cst_5 : f32 to vector<8x512xf32>
    %8 = arith.maximumf %6, %7 : vector<8x512xf32>
    %9 = arith.truncf %8 : vector<8x512xf32> to vector<8x512xbf16>
    %c0_6 = arith.constant 0 : index
    %c0_7 = arith.constant 0 : index
    %10 = vector.load %arg11[%c0_6, %c0_7] : memref<8x512xbf16, #tpu.memory_space<vmem>>, vector<8x512xbf16>
    tpu.vector_store %arg11[%c0_6, %c0_7], %9 {strides = array<i32>} : memref<8x512xbf16, #tpu.memory_space<vmem>>, vector<8x512xbf16>,
    %c0_8 = arith.constant 0 : index
    %c0_9 = arith.constant 0 : index
    %11 = vector.load %arg11[%c0_8, %c0_9] : memref<8x512xbf16, #tpu.memory_space<vmem>>, vector<8x512xbf16>
    %c0_10 = arith.constant 0 : index
    %c0_11 = arith.constant 0 : index
    %12 = vector.load %arg4[%c0_10, %c0_11] : memref<512x512xbf16, #tpu.memory_space<vmem>>, vector<512x512xbf16>
    %cst_12 = arith.constant dense<0.000000e+00> : vector<8x512xf32>
    %13 = tpu.matmul %11, %12, %cst_12 {dimension_numbers = #tpu.dot_dimension_numbers<[1], [0], [0], [1], [0, 0, 1, 1], [], []>} : vector<8x512xbf16>, vector<512x512xbf16>, vector<8x512xf32> -> vector<8x512xf32>
    %c0_13 = arith.constant 0 : index
    %c0_14 = arith.constant 0 : index
    %14 = vector.load %arg5[%c0_13, %c0_14] : memref<1x512xf32, #tpu.memory_space<vmem>>, vector<1x512xf32>
    %15 = vector.broadcast %14 : vector<1x512xf32> to vector<8x512xf32>
    %16 = arith.addf %13, %15 : vector<8x512xf32>
    %cst_15 = arith.constant 0.000000e+00 : f32
    %17 = vector.broadcast %cst_15 : f32 to vector<8x512xf32>
    %18 = arith.maximumf %16, %17 : vector<8x512xf32>
    %19 = arith.truncf %18 : vector<8x512xf32> to vector<8x512xbf16>
    %c0_16 = arith.constant 0 : index
    %c0_17 = arith.constant 0 : index
    %20 = vector.load %arg11[%c0_16, %c0_17] : memref<8x512xbf16, #tpu.memory_space<vmem>>, vector<8x512xbf16>
    tpu.vector_store %arg11[%c0_16, %c0_17], %19 {strides = array<i32>} : memref<8x512xbf16, #tpu.memory_space<vmem>>, vector<8x512xbf16>,
    %c0_18 = arith.constant 0 : index
    %c0_19 = arith.constant 0 : index
    %21 = vector.load %arg11[%c0_18, %c0_19] : memref<8x512xbf16, #tpu.memory_space<vmem>>, vector<8x512xbf16>
    %c0_20 = arith.constant 0 : index
    %c0_21 = arith.constant 0 : index
    %22 = vector.load %arg6[%c0_20, %c0_21] : memref<512x512xbf16, #tpu.memory_space<vmem>>, vector<512x512xbf16>
    %cst_22 = arith.constant dense<0.000000e+00> : vector<8x512xf32>
    %23 = tpu.matmul %21, %22, %cst_22 {dimension_numbers = #tpu.dot_dimension_numbers<[1], [0], [0], [1], [0, 0, 1, 1], [], []>} : vector<8x512xbf16>, vector<512x512xbf16>, vector<8x512xf32> -> vector<8x512xf32>
    %c0_23 = arith.constant 0 : index
    %c0_24 = arith.constant 0 : index
    %24 = vector.load %arg7[%c0_23, %c0_24] : memref<1x512xf32, #tpu.memory_space<vmem>>, vector<1x512xf32>
    %25 = vector.broadcast %24 : vector<1x512xf32> to vector<8x512xf32>
    %26 = arith.addf %23, %25 : vector<8x512xf32>
    %cst_25 = arith.constant 0.000000e+00 : f32
    %27 = vector.broadcast %cst_25 : f32 to vector<8x512xf32>
    %28 = arith.maximumf %26, %27 : vector<8x512xf32>
    %29 = arith.truncf %28 : vector<8x512xf32> to vector<8x512xbf16>
    %c0_26 = arith.constant 0 : index
    %c0_27 = arith.constant 0 : index
    %30 = vector.load %arg11[%c0_26, %c0_27] : memref<8x512xbf16, #tpu.memory_space<vmem>>, vector<8x512xbf16>
    tpu.vector_store %arg11[%c0_26, %c0_27], %29 {strides = array<i32>} : memref<8x512xbf16, #tpu.memory_space<vmem>>, vector<8x512xbf16>,
    %c0_28 = arith.constant 0 : index
    %c0_29 = arith.constant 0 : index
    %31 = vector.load %arg11[%c0_28, %c0_29] : memref<8x512xbf16, #tpu.memory_space<vmem>>, vector<8x512xbf16>
    %c0_30 = arith.constant 0 : index
    %c0_31 = arith.constant 0 : index
    %32 = vector.load %arg8[%c0_30, %c0_31] : memref<512x16xbf16, #tpu.memory_space<vmem>>, vector<512x16xbf16>
    %cst_32 = arith.constant dense<0.000000e+00> : vector<8x16xf32>
    %33 = tpu.matmul %31, %32, %cst_32 {dimension_numbers = #tpu.dot_dimension_numbers<[1], [0], [0], [1], [0, 0, 1, 1], [], []>} : vector<8x512xbf16>, vector<512x16xbf16>, vector<8x16xf32> -> vector<8x16xf32>
    %c0_33 = arith.constant 0 : index
    %c0_34 = arith.constant 0 : index
    %34 = vector.load %arg9[%c0_33, %c0_34] : memref<1x16xf32, #tpu.memory_space<vmem>>, vector<1x16xf32>
    %35 = vector.broadcast %34 : vector<1x16xf32> to vector<8x16xf32>
    %36 = arith.addf %33, %35 : vector<8x16xf32>
    %c0_35 = arith.constant 0 : index
    %c0_36 = arith.constant 0 : index
    %37 = vector.load %arg10[%c0_35, %c0_36] : memref<8x16xf32, #tpu.memory_space<vmem>>, vector<8x16xf32>
    tpu.vector_store %arg10[%c0_35, %c0_36], %36 {strides = array<i32>} : memref<8x16xf32, #tpu.memory_space<vmem>>, vector<8x16xf32>,
    return
  }
  func.func @transform_0(%arg0: i32) -> (i32, i32) {
    %c0_i32 = arith.constant 0 : i32
    %c0_i32_0 = arith.constant 0 : i32
    return %arg0, %c0_i32 : i32, i32
  }
  func.func @transform_1(%arg0: i32) -> (i32, i32) {
    %c0_i32 = arith.constant 0 : i32
    %c0_i32_0 = arith.constant 0 : i32
    %c0_i32_1 = arith.constant 0 : i32
    return %c0_i32, %c0_i32_0 : i32, i32
  }
  func.func @transform_2(%arg0: i32) -> (i32, i32) {
    %c0_i32 = arith.constant 0 : i32
    %c0_i32_0 = arith.constant 0 : i32
    %c0_i32_1 = arith.constant 0 : i32
    return %c0_i32, %c0_i32_0 : i32, i32
  }
  func.func @transform_3(%arg0: i32) -> (i32, i32) {
    %c0_i32 = arith.constant 0 : i32
    %c0_i32_0 = arith.constant 0 : i32
    %c0_i32_1 = arith.constant 0 : i32
    return %c0_i32, %c0_i32_0 : i32, i32
  }
  func.func @transform_4(%arg0: i32) -> (i32, i32) {
    %c0_i32 = arith.constant 0 : i32
    %c0_i32_0 = arith.constant 0 : i32
    %c0_i32_1 = arith.constant 0 : i32
    return %c0_i32, %c0_i32_0 : i32, i32
  }
  func.func @transform_5(%arg0: i32) -> (i32, i32) {
    %c0_i32 = arith.constant 0 : i32
    %c0_i32_0 = arith.constant 0 : i32
    %c0_i32_1 = arith.constant 0 : i32
    return %c0_i32, %c0_i32_0 : i32, i32
  }
  func.func @transform_6(%arg0: i32) -> (i32, i32) {
    %c0_i32 = arith.constant 0 : i32
    %c0_i32_0 = arith.constant 0 : i32
    %c0_i32_1 = arith.constant 0 : i32
    return %c0_i32, %c0_i32_0 : i32, i32
  }
  func.func @transform_7(%arg0: i32) -> (i32, i32) {
    %c0_i32 = arith.constant 0 : i32
    %c0_i32_0 = arith.constant 0 : i32
    %c0_i32_1 = arith.constant 0 : i32
    return %c0_i32, %c0_i32_0 : i32, i32
  }
  func.func @transform_8(%arg0: i32) -> (i32, i32) {
    %c0_i32 = arith.constant 0 : i32
    %c0_i32_0 = arith.constant 0 : i32
    %c0_i32_1 = arith.constant 0 : i32
    return %c0_i32, %c0_i32_0 : i32, i32
  }
  func.func @transform_9(%arg0: i32) -> (i32, i32) {
    %c0_i32 = arith.constant 0 : i32
    %c0_i32_0 = arith.constant 0 : i32
    return %arg0, %c0_i32 : i32, i32
  }
}

module attributes {stable_mosaic.version = 11 : i64} {
  func.func @_mlp_kernel(%arg0: i32, %arg1: memref<8x384xf32, #tpu.memory_space<vmem>>, %arg2: memref<384x512xbf16, #tpu.memory_space<vmem>>, %arg3: memref<1x512xf32, #tpu.memory_space<vmem>>, %arg4: memref<512x512xbf16, #tpu.memory_space<vmem>>, %arg5: memref<1x512xf32, #tpu.memory_space<vmem>>, %arg6: memref<512x512xbf16, #tpu.memory_space<vmem>>, %arg7: memref<1x512xf32, #tpu.memory_space<vmem>>, %arg8: memref<512x16xbf16, #tpu.memory_space<vmem>>, %arg9: memref<1x16xf32, #tpu.memory_space<vmem>>, %arg10: memref<8x16xf32, #tpu.memory_space<vmem>>, %arg11: memref<8x512xbf16, #tpu.memory_space<vmem>>) attributes {dimension_semantics = [#tpu.dimension_semantics<parallel>], iteration_bounds = array<i64: 1>, scalar_prefetch = 0 : i64, scratch_operands = 1 : i64, tpu.core_type = #tpu.core_type<tc>, window_params = [{transform_indices = @transform_0, window_bounds = array<i64: 8, 384>}, {pipeline_mode = #tpu.pipeline_mode<synchronous>, transform_indices = @transform_1, window_bounds = array<i64: 384, 512>}, {pipeline_mode = #tpu.pipeline_mode<synchronous>, transform_indices = @transform_2, window_bounds = array<i64: 1, 512>}, {pipeline_mode = #tpu.pipeline_mode<synchronous>, transform_indices = @transform_3, window_bounds = array<i64: 512, 512>}, {pipeline_mode = #tpu.pipeline_mode<synchronous>, transform_indices = @transform_4, window_bounds = array<i64: 1, 512>}, {pipeline_mode = #tpu.pipeline_mode<synchronous>, transform_indices = @transform_5, window_bounds = array<i64: 512, 512>}, {pipeline_mode = #tpu.pipeline_mode<synchronous>, transform_indices = @transform_6, window_bounds = array<i64: 1, 512>}, {pipeline_mode = #tpu.pipeline_mode<synchronous>, transform_indices = @transform_7, window_bounds = array<i64: 512, 16>}, {pipeline_mode = #tpu.pipeline_mode<synchronous>, transform_indices = @transform_8, window_bounds = array<i64: 1, 16>}, {transform_indices = @transform_9, window_bounds = array<i64: 8, 16>}]} {
    %c0 = arith.constant 0 : index
    %c0_0 = arith.constant 0 : index
    %0 = vector.load %arg1[%c0, %c0_0] : memref<8x384xf32, #tpu.memory_space<vmem>>, vector<8x384xf32>
    %1 = arith.truncf %0 : vector<8x384xf32> to vector<8x384xbf16>
    %c0_1 = arith.constant 0 : index
    %c0_2 = arith.constant 0 : index
    %2 = vector.load %arg2[%c0_1, %c0_2] : memref<384x512xbf16, #tpu.memory_space<vmem>>, vector<384x512xbf16>
    %cst = arith.constant dense<0.000000e+00> : vector<8x512xf32>
    %3 = tpu.matmul %1, %2, %cst {dimension_numbers = #tpu.dot_dimension_numbers<[1], [0], [0], [1], [0, 0, 1, 1], [], []>} : vector<8x384xbf16>, vector<384x512xbf16>, vector<8x512xf32> -> vector<8x512xf32>
    %c0_3 = arith.constant 0 : index
    %c0_4 = arith.constant 0 : index
    %4 = vector.load %arg3[%c0_3, %c0_4] : memref<1x512xf32, #tpu.memory_space<vmem>>, vector<1x512xf32>
    %5 = vector.broadcast %4 : vector<1x512xf32> to vector<8x512xf32>
    %6 = arith.addf %3, %5 : vector<8x512xf32>
    %cst_5 = arith.constant 0.000000e+00 : f32
    %7 = vector.broadcast %cst_5 : f32 to vector<8x512xf32>
    %8 = arith.maximumf %6, %7 : vector<8x512xf32>
    %9 = arith.truncf %8 : vector<8x512xf32> to vector<8x512xbf16>
    %c0_6 = arith.constant 0 : index
    %c0_7 = arith.constant 0 : index
    %10 = vector.load %arg11[%c0_6, %c0_7] : memref<8x512xbf16, #tpu.memory_space<vmem>>, vector<8x512xbf16>
    tpu.vector_store %arg11[%c0_6, %c0_7], %9 {strides = array<i32>} : memref<8x512xbf16, #tpu.memory_space<vmem>>, vector<8x512xbf16>,
    %c0_8 = arith.constant 0 : index
    %c0_9 = arith.constant 0 : index
    %11 = vector.load %arg11[%c0_8, %c0_9] : memref<8x512xbf16, #tpu.memory_space<vmem>>, vector<8x512xbf16>
    %c0_10 = arith.constant 0 : index
    %c0_11 = arith.constant 0 : index
    %12 = vector.load %arg4[%c0_10, %c0_11] : memref<512x512xbf16, #tpu.memory_space<vmem>>, vector<512x512xbf16>
    %cst_12 = arith.constant dense<0.000000e+00> : vector<8x512xf32>
    %13 = tpu.matmul %11, %12, %cst_12 {dimension_numbers = #tpu.dot_dimension_numbers<[1], [0], [0], [1], [0, 0, 1, 1], [], []>} : vector<8x512xbf16>, vector<512x512xbf16>, vector<8x512xf32> -> vector<8x512xf32>
    %c0_13 = arith.constant 0 : index
    %c0_14 = arith.constant 0 : index
    %14 = vector.load %arg5[%c0_13, %c0_14] : memref<1x512xf32, #tpu.memory_space<vmem>>, vector<1x512xf32>
    %15 = vector.broadcast %14 : vector<1x512xf32> to vector<8x512xf32>
    %16 = arith.addf %13, %15 : vector<8x512xf32>
    %cst_15 = arith.constant 0.000000e+00 : f32
    %17 = vector.broadcast %cst_15 : f32 to vector<8x512xf32>
    %18 = arith.maximumf %16, %17 : vector<8x512xf32>
    %19 = arith.truncf %18 : vector<8x512xf32> to vector<8x512xbf16>
    %c0_16 = arith.constant 0 : index
    %c0_17 = arith.constant 0 : index
    %20 = vector.load %arg11[%c0_16, %c0_17] : memref<8x512xbf16, #tpu.memory_space<vmem>>, vector<8x512xbf16>
    tpu.vector_store %arg11[%c0_16, %c0_17], %19 {strides = array<i32>} : memref<8x512xbf16, #tpu.memory_space<vmem>>, vector<8x512xbf16>,
    %c0_18 = arith.constant 0 : index
    %c0_19 = arith.constant 0 : index
    %21 = vector.load %arg11[%c0_18, %c0_19] : memref<8x512xbf16, #tpu.memory_space<vmem>>, vector<8x512xbf16>
    %c0_20 = arith.constant 0 : index
    %c0_21 = arith.constant 0 : index
    %22 = vector.load %arg6[%c0_20, %c0_21] : memref<512x512xbf16, #tpu.memory_space<vmem>>, vector<512x512xbf16>
    %cst_22 = arith.constant dense<0.000000e+00> : vector<8x512xf32>
    %23 = tpu.matmul %21, %22, %cst_22 {dimension_numbers = #tpu.dot_dimension_numbers<[1], [0], [0], [1], [0, 0, 1, 1], [], []>} : vector<8x512xbf16>, vector<512x512xbf16>, vector<8x512xf32> -> vector<8x512xf32>
    %c0_23 = arith.constant 0 : index
    %c0_24 = arith.constant 0 : index
    %24 = vector.load %arg7[%c0_23, %c0_24] : memref<1x512xf32, #tpu.memory_space<vmem>>, vector<1x512xf32>
    %25 = vector.broadcast %24 : vector<1x512xf32> to vector<8x512xf32>
    %26 = arith.addf %23, %25 : vector<8x512xf32>
    %cst_25 = arith.constant 0.000000e+00 : f32
    %27 = vector.broadcast %cst_25 : f32 to vector<8x512xf32>
    %28 = arith.maximumf %26, %27 : vector<8x512xf32>
    %29 = arith.truncf %28 : vector<8x512xf32> to vector<8x512xbf16>
    %c0_26 = arith.constant 0 : index
    %c0_27 = arith.constant 0 : index
    %30 = vector.load %arg11[%c0_26, %c0_27] : memref<8x512xbf16, #tpu.memory_space<vmem>>, vector<8x512xbf16>
    tpu.vector_store %arg11[%c0_26, %c0_27], %29 {strides = array<i32>} : memref<8x512xbf16, #tpu.memory_space<vmem>>, vector<8x512xbf16>,
    %c0_28 = arith.constant 0 : index
    %c0_29 = arith.constant 0 : index
    %31 = vector.load %arg11[%c0_28, %c0_29] : memref<8x512xbf16, #tpu.memory_space<vmem>>, vector<8x512xbf16>
    %c0_30 = arith.constant 0 : index
    %c0_31 = arith.constant 0 : index
    %32 = vector.load %arg8[%c0_30, %c0_31] : memref<512x16xbf16, #tpu.memory_space<vmem>>, vector<512x16xbf16>
    %cst_32 = arith.constant dense<0.000000e+00> : vector<8x16xf32>
    %33 = tpu.matmul %31, %32, %cst_32 {dimension_numbers = #tpu.dot_dimension_numbers<[1], [0], [0], [1], [0, 0, 1, 1], [], []>} : vector<8x512xbf16>, vector<512x16xbf16>, vector<8x16xf32> -> vector<8x16xf32>
    %c0_33 = arith.constant 0 : index
    %c0_34 = arith.constant 0 : index
    %34 = vector.load %arg9[%c0_33, %c0_34] : memref<1x16xf32, #tpu.memory_space<vmem>>, vector<1x16xf32>
    %35 = vector.broadcast %34 : vector<1x16xf32> to vector<8x16xf32>
    %36 = arith.addf %33, %35 : vector<8x16xf32>
    %c0_35 = arith.constant 0 : index
    %c0_36 = arith.constant 0 : index
    %37 = vector.load %arg10[%c0_35, %c0_36] : memref<8x16xf32, #tpu.memory_space<vmem>>, vector<8x16xf32>
    tpu.vector_store %arg10[%c0_35, %c0_36], %36 {strides = array<i32>} : memref<8x16xf32, #tpu.memory_space<vmem>>, vector<8x16xf32>,
    return
  }
  func.func @transform_0(%arg0: i32) -> (i32, i32) {
    %c0_i32 = arith.constant 0 : i32
    %c0_i32_0 = arith.constant 0 : i32
    return %arg0, %c0_i32 : i32, i32
  }
  func.func @transform_1(%arg0: i32) -> (i32, i32) {
    %c0_i32 = arith.constant 0 : i32
    %c0_i32_0 = arith.constant 0 : i32
    %c0_i32_1 = arith.constant 0 : i32
    return %c0_i32, %c0_i32_0 : i32, i32
  }
  func.func @transform_2(%arg0: i32) -> (i32, i32) {
    %c0_i32 = arith.constant 0 : i32
    %c0_i32_0 = arith.constant 0 : i32
    %c0_i32_1 = arith.constant 0 : i32
    return %c0_i32, %c0_i32_0 : i32, i32
  }
  func.func @transform_3(%arg0: i32) -> (i32, i32) {
    %c0_i32 = arith.constant 0 : i32
    %c0_i32_0 = arith.constant 0 : i32
    %c0_i32_1 = arith.constant 0 : i32
    return %c0_i32, %c0_i32_0 : i32, i32
  }
  func.func @transform_4(%arg0: i32) -> (i32, i32) {
    %c0_i32 = arith.constant 0 : i32
    %c0_i32_0 = arith.constant 0 : i32
    %c0_i32_1 = arith.constant 0 : i32
    return %c0_i32, %c0_i32_0 : i32, i32
  }
  func.func @transform_5(%arg0: i32) -> (i32, i32) {
    %c0_i32 = arith.constant 0 : i32
    %c0_i32_0 = arith.constant 0 : i32
    %c0_i32_1 = arith.constant 0 : i32
    return %c0_i32, %c0_i32_0 : i32, i32
  }
  func.func @transform_6(%arg0: i32) -> (i32, i32) {
    %c0_i32 = arith.constant 0 : i32
    %c0_i32_0 = arith.constant 0 : i32
    %c0_i32_1 = arith.constant 0 : i32
    return %c0_i32, %c0_i32_0 : i32, i32
  }
  func.func @transform_7(%arg0: i32) -> (i32, i32) {
    %c0_i32 = arith.constant 0 : i32
    %c0_i32_0 = arith.constant 0 : i32
    %c0_i32_1 = arith.constant 0 : i32
    return %c0_i32, %c0_i32_0 : i32, i32
  }
  func.func @transform_8(%arg0: i32) -> (i32, i32) {
    %c0_i32 = arith.constant 0 : i32
    %c0_i32_0 = arith.constant 0 : i32
    %c0_i32_1 = arith.constant 0 : i32
    return %c0_i32, %c0_i32_0 : i32, i32
  }
  func.func @transform_9(%arg0: i32) -> (i32, i32) {
    %c0_i32 = arith.constant 0 : i32
    %c0_i32_0 = arith.constant 0 : i32
    return %arg0, %c0_i32 : i32, i32
  }
}

</mosaic_0001>

<llo_original>
// kernel: pc_encoder_forward.1
$region0: #{pc_encoder_forward.1}
  #allocation0 [shape = 'u32[]', space=smem, size = 0x4, offset = 0x4, fixed_abs, tag = 'smem constant byte address 0x4 - core index']
  #allocation1 [shape = 'u32[72,128]{1,0:T(1,128)}', space=vmem, size = 0x9000, scoped, tag = 'internal scratch']
  #allocation2 [shape = 'bf16[8,512]{1,0:T(8,128)(2,1)}', space=vmem, size = 0x2000, scoped, tag = 'scratch operand']
  %s0 = inlined_call_operand.vmem [shape: f32[8,384], index: 0, kind: input, shape index: {}]
  %s1 = inlined_call_operand.vmem [shape: bf16[384,512], index: 1, kind: input, shape index: {}]
  %s2 = inlined_call_operand.vmem [shape: f32[1,512], index: 2, kind: input, shape index: {}]
  %s3 = inlined_call_operand.hbm [shape: bf16[512,512], index: 3, kind: input, shape index: {}]
  %s4 = inlined_call_operand.vmem [shape: f32[1,512], index: 4, kind: input, shape index: {}]
  %s5 = inlined_call_operand.hbm [shape: bf16[512,512], index: 5, kind: input, shape index: {}]
  %s6 = inlined_call_operand.vmem [shape: f32[1,512], index: 6, kind: input, shape index: {}]
  %s7 = inlined_call_operand.vmem [shape: bf16[512,16], index: 7, kind: input, shape index: {}]
  %s8 = inlined_call_operand.vmem [shape: f32[1,16], index: 8, kind: input, shape index: {}]
  %s9 = inlined_call_operand.vmem [shape: f32[8,16], index: 9, kind: output, shape index: {}]
  %s10 = sld [smem:[#allocation0]]
  $region54: #{pc_encoder_forward.1} parent=0
    _
  %s12 = ssub.s32 1, %s10
  %s13 = scalar_select 0, %s12, %s10
  $region1: #{pc_encoder_forward.1} parent=0
    #allocation3 [shape = 'u8[524288]{0}', space=vmem, size = 0x80000, scoped, tag = 'input window, operand 3, single buffered']
    #allocation4 [shape = 's32[1]{0}', space=sflag, size = 0x4, scoped, tag = 'scoped memory for pc_encoder_forward.1']
    #allocation5 [shape = 'u8[524288]{0}', space=vmem, size = 0x80000, scoped, tag = 'input window, operand 5, single buffered']
    #allocation6 [shape = 's32[1]{0}', space=sflag, size = 0x4, scoped, tag = 'scoped memory for pc_encoder_forward.1']
    %14 = vsyncpa [#allocation4], 0
    %15 = vsyncpa [#allocation6], 0
    // Predicated region
    $region2: #{pc_encoder_forward.1} parent=1 // pred_check
      _
    $region3: #{pc_encoder_forward.1} parent=1 // pred_check_branch
      %17 = sbr.rel (0) target = $region5
    $region4: #{pc_encoder_forward.1} parent=1 // pred_region
      _
    $region5: #{pc_encoder_forward.1} parent=1 // pred_fallthru
      _
    // Predicated region
    $region6: #{pc_encoder_forward.1} parent=1 // pred_check
      _
    $region7: #{pc_encoder_forward.1} parent=1 // pred_check_branch
      %19 = sbr.rel (0) target = $region9
    $region8: #{pc_encoder_forward.1} parent=1 // pred_region
      _
    $region9: #{pc_encoder_forward.1} parent=1 // pred_fallthru
      _
    // Predicated region
    $region10: #{pc_encoder_forward.1} parent=1 // pred_check
      _
    $region11: #{pc_encoder_forward.1} parent=1 // pred_check_branch
      %21 = sbr.rel (0) target = $region13
    $region12: #{pc_encoder_forward.1} parent=1 // pred_region
      _
    $region13: #{pc_encoder_forward.1} parent=1 // pred_fallthru
      _
    // Predicated region
    $region14: #{pc_encoder_forward.1} parent=1 // pred_check
      _
    $region15: #{pc_encoder_forward.1} parent=1 // pred_check_branch
      %23 = sbr.rel (0) target = $region17
    $region16: #{pc_encoder_forward.1} parent=1 // pred_region
      %25 = vsyncadd [#allocation4], 0
      %s26 = sshll.u32 %s3, 4
      %s27 = int_to_ptr.hbm [resolvable:$true] %s26
      %s28 = sshll.u32 [#allocation3], 4
      %s29 = int_to_ptr.vmem [resolvable:$true] %s28
      %34 = dma.hbm_to_vmem [thread:$0]  %s27, 16384, %s29, [#allocation4], 256, 256, 16
    $region17: #{pc_encoder_forward.1} parent=1 // pred_fallthru
      _
    // Predicated region
    $region18: #{pc_encoder_forward.1} parent=1 // pred_check
      _
    $region19: #{pc_encoder_forward.1} parent=1 // pred_check_branch
      %36 = sbr.rel (0) target = $region21
    $region20: #{pc_encoder_forward.1} parent=1 // pred_region
      _
    $region21: #{pc_encoder_forward.1} parent=1 // pred_fallthru
      _
    // Predicated region
    $region22: #{pc_encoder_forward.1} parent=1 // pred_check
      _
    $region23: #{pc_encoder_forward.1} parent=1 // pred_check_branch
      %38 = sbr.rel (0) target = $region25
    $region24: #{pc_encoder_forward.1} parent=1 // pred_region
      %40 = vsyncadd [#allocation6], 0
      %s41 = sshll.u32 %s5, 4
      %s42 = int_to_ptr.hbm [resolvable:$true] %s41
      %s43 = sshll.u32 [#allocation5], 4
      %s44 = int_to_ptr.vmem [resolvable:$true] %s43
      %49 = dma.hbm_to_vmem [thread:$0]  %s42, 16384, %s44, [#allocation6], 256, 256, 16
    $region25: #{pc_encoder_forward.1} parent=1 // pred_fallthru
      _
    // Predicated region
    $region26: #{pc_encoder_forward.1} parent=1 // pred_check
      _
    $region27: #{pc_encoder_forward.1} parent=1 // pred_check_branch
      %51 = sbr.rel (0) target = $region29
    $region28: #{pc_encoder_forward.1} parent=1 // pred_region
      _
    $region29: #{pc_encoder_forward.1} parent=1 // pred_fallthru
      _
    // Predicated region
    $region30: #{pc_encoder_forward.1} parent=1 // pred_check
      _
    $region31: #{pc_encoder_forward.1} parent=1 // pred_check_branch
      %53 = sbr.rel (0) target = $region33
    $region32: #{pc_encoder_forward.1} parent=1 // pred_region
      _
    $region33: #{pc_encoder_forward.1} parent=1 // pred_fallthru
      _
    // Predicated region
    $region34: #{pc_encoder_forward.1} parent=1 // pred_check
      _
    $region35: #{pc_encoder_forward.1} parent=1 // pred_check_branch
      %55 = sbr.rel (0) target = $region37
    $region36: #{pc_encoder_forward.1} parent=1 // pred_region
      _
    $region37: #{pc_encoder_forward.1} parent=1 // pred_fallthru
      _
    // Predicated region
    $region38: #{pc_encoder_forward.1} parent=1 // pred_check
      _
    $region39: #{pc_encoder_forward.1} parent=1 // pred_check_branch
      %57 = sbr.rel (0) target = $region41
    $region40: #{pc_encoder_forward.1} parent=1 // pred_region
      %59 = dma.done [#allocation4], 16384
    $region41: #{pc_encoder_forward.1} parent=1 // pred_fallthru
      _
    // Predicated region
    $region42: #{pc_encoder_forward.1} parent=1 // pred_check
      _
    $region43: #{pc_encoder_forward.1} parent=1 // pred_check_branch
      %61 = sbr.rel (0) target = $region45
    $region44: #{pc_encoder_forward.1} parent=1 // pred_region
      %63 = dma.done [#allocation6], 16384
    $region45: #{pc_encoder_forward.1} parent=1 // pred_fallthru
      _
    %v64 = vld [vmem:[%s0] sm:$0xff]
    %v65 = vld [vmem:[%s0 + $0x8] sm:$0xff]
    %v66 = vld [vmem:[%s0 + $0x10] sm:$0xff]
    %v67 = vpack.c.bf16 %v64, %v64
    %v68 = vpack.c.bf16 %v65, %v65
    %v69 = vpack.c.bf16 %v66, %v66
    %v70 = vld [vmem:[%s1] sm:$0xff]
    %v71 = vld [vmem:[%s1 + $0x8] sm:$0xff]
    %v72 = vld [vmem:[%s1 + $0x10] sm:$0xff]
    %v73 = vld [vmem:[%s1 + $0x18] sm:$0xff]
    %v74 = vld [vmem:[%s1 + $0x20] sm:$0xff]
    %v75 = vld [vmem:[%s1 + $0x28] sm:$0xff]
    %v76 = vld [vmem:[%s1 + $0x30] sm:$0xff]
    %v77 = vld [vmem:[%s1 + $0x38] sm:$0xff]
    %v78 = vld [vmem:[%s1 + $0x40] sm:$0xff]
    %v79 = vld [vmem:[%s1 + $0x48] sm:$0xff]
    %v80 = vld [vmem:[%s1 + $0x50] sm:$0xff]
    %v81 = vld [vmem:[%s1 + $0x58] sm:$0xff]
    %v82 = vld [vmem:[%s1 + $0x60] sm:$0xff]
    %v83 = vld [vmem:[%s1 + $0x68] sm:$0xff]
    %v84 = vld [vmem:[%s1 + $0x70] sm:$0xff]
    %v85 = vld [vmem:[%s1 + $0x78] sm:$0xff]
    %v86 = vld [vmem:[%s1 + $0x80] sm:$0xff]
    %v87 = vld [vmem:[%s1 + $0x88] sm:$0xff]
    %v88 = vld [vmem:[%s1 + $0x90] sm:$0xff]
    %v89 = vld [vmem:[%s1 + $0x98] sm:$0xff]
    %v90 = vld [vmem:[%s1 + $0xa0] sm:$0xff]
    %v91 = vld [vmem:[%s1 + $0xa8] sm:$0xff]
    %v92 = vld [vmem:[%s1 + $0xb0] sm:$0xff]
    %v93 = vld [vmem:[%s1 + $0xb8] sm:$0xff]
    %v94 = vld [vmem:[%s1 + $0xc0] sm:$0xff]
    %v95 = vld [vmem:[%s1 + $0xc8] sm:$0xff]
    %v96 = vld [vmem:[%s1 + $0xd0] sm:$0xff]
    %v97 = vld [vmem:[%s1 + $0xd8] sm:$0xff]
    %v98 = vld [vmem:[%s1 + $0xe0] sm:$0xff]
    %v99 = vld [vmem:[%s1 + $0xe8] sm:$0xff]
    %v100 = vld [vmem:[%s1 + $0xf0] sm:$0xff]
    %v101 = vld [vmem:[%s1 + $0xf8] sm:$0xff]
    %v102 = vld [vmem:[%s1 + $0x100] sm:$0xff]
    %v103 = vld [vmem:[%s1 + $0x108] sm:$0xff]
    %v104 = vld [vmem:[%s1 + $0x110] sm:$0xff]
    %v105 = vld [vmem:[%s1 + $0x118] sm:$0xff]
    %v106 = vld [vmem:[%s1 + $0x120] sm:$0xff]
    %v107 = vld [vmem:[%s1 + $0x128] sm:$0xff]
    %v108 = vld [vmem:[%s1 + $0x130] sm:$0xff]
    %v109 = vld [vmem:[%s1 + $0x138] sm:$0xff]
    %v110 = vld [vmem:[%s1 + $0x140] sm:$0xff]
    %v111 = vld [vmem:[%s1 + $0x148] sm:$0xff]
    %v112 = vld [vmem:[%s1 + $0x150] sm:$0xff]
    %v113 = vld [vmem:[%s1 + $0x158] sm:$0xff]
    %v114 = vld [vmem:[%s1 + $0x160] sm:$0xff]
    %v115 = vld [vmem:[%s1 + $0x168] sm:$0xff]
    %v116 = vld [vmem:[%s1 + $0x170] sm:$0xff]
    %v117 = vld [vmem:[%s1 + $0x178] sm:$0xff]
    %v118 = vld [vmem:[%s1 + $0x180] sm:$0xff]
    %v119 = vld [vmem:[%s1 + $0x188] sm:$0xff]
    %v120 = vld [vmem:[%s1 + $0x190] sm:$0xff]
    %v121 = vld [vmem:[%s1 + $0x198] sm:$0xff]
    %v122 = vld [vmem:[%s1 + $0x1a0] sm:$0xff]
    %v123 = vld [vmem:[%s1 + $0x1a8] sm:$0xff]
    %v124 = vld [vmem:[%s1 + $0x1b0] sm:$0xff]
    %v125 = vld [vmem:[%s1 + $0x1b8] sm:$0xff]
    %v126 = vld [vmem:[%s1 + $0x1c0] sm:$0xff]
    %v127 = vld [vmem:[%s1 + $0x1c8] sm:$0xff]
    %v128 = vld [vmem:[%s1 + $0x1d0] sm:$0xff]
    %v129 = vld [vmem:[%s1 + $0x1d8] sm:$0xff]
    %v130 = vld [vmem:[%s1 + $0x1e0] sm:$0xff]
    %v131 = vld [vmem:[%s1 + $0x1e8] sm:$0xff]
    %v132 = vld [vmem:[%s1 + $0x1f0] sm:$0xff]
    %v133 = vld [vmem:[%s1 + $0x1f8] sm:$0xff]
    %v134 = vld [vmem:[%s1 + $0x200] sm:$0xff]
    %v135 = vld [vmem:[%s1 + $0x208] sm:$0xff]
    %v136 = vld [vmem:[%s1 + $0x210] sm:$0xff]
    %v137 = vld [vmem:[%s1 + $0x218] sm:$0xff]
    %v138 = vld [vmem:[%s1 + $0x220] sm:$0xff]
    %v139 = vld [vmem:[%s1 + $0x228] sm:$0xff]
    %v140 = vld [vmem:[%s1 + $0x230] sm:$0xff]
    %v141 = vld [vmem:[%s1 + $0x238] sm:$0xff]
    %v142 = vld [vmem:[%s1 + $0x240] sm:$0xff]
    %v143 = vld [vmem:[%s1 + $0x248] sm:$0xff]
    %v144 = vld [vmem:[%s1 + $0x250] sm:$0xff]
    %v145 = vld [vmem:[%s1 + $0x258] sm:$0xff]
    %v146 = vld [vmem:[%s1 + $0x260] sm:$0xff]
    %v147 = vld [vmem:[%s1 + $0x268] sm:$0xff]
    %v148 = vld [vmem:[%s1 + $0x270] sm:$0xff]
    %v149 = vld [vmem:[%s1 + $0x278] sm:$0xff]
    %v150 = vld [vmem:[%s1 + $0x280] sm:$0xff]
    %v151 = vld [vmem:[%s1 + $0x288] sm:$0xff]
    %v152 = vld [vmem:[%s1 + $0x290] sm:$0xff]
    %v153 = vld [vmem:[%s1 + $0x298] sm:$0xff]
    %v154 = vld [vmem:[%s1 + $0x2a0] sm:$0xff]
    %v155 = vld [vmem:[%s1 + $0x2a8] sm:$0xff]
    %v156 = vld [vmem:[%s1 + $0x2b0] sm:$0xff]
    %v157 = vld [vmem:[%s1 + $0x2b8] sm:$0xff]
    %v158 = vld [vmem:[%s1 + $0x2c0] sm:$0xff]
    %v159 = vld [vmem:[%s1 + $0x2c8] sm:$0xff]
    %v160 = vld [vmem:[%s1 + $0x2d0] sm:$0xff]
    %v161 = vld [vmem:[%s1 + $0x2d8] sm:$0xff]
    %v162 = vld [vmem:[%s1 + $0x2e0] sm:$0xff]
    %v163 = vld [vmem:[%s1 + $0x2e8] sm:$0xff]
    %v164 = vld [vmem:[%s1 + $0x2f0] sm:$0xff]
    %v165 = vld [vmem:[%s1 + $0x2f8] sm:$0xff]
    %v166 = vld [vmem:[%s2] sm:$0xf]
    %v168 = vperm.slane %v166, 0
    %v169 = vperm.slane %v166, 1
    %v170 = vperm.slane %v166, 2
    %v171 = vperm.slane %v166, 3
    %v272 = vunpack.c.l.b16 %v70
    %v273 = vunpack.c.h.b16 %v70
    %v274 = vunpack.c.l.b16 %v71
    %v275 = vunpack.c.h.b16 %v71
    %v276 = vunpack.c.l.b16 %v72
    %v277 = vunpack.c.h.b16 %v72
    %v278 = vunpack.c.l.b16 %v73
    %v279 = vunpack.c.h.b16 %v73
    %v280 = vunpack.c.l.b16 %v74
    %v281 = vunpack.c.h.b16 %v74
    %v282 = vunpack.c.l.b16 %v75
    %v283 = vunpack.c.h.b16 %v75
    %v284 = vunpack.c.l.b16 %v76
    %v285 = vunpack.c.h.b16 %v76
    %v286 = vunpack.c.l.b16 %v77
    %v287 = vunpack.c.h.b16 %v77
    %v288 = vunpack.c.l.b16 %v78
    %v289 = vunpack.c.h.b16 %v78
    %v290 = vunpack.c.l.b16 %v79
    %v291 = vunpack.c.h.b16 %v79
    %v292 = vunpack.c.l.b16 %v80
    %v293 = vunpack.c.h.b16 %v80
    %v294 = vunpack.c.l.b16 %v81
    %v295 = vunpack.c.h.b16 %v81
    %v296 = vunpack.c.l.b16 %v82
    %v297 = vunpack.c.h.b16 %v82
    %v298 = vunpack.c.l.b16 %v83
    %v299 = vunpack.c.h.b16 %v83
    %v300 = vunpack.c.l.b16 %v84
    %v301 = vunpack.c.h.b16 %v84
    %v302 = vunpack.c.l.b16 %v85
    %v303 = vunpack.c.h.b16 %v85
    %v304 = vunpack.c.l.b16 %v86
    %v305 = vunpack.c.h.b16 %v86
    %v306 = vunpack.c.l.b16 %v87
    %v307 = vunpack.c.h.b16 %v87
    %v308 = vunpack.c.l.b16 %v88
    %v309 = vunpack.c.h.b16 %v88
    %v310 = vunpack.c.l.b16 %v89
    %v311 = vunpack.c.h.b16 %v89
    %v312 = vunpack.c.l.b16 %v90
    %v313 = vunpack.c.h.b16 %v90
    %v314 = vunpack.c.l.b16 %v91
    %v315 = vunpack.c.h.b16 %v91
    %v316 = vunpack.c.l.b16 %v92
    %v317 = vunpack.c.h.b16 %v92
    %v318 = vunpack.c.l.b16 %v93
    %v319 = vunpack.c.h.b16 %v93
    %v320 = vunpack.c.l.b16 %v94
    %v321 = vunpack.c.h.b16 %v94
    %v322 = vunpack.c.l.b16 %v95
    %v323 = vunpack.c.h.b16 %v95
    %v324 = vunpack.c.l.b16 %v96
    %v325 = vunpack.c.h.b16 %v96
    %v326 = vunpack.c.l.b16 %v97
    %v327 = vunpack.c.h.b16 %v97
    %v328 = vunpack.c.l.b16 %v98
    %v329 = vunpack.c.h.b16 %v98
    %v330 = vunpack.c.l.b16 %v99
    %v331 = vunpack.c.h.b16 %v99
    %v332 = vunpack.c.l.b16 %v100
    %v333 = vunpack.c.h.b16 %v100
    %v334 = vunpack.c.l.b16 %v101
    %v335 = vunpack.c.h.b16 %v101
    %v336 = vunpack.c.l.b16 %v102
    %v337 = vunpack.c.h.b16 %v102
    %v338 = vunpack.c.l.b16 %v103
    %v339 = vunpack.c.h.b16 %v103
    %v340 = vunpack.c.l.b16 %v104
    %v341 = vunpack.c.h.b16 %v104
    %v342 = vunpack.c.l.b16 %v105
    %v343 = vunpack.c.h.b16 %v105
    %v344 = vunpack.c.l.b16 %v106
    %v345 = vunpack.c.h.b16 %v106
    %v346 = vunpack.c.l.b16 %v107
    %v347 = vunpack.c.h.b16 %v107
    %v348 = vunpack.c.l.b16 %v108
    %v349 = vunpack.c.h.b16 %v108
    %v350 = vunpack.c.l.b16 %v109
    %v351 = vunpack.c.h.b16 %v109
    %v352 = vunpack.c.l.b16 %v110
    %v353 = vunpack.c.h.b16 %v110
    %v354 = vunpack.c.l.b16 %v111
    %v355 = vunpack.c.h.b16 %v111
    %v356 = vunpack.c.l.b16 %v112
    %v357 = vunpack.c.h.b16 %v112
    %v358 = vunpack.c.l.b16 %v113
    %v359 = vunpack.c.h.b16 %v113
    %v360 = vunpack.c.l.b16 %v114
    %v361 = vunpack.c.h.b16 %v114
    %v362 = vunpack.c.l.b16 %v115
    %v363 = vunpack.c.h.b16 %v115
    %v364 = vunpack.c.l.b16 %v116
    %v365 = vunpack.c.h.b16 %v116
    %v366 = vunpack.c.l.b16 %v117
    %v367 = vunpack.c.h.b16 %v117
    %v368 = vunpack.c.l.b16 %v118
    %v369 = vunpack.c.h.b16 %v118
    %v370 = vunpack.c.l.b16 %v119
    %v371 = vunpack.c.h.b16 %v119
    %v372 = vunpack.c.l.b16 %v120
    %v373 = vunpack.c.h.b16 %v120
    %v374 = vunpack.c.l.b16 %v121
    %v375 = vunpack.c.h.b16 %v121
    %v376 = vunpack.c.l.b16 %v122
    %v377 = vunpack.c.h.b16 %v122
    %v378 = vunpack.c.l.b16 %v123
    %v379 = vunpack.c.h.b16 %v123
    %v380 = vunpack.c.l.b16 %v124
    %v381 = vunpack.c.h.b16 %v124
    %v382 = vunpack.c.l.b16 %v125
    %v383 = vunpack.c.h.b16 %v125
    %v384 = vunpack.c.l.b16 %v126
    %v385 = vunpack.c.h.b16 %v126
    %v386 = vunpack.c.l.b16 %v127
    %v387 = vunpack.c.h.b16 %v127
    %v388 = vunpack.c.l.b16 %v128
    %v389 = vunpack.c.h.b16 %v128
    %v390 = vunpack.c.l.b16 %v129
    %v391 = vunpack.c.h.b16 %v129
    %v392 = vunpack.c.l.b16 %v130
    %v393 = vunpack.c.h.b16 %v130
    %v394 = vunpack.c.l.b16 %v131
    %v395 = vunpack.c.h.b16 %v131
    %v396 = vunpack.c.l.b16 %v132
    %v397 = vunpack.c.h.b16 %v132
    %v398 = vunpack.c.l.b16 %v133
    %v399 = vunpack.c.h.b16 %v133
    %v400 = vunpack.c.l.b16 %v134
    %v401 = vunpack.c.h.b16 %v134
    %v402 = vunpack.c.l.b16 %v135
    %v403 = vunpack.c.h.b16 %v135
    %v404 = vunpack.c.l.b16 %v136
    %v405 = vunpack.c.h.b16 %v136
    %v406 = vunpack.c.l.b16 %v137
    %v407 = vunpack.c.h.b16 %v137
    %v408 = vunpack.c.l.b16 %v138
    %v409 = vunpack.c.h.b16 %v138
    %v410 = vunpack.c.l.b16 %v139
    %v411 = vunpack.c.h.b16 %v139
    %v412 = vunpack.c.l.b16 %v140
    %v413 = vunpack.c.h.b16 %v140
    %v414 = vunpack.c.l.b16 %v141
    %v415 = vunpack.c.h.b16 %v141
    %v416 = vunpack.c.l.b16 %v142
    %v417 = vunpack.c.h.b16 %v142
    %v418 = vunpack.c.l.b16 %v143
    %v419 = vunpack.c.h.b16 %v143
    %v420 = vunpack.c.l.b16 %v144
    %v421 = vunpack.c.h.b16 %v144
    %v422 = vunpack.c.l.b16 %v145
    %v423 = vunpack.c.h.b16 %v145
    %v424 = vunpack.c.l.b16 %v146
    %v425 = vunpack.c.h.b16 %v146
    %v426 = vunpack.c.l.b16 %v147
    %v427 = vunpack.c.h.b16 %v147
    %v428 = vunpack.c.l.b16 %v148
    %v429 = vunpack.c.h.b16 %v148
    %v430 = vunpack.c.l.b16 %v149
    %v431 = vunpack.c.h.b16 %v149
    %v432 = vunpack.c.l.b16 %v150
    %v433 = vunpack.c.h.b16 %v150
    %v434 = vunpack.c.l.b16 %v151
    %v435 = vunpack.c.h.b16 %v151
    %v436 = vunpack.c.l.b16 %v152
    %v437 = vunpack.c.h.b16 %v152
    %v438 = vunpack.c.l.b16 %v153
    %v439 = vunpack.c.h.b16 %v153
    %v440 = vunpack.c.l.b16 %v154
    %v441 = vunpack.c.h.b16 %v154
    %v442 = vunpack.c.l.b16 %v155
    %v443 = vunpack.c.h.b16 %v155
    %v444 = vunpack.c.l.b16 %v156
    %v445 = vunpack.c.h.b16 %v156
    %v446 = vunpack.c.l.b16 %v157
    %v447 = vunpack.c.h.b16 %v157
    %v448 = vunpack.c.l.b16 %v158
    %v449 = vunpack.c.h.b16 %v158
    %v450 = vunpack.c.l.b16 %v159
    %v451 = vunpack.c.h.b16 %v159
    %v452 = vunpack.c.l.b16 %v160
    %v453 = vunpack.c.h.b16 %v160
    %v454 = vunpack.c.l.b16 %v161
    %v455 = vunpack.c.h.b16 %v161
    %v456 = vunpack.c.l.b16 %v162
    %v457 = vunpack.c.h.b16 %v162
    %v458 = vunpack.c.l.b16 %v163
    %v459 = vunpack.c.h.b16 %v163
    %v460 = vunpack.c.l.b16 %v164
    %v461 = vunpack.c.h.b16 %v164
    %v462 = vunpack.c.l.b16 %v165
    %v463 = vunpack.c.h.b16 %v165
    %v464 = vpack.c.b16 %v276, %v272
    %v465 = vpack.c.b16 %v277, %v273
    %v466 = vpack.c.b16 %v278, %v274
    %v467 = vpack.c.b16 %v279, %v275
    %v468 = vpack.c.b16 %v284, %v280
    %v469 = vpack.c.b16 %v285, %v281
    %v470 = vpack.c.b16 %v286, %v282
    %v471 = vpack.c.b16 %v287, %v283
    %v472 = vpack.c.b16 %v292, %v288
    %v473 = vpack.c.b16 %v293, %v289
    %v474 = vpack.c.b16 %v294, %v290
    %v475 = vpack.c.b16 %v295, %v291
    %v476 = vpack.c.b16 %v300, %v296
    %v477 = vpack.c.b16 %v301, %v297
    %v478 = vpack.c.b16 %v302, %v298
    %v479 = vpack.c.b16 %v303, %v299
    %v480 = vpack.c.b16 %v308, %v304
    %v481 = vpack.c.b16 %v309, %v305
    %v482 = vpack.c.b16 %v310, %v306
    %v483 = vpack.c.b16 %v311, %v307
    %v484 = vpack.c.b16 %v316, %v312
    %v485 = vpack.c.b16 %v317, %v313
    %v486 = vpack.c.b16 %v318, %v314
    %v487 = vpack.c.b16 %v319, %v315
    %v488 = vpack.c.b16 %v324, %v320
    %v489 = vpack.c.b16 %v325, %v321
    %v490 = vpack.c.b16 %v326, %v322
    %v491 = vpack.c.b16 %v327, %v323
    %v492 = vpack.c.b16 %v332, %v328
    %v493 = vpack.c.b16 %v333, %v329
    %v494 = vpack.c.b16 %v334, %v330
    %v495 = vpack.c.b16 %v335, %v331
    %v496 = vpack.c.b16 %v340, %v336
    %v497 = vpack.c.b16 %v341, %v337
    %v498 = vpack.c.b16 %v342, %v338
    %v499 = vpack.c.b16 %v343, %v339
    %v500 = vpack.c.b16 %v348, %v344
    %v501 = vpack.c.b16 %v349, %v345
    %v502 = vpack.c.b16 %v350, %v346
    %v503 = vpack.c.b16 %v351, %v347
    %v504 = vpack.c.b16 %v356, %v352
    %v505 = vpack.c.b16 %v357, %v353
    %v506 = vpack.c.b16 %v358, %v354
    %v507 = vpack.c.b16 %v359, %v355
    %v508 = vpack.c.b16 %v364, %v360
    %v509 = vpack.c.b16 %v365, %v361
    %v510 = vpack.c.b16 %v366, %v362
    %v511 = vpack.c.b16 %v367, %v363
    %v512 = vpack.c.b16 %v372, %v368
    %v513 = vpack.c.b16 %v373, %v369
    %v514 = vpack.c.b16 %v374, %v370
    %v515 = vpack.c.b16 %v375, %v371
    %v516 = vpack.c.b16 %v380, %v376
    %v517 = vpack.c.b16 %v381, %v377
    %v518 = vpack.c.b16 %v382, %v378
    %v519 = vpack.c.b16 %v383, %v379
    %v520 = vpack.c.b16 %v388, %v384
    %v521 = vpack.c.b16 %v389, %v385
    %v522 = vpack.c.b16 %v390, %v386
    %v523 = vpack.c.b16 %v391, %v387
    %v524 = vpack.c.b16 %v396, %v392
    %v525 = vpack.c.b16 %v397, %v393
    %v526 = vpack.c.b16 %v398, %v394
    %v527 = vpack.c.b16 %v399, %v395
    %v528 = vpack.c.b16 %v404, %v400
    %v529 = vpack.c.b16 %v405, %v401
    %v530 = vpack.c.b16 %v406, %v402
    %v531 = vpack.c.b16 %v407, %v403
    %v532 = vpack.c.b16 %v412, %v408
    %v533 = vpack.c.b16 %v413, %v409
    %v534 = vpack.c.b16 %v414, %v410
    %v535 = vpack.c.b16 %v415, %v411
    %v536 = vpack.c.b16 %v420, %v416
    %v537 = vpack.c.b16 %v421, %v417
    %v538 = vpack.c.b16 %v422, %v418
    %v539 = vpack.c.b16 %v423, %v419
    %v540 = vpack.c.b16 %v428, %v424
    %v541 = vpack.c.b16 %v429, %v425
    %v542 = vpack.c.b16 %v430, %v426
    %v543 = vpack.c.b16 %v431, %v427
    %v544 = vpack.c.b16 %v436, %v432
    %v545 = vpack.c.b16 %v437, %v433
    %v546 = vpack.c.b16 %v438, %v434
    %v547 = vpack.c.b16 %v439, %v435
    %v548 = vpack.c.b16 %v444, %v440
    %v549 = vpack.c.b16 %v445, %v441
    %v550 = vpack.c.b16 %v446, %v442
    %v551 = vpack.c.b16 %v447, %v443
    %v552 = vpack.c.b16 %v452, %v448
    %v553 = vpack.c.b16 %v453, %v449
    %v554 = vpack.c.b16 %v454, %v450
    %v555 = vpack.c.b16 %v455, %v451
    %v556 = vpack.c.b16 %v460, %v456
    %v557 = vpack.c.b16 %v461, %v457
    %v558 = vpack.c.b16 %v462, %v458
    %v559 = vpack.c.b16 %v463, %v459
    %656 = vmatpush.bf16.msra.mxu0 %v492
    %657 = vmatpush.bf16.msra.mxu0 %v488
    %658 = vmatpush.bf16.msra.mxu0 %v484
    %659 = vmatpush.bf16.msra.mxu0 %v480
    %660 = vmatpush.bf16.msra.mxu0 %v476
    %661 = vmatpush.bf16.msra.mxu0 %v472
    %662 = vmatpush.bf16.msra.mxu0 %v468
    %663 = vmatpush.bf16.msra.mxu0 %v464
    %664 = vmatmul.bf16.gmra.mxu0 %v67
    %v665 = vpop.f32.mrf.mxu0
    %v666 = vadd.f32 %v168, %v665
    %v667 = vpop.f32.mrf.mxu0
    %668 = vdwg.mxu0
    %669 = vmatpush.bf16.msra.mxu0 %v524
    %670 = vmatpush.bf16.msra.mxu0 %v520
    %671 = vmatpush.bf16.msra.mxu0 %v516
    %672 = vmatpush.bf16.msra.mxu0 %v512
    %673 = vmatpush.bf16.msra.mxu0 %v508
    %674 = vmatpush.bf16.msra.mxu0 %v504
    %675 = vmatpush.bf16.msra.mxu0 %v500
    %676 = vmatpush.bf16.msra.mxu0 %v496
    %677 = vmatmul.bf16.gmra.mxu0 %v68
    %v678 = vpop.f32.mrf.mxu0
    %v679 = vadd.f32 %v666, %v678
    %v680 = vpop.f32.mrf.mxu0
    %681 = vdwg.mxu0
    %682 = vmatpush.bf16.msra.mxu0 %v556
    %683 = vmatpush.bf16.msra.mxu0 %v552
    %684 = vmatpush.bf16.msra.mxu0 %v548
    %685 = vmatpush.bf16.msra.mxu0 %v544
    %686 = vmatpush.bf16.msra.mxu0 %v540
    %687 = vmatpush.bf16.msra.mxu0 %v536
    %688 = vmatpush.bf16.msra.mxu0 %v532
    %689 = vmatpush.bf16.msra.mxu0 %v528
    %690 = vmatmul.bf16.gmra.mxu0 %v69
    %v691 = vpop.f32.mrf.mxu0
    %v692 = vadd.f32 %v679, %v691
    %v693 = vpop.f32.mrf.mxu0
    %694 = vdwg.mxu0
    %695 = vmatpush.bf16.msra.mxu0 %v493
    %696 = vmatpush.bf16.msra.mxu0 %v489
    %697 = vmatpush.bf16.msra.mxu0 %v485
    %698 = vmatpush.bf16.msra.mxu0 %v481
    %699 = vmatpush.bf16.msra.mxu0 %v477
    %700 = vmatpush.bf16.msra.mxu0 %v473
    %701 = vmatpush.bf16.msra.mxu0 %v469
    %702 = vmatpush.bf16.msra.mxu0 %v465
    %703 = vmatmul.bf16.gmra.mxu0 %v67
    %v704 = vpop.f32.mrf.mxu0
    %v705 = vadd.f32 %v169, %v704
    %v706 = vpop.f32.mrf.mxu0
    %707 = vdwg.mxu0
    %708 = vmatpush.bf16.msra.mxu0 %v525
    %709 = vmatpush.bf16.msra.mxu0 %v521
    %710 = vmatpush.bf16.msra.mxu0 %v517
    %711 = vmatpush.bf16.msra.mxu0 %v513
    %712 = vmatpush.bf16.msra.mxu0 %v509
    %713 = vmatpush.bf16.msra.mxu0 %v505
    %714 = vmatpush.bf16.msra.mxu0 %v501
    %715 = vmatpush.bf16.msra.mxu0 %v497
    %716 = vmatmul.bf16.gmra.mxu0 %v68
    %v717 = vpop.f32.mrf.mxu0
    %v718 = vadd.f32 %v705, %v717
    %v719 = vpop.f32.mrf.mxu0
    %720 = vdwg.mxu0
    %721 = vmatpush.bf16.msra.mxu0 %v557
    %722 = vmatpush.bf16.msra.mxu0 %v553
    %723 = vmatpush.bf16.msra.mxu0 %v549
    %724 = vmatpush.bf16.msra.mxu0 %v545
    %725 = vmatpush.bf16.msra.mxu0 %v541
    %726 = vmatpush.bf16.msra.mxu0 %v537
    %727 = vmatpush.bf16.msra.mxu0 %v533
    %728 = vmatpush.bf16.msra.mxu0 %v529
    %729 = vmatmul.bf16.gmra.mxu0 %v69
    %v730 = vpop.f32.mrf.mxu0
    %v731 = vadd.f32 %v718, %v730
    %v732 = vpop.f32.mrf.mxu0
    %733 = vdwg.mxu0
    %734 = vmatpush.bf16.msra.mxu0 %v494
    %735 = vmatpush.bf16.msra.mxu0 %v490
    %736 = vmatpush.bf16.msra.mxu0 %v486
    %737 = vmatpush.bf16.msra.mxu0 %v482
    %738 = vmatpush.bf16.msra.mxu0 %v478
    %739 = vmatpush.bf16.msra.mxu0 %v474
    %740 = vmatpush.bf16.msra.mxu0 %v470
    %741 = vmatpush.bf16.msra.mxu0 %v466
    %742 = vmatmul.bf16.gmra.mxu0 %v67
    %v743 = vpop.f32.mrf.mxu0
    %v744 = vadd.f32 %v170, %v743
    %v745 = vpop.f32.mrf.mxu0
    %746 = vdwg.mxu0
    %747 = vmatpush.bf16.msra.mxu0 %v526
    %748 = vmatpush.bf16.msra.mxu0 %v522
    %749 = vmatpush.bf16.msra.mxu0 %v518
    %750 = vmatpush.bf16.msra.mxu0 %v514
    %751 = vmatpush.bf16.msra.mxu0 %v510
    %752 = vmatpush.bf16.msra.mxu0 %v506
    %753 = vmatpush.bf16.msra.mxu0 %v502
    %754 = vmatpush.bf16.msra.mxu0 %v498
    %755 = vmatmul.bf16.gmra.mxu0 %v68
    %v756 = vpop.f32.mrf.mxu0
    %v757 = vadd.f32 %v744, %v756
    %v758 = vpop.f32.mrf.mxu0
    %759 = vdwg.mxu0
    %760 = vmatpush.bf16.msra.mxu0 %v558
    %761 = vmatpush.bf16.msra.mxu0 %v554
    %762 = vmatpush.bf16.msra.mxu0 %v550
    %763 = vmatpush.bf16.msra.mxu0 %v546
    %764 = vmatpush.bf16.msra.mxu0 %v542
    %765 = vmatpush.bf16.msra.mxu0 %v538
    %766 = vmatpush.bf16.msra.mxu0 %v534
    %767 = vmatpush.bf16.msra.mxu0 %v530
    %768 = vmatmul.bf16.gmra.mxu0 %v69
    %v769 = vpop.f32.mrf.mxu0
    %v770 = vadd.f32 %v757, %v769
    %v771 = vpop.f32.mrf.mxu0
    %772 = vdwg.mxu0
    %773 = vmatpush.bf16.msra.mxu0 %v495
    %774 = vmatpush.bf16.msra.mxu0 %v491
    %775 = vmatpush.bf16.msra.mxu0 %v487
    %776 = vmatpush.bf16.msra.mxu0 %v483
    %777 = vmatpush.bf16.msra.mxu0 %v479
    %778 = vmatpush.bf16.msra.mxu0 %v475
    %779 = vmatpush.bf16.msra.mxu0 %v471
    %780 = vmatpush.bf16.msra.mxu0 %v467
    %781 = vmatmul.bf16.gmra.mxu0 %v67
    %v782 = vpop.f32.mrf.mxu0
    %v783 = vadd.f32 %v171, %v782
    %v784 = vpop.f32.mrf.mxu0
    %785 = vdwg.mxu0
    %786 = vmatpush.bf16.msra.mxu0 %v527
    %787 = vmatpush.bf16.msra.mxu0 %v523
    %788 = vmatpush.bf16.msra.mxu0 %v519
    %789 = vmatpush.bf16.msra.mxu0 %v515
    %790 = vmatpush.bf16.msra.mxu0 %v511
    %791 = vmatpush.bf16.msra.mxu0 %v507
    %792 = vmatpush.bf16.msra.mxu0 %v503
    %793 = vmatpush.bf16.msra.mxu0 %v499
    %794 = vmatmul.bf16.gmra.mxu0 %v68
    %v795 = vpop.f32.mrf.mxu0
    %v796 = vadd.f32 %v783, %v795
    %v797 = vpop.f32.mrf.mxu0
    %798 = vdwg.mxu0
    %799 = vmatpush.bf16.msra.mxu0 %v559
    %800 = vmatpush.bf16.msra.mxu0 %v555
    %801 = vmatpush.bf16.msra.mxu0 %v551
    %802 = vmatpush.bf16.msra.mxu0 %v547
    %803 = vmatpush.bf16.msra.mxu0 %v543
    %804 = vmatpush.bf16.msra.mxu0 %v539
    %805 = vmatpush.bf16.msra.mxu0 %v535
    %806 = vmatpush.bf16.msra.mxu0 %v531
    %807 = vmatmul.bf16.gmra.mxu0 %v69
    %v808 = vpop.f32.mrf.mxu0
    %v809 = vadd.f32 %v796, %v808
    %v810 = vpop.f32.mrf.mxu0
    %811 = vdwg.mxu0
    %v812 = vmax.f32 %v692, 0.0
    %v813 = vmax.f32 %v731, 0.0
    %v814 = vmax.f32 %v770, 0.0
    %v815 = vmax.f32 %v809, 0.0
    %v816 = vpack.c.bf16 %v813, %v812
    %v817 = vpack.c.bf16 %v815, %v814
    %818 = vst [vmem:[#allocation2] sm:$0xff] %v816
    %819 = vst [vmem:[#allocation2 + $0x8] sm:$0xff] %v817
    %v820 = vld [vmem:[#allocation2] sm:$0xff]
    %v821 = vld [vmem:[#allocation2 + $0x8] sm:$0xff]
    %v822 = vld [vmem:[#allocation3] sm:$0xff]
    %v823 = vld [vmem:[#allocation3 + $0x8] sm:$0xff]
    %v824 = vld [vmem:[#allocation3 + $0x10] sm:$0xff]
    %v825 = vld [vmem:[#allocation3 + $0x18] sm:$0xff]
    %v826 = vld [vmem:[#allocation3 + $0x20] sm:$0xff]
    %v827 = vld [vmem:[#allocation3 + $0x28] sm:$0xff]
    %v828 = vld [vmem:[#allocation3 + $0x30] sm:$0xff]
    %v829 = vld [vmem:[#allocation3 + $0x38] sm:$0xff]
    %v830 = vld [vmem:[#allocation3 + $0x40] sm:$0xff]
    %v831 = vld [vmem:[#allocation3 + $0x48] sm:$0xff]
    %v832 = vld [vmem:[#allocation3 + $0x50] sm:$0xff]
    %v833 = vld [vmem:[#allocation3 + $0x58] sm:$0xff]
    %v834 = vld [vmem:[#allocation3 + $0x60] sm:$0xff]
    %v835 = vld [vmem:[#allocation3 + $0x68] sm:$0xff]
    %v836 = vld [vmem:[#allocation3 + $0x70] sm:$0xff]
    %v837 = vld [vmem:[#allocation3 + $0x78] sm:$0xff]
    %v838 = vld [vmem:[#allocation3 + $0x80] sm:$0xff]
    %v839 = vld [vmem:[#allocation3 + $0x88] sm:$0xff]
    %v840 = vld [vmem:[#allocation3 + $0x90] sm:$0xff]
    %v841 = vld [vmem:[#allocation3 + $0x98] sm:$0xff]
    %v842 = vld [vmem:[#allocation3 + $0xa0] sm:$0xff]
    %v843 = vld [vmem:[#allocation3 + $0xa8] sm:$0xff]
    %v844 = vld [vmem:[#allocation3 + $0xb0] sm:$0xff]
    %v845 = vld [vmem:[#allocation3 + $0xb8] sm:$0xff]
    %v846 = vld [vmem:[#allocation3 + $0xc0] sm:$0xff]
    %v847 = vld [vmem:[#allocation3 + $0xc8] sm:$0xff]
    %v848 = vld [vmem:[#allocation3 + $0xd0] sm:$0xff]
    %v849 = vld [vmem:[#allocation3 + $0xd8] sm:$0xff]
    %v850 = vld [vmem:[#allocation3 + $0xe0] sm:$0xff]
    %v851 = vld [vmem:[#allocation3 + $0xe8] sm:$0xff]
    %v852 = vld [vmem:[#allocation3 + $0xf0] sm:$0xff]
    %v853 = vld [vmem:[#allocation3 + $0xf8] sm:$0xff]
    %v854 = vld [vmem:[#allocation3 + $0x100] sm:$0xff]
    %v855 = vld [vmem:[#allocation3 + $0x108] sm:$0xff]
    %v856 = vld [vmem:[#allocation3 + $0x110] sm:$0xff]
    %v857 = vld [vmem:[#allocation3 + $0x118] sm:$0xff]
    %v858 = vld [vmem:[#allocation3 + $0x120] sm:$0xff]
    %v859 = vld [vmem:[#allocation3 + $0x128] sm:$0xff]
    %v860 = vld [vmem:[#allocation3 + $0x130] sm:$0xff]
    %v861 = vld [vmem:[#allocation3 + $0x138] sm:$0xff]
    %v862 = vld [vmem:[#allocation3 + $0x140] sm:$0xff]
    %v863 = vld [vmem:[#allocation3 + $0x148] sm:$0xff]
    %v864 = vld [vmem:[#allocation3 + $0x150] sm:$0xff]
    %v865 = vld [vmem:[#allocation3 + $0x158] sm:$0xff]
    %v866 = vld [vmem:[#allocation3 + $0x160] sm:$0xff]
    %v867 = vld [vmem:[#allocation3 + $0x168] sm:$0xff]
    %v868 = vld [vmem:[#allocation3 + $0x170] sm:$0xff]
    %v869 = vld [vmem:[#allocation3 + $0x178] sm:$0xff]
    %v870 = vld [vmem:[#allocation3 + $0x180] sm:$0xff]
    %v871 = vld [vmem:[#allocation3 + $0x188] sm:$0xff]
    %v872 = vld [vmem:[#allocation3 + $0x190] sm:$0xff]
    %v873 = vld [vmem:[#allocation3 + $0x198] sm:$0xff]
    %v874 = vld [vmem:[#allocation3 + $0x1a0] sm:$0xff]
    %v875 = vld [vmem:[#allocation3 + $0x1a8] sm:$0xff]
    %v876 = vld [vmem:[#allocation3 + $0x1b0] sm:$0xff]
    %v877 = vld [vmem:[#allocation3 + $0x1b8] sm:$0xff]
    %v878 = vld [vmem:[#allocation3 + $0x1c0] sm:$0xff]
    %v879 = vld [vmem:[#allocation3 + $0x1c8] sm:$0xff]
    %v880 = vld [vmem:[#allocation3 + $0x1d0] sm:$0xff]
    %v881 = vld [vmem:[#allocation3 + $0x1d8] sm:$0xff]
    %v882 = vld [vmem:[#allocation3 + $0x1e0] sm:$0xff]
    %v883 = vld [vmem:[#allocation3 + $0x1e8] sm:$0xff]
    %v884 = vld [vmem:[#allocation3 + $0x1f0] sm:$0xff]
    %v885 = vld [vmem:[#allocation3 + $0x1f8] sm:$0xff]
    %v886 = vld [vmem:[#allocation3 + $0x200] sm:$0xff]
    %v887 = vld [vmem:[#allocation3 + $0x208] sm:$0xff]
    %v888 = vld [vmem:[#allocation3 + $0x210] sm:$0xff]
    %v889 = vld [vmem:[#allocation3 + $0x218] sm:$0xff]
    %v890 = vld [vmem:[#allocation3 + $0x220] sm:$0xff]
    %v891 = vld [vmem:[#allocation3 + $0x228] sm:$0xff]
    %v892 = vld [vmem:[#allocation3 + $0x230] sm:$0xff]
    %v893 = vld [vmem:[#allocation3 + $0x238] sm:$0xff]
    %v894 = vld [vmem:[#allocation3 + $0x240] sm:$0xff]
    %v895 = vld [vmem:[#allocation3 + $0x248] sm:$0xff]
    %v896 = vld [vmem:[#allocation3 + $0x250] sm:$0xff]
    %v897 = vld [vmem:[#allocation3 + $0x258] sm:$0xff]
    %v898 = vld [vmem:[#allocation3 + $0x260] sm:$0xff]
    %v899 = vld [vmem:[#allocation3 + $0x268] sm:$0xff]
    %v900 = vld [vmem:[#allocation3 + $0x270] sm:$0xff]
    %v901 = vld [vmem:[#allocation3 + $0x278] sm:$0xff]
    %v902 = vld [vmem:[#allocation3 + $0x280] sm:$0xff]
    %v903 = vld [vmem:[#allocation3 + $0x288] sm:$0xff]
    %v904 = vld [vmem:[#allocation3 + $0x290] sm:$0xff]
    %v905 = vld [vmem:[#allocation3 + $0x298] sm:$0xff]
    %v906 = vld [vmem:[#allocation3 + $0x2a0] sm:$0xff]
    %v907 = vld [vmem:[#allocation3 + $0x2a8] sm:$0xff]
    %v908 = vld [vmem:[#allocation3 + $0x2b0] sm:$0xff]
    %v909 = vld [vmem:[#allocation3 + $0x2b8] sm:$0xff]
    %v910 = vld [vmem:[#allocation3 + $0x2c0] sm:$0xff]
    %v911 = vld [vmem:[#allocation3 + $0x2c8] sm:$0xff]
    %v912 = vld [vmem:[#allocation3 + $0x2d0] sm:$0xff]
    %v913 = vld [vmem:[#allocation3 + $0x2d8] sm:$0xff]
    %v914 = vld [vmem:[#allocation3 + $0x2e0] sm:$0xff]
    %v915 = vld [vmem:[#allocation3 + $0x2e8] sm:$0xff]
    %v916 = vld [vmem:[#allocation3 + $0x2f0] sm:$0xff]
    %v917 = vld [vmem:[#allocation3 + $0x2f8] sm:$0xff]
    %v918 = vld [vmem:[#allocation3 + $0x300] sm:$0xff]
    %v919 = vld [vmem:[#allocation3 + $0x308] sm:$0xff]
    %v920 = vld [vmem:[#allocation3 + $0x310] sm:$0xff]
    %v921 = vld [vmem:[#allocation3 + $0x318] sm:$0xff]
    %v922 = vld [vmem:[#allocation3 + $0x320] sm:$0xff]
    %v923 = vld [vmem:[#allocation3 + $0x328] sm:$0xff]
    %v924 = vld [vmem:[#allocation3 + $0x330] sm:$0xff]
    %v925 = vld [vmem:[#allocation3 + $0x338] sm:$0xff]
    %v926 = vld [vmem:[#allocation3 + $0x340] sm:$0xff]
    %v927 = vld [vmem:[#allocation3 + $0x348] sm:$0xff]
    %v928 = vld [vmem:[#allocation3 + $0x350] sm:$0xff]
    %v929 = vld [vmem:[#allocation3 + $0x358] sm:$0xff]
    %v930 = vld [vmem:[#allocation3 + $0x360] sm:$0xff]
    %v931 = vld [vmem:[#allocation3 + $0x368] sm:$0xff]
    %v932 = vld [vmem:[#allocation3 + $0x370] sm:$0xff]
    %v933 = vld [vmem:[#allocation3 + $0x378] sm:$0xff]
    %v934 = vld [vmem:[#allocation3 + $0x380] sm:$0xff]
    %v935 = vld [vmem:[#allocation3 + $0x388] sm:$0xff]
    %v936 = vld [vmem:[#allocation3 + $0x390] sm:$0xff]
    %v937 = vld [vmem:[#allocation3 + $0x398] sm:$0xff]
    %v938 = vld [vmem:[#allocation3 + $0x3a0] sm:$0xff]
    %v939 = vld [vmem:[#allocation3 + $0x3a8] sm:$0xff]
    %v940 = vld [vmem:[#allocation3 + $0x3b0] sm:$0xff]
    %v941 = vld [vmem:[#allocation3 + $0x3b8] sm:$0xff]
    %v942 = vld [vmem:[#allocation3 + $0x3c0] sm:$0xff]
    %v943 = vld [vmem:[#allocation3 + $0x3c8] sm:$0xff]
    %v944 = vld [vmem:[#allocation3 + $0x3d0] sm:$0xff]
    %v945 = vld [vmem:[#allocation3 + $0x3d8] sm:$0xff]
    %v946 = vld [vmem:[#allocation3 + $0x3e0] sm:$0xff]
    %v947 = vld [vmem:[#allocation3 + $0x3e8] sm:$0xff]
    %v948 = vld [vmem:[#allocation3 + $0x3f0] sm:$0xff]
    %v949 = vld [vmem:[#allocation3 + $0x3f8] sm:$0xff]
    %v950 = vld [vmem:[%s4] sm:$0xf]
    %v952 = vperm.slane %v950, 0
    %v953 = vperm.slane %v950, 1
    %v954 = vperm.slane %v950, 2
    %v955 = vperm.slane %v950, 3
    %v962 = vunpack.c.l.b16 %v820
    %v963 = vunpack.c.h.b16 %v820
    %v964 = vunpack.c.l.b16 %v821
    %v965 = vunpack.c.h.b16 %v821
    %v966 = vpack.c.b16 %v962, %v962
    %v967 = vpack.c.b16 %v963, %v963
    %v968 = vpack.c.b16 %v964, %v964
    %v969 = vpack.c.b16 %v965, %v965
    %v1102 = vunpack.c.l.b16 %v822
    %v1103 = vunpack.c.h.b16 %v822
    %v1104 = vunpack.c.l.b16 %v823
    %v1105 = vunpack.c.h.b16 %v823
    %v1106 = vunpack.c.l.b16 %v824
    %v1107 = vunpack.c.h.b16 %v824
    %v1108 = vunpack.c.l.b16 %v825
    %v1109 = vunpack.c.h.b16 %v825
    %v1110 = vunpack.c.l.b16 %v826
    %v1111 = vunpack.c.h.b16 %v826
    %v1112 = vunpack.c.l.b16 %v827
    %v1113 = vunpack.c.h.b16 %v827
    %v1114 = vunpack.c.l.b16 %v828
    %v1115 = vunpack.c.h.b16 %v828
    %v1116 = vunpack.c.l.b16 %v829
    %v1117 = vunpack.c.h.b16 %v829
    %v1118 = vunpack.c.l.b16 %v830
    %v1119 = vunpack.c.h.b16 %v830
    %v1120 = vunpack.c.l.b16 %v831
    %v1121 = vunpack.c.h.b16 %v831
    %v1122 = vunpack.c.l.b16 %v832
    %v1123 = vunpack.c.h.b16 %v832
    %v1124 = vunpack.c.l.b16 %v833
    %v1125 = vunpack.c.h.b16 %v833
    %v1126 = vunpack.c.l.b16 %v834
    %v1127 = vunpack.c.h.b16 %v834
    %v1128 = vunpack.c.l.b16 %v835
    %v1129 = vunpack.c.h.b16 %v835
    %v1130 = vunpack.c.l.b16 %v836
    %v1131 = vunpack.c.h.b16 %v836
    %v1132 = vunpack.c.l.b16 %v837
    %v1133 = vunpack.c.h.b16 %v837
    %v1134 = vunpack.c.l.b16 %v838
    %v1135 = vunpack.c.h.b16 %v838
    %v1136 = vunpack.c.l.b16 %v839
    %v1137 = vunpack.c.h.b16 %v839
    %v1138 = vunpack.c.l.b16 %v840
    %v1139 = vunpack.c.h.b16 %v840
    %v1140 = vunpack.c.l.b16 %v841
    %v1141 = vunpack.c.h.b16 %v841
    %v1142 = vunpack.c.l.b16 %v842
    %v1143 = vunpack.c.h.b16 %v842
    %v1144 = vunpack.c.l.b16 %v843
    %v1145 = vunpack.c.h.b16 %v843
    %v1146 = vunpack.c.l.b16 %v844
    %v1147 = vunpack.c.h.b16 %v844
    %v1148 = vunpack.c.l.b16 %v845
    %v1149 = vunpack.c.h.b16 %v845
    %v1150 = vunpack.c.l.b16 %v846
    %v1151 = vunpack.c.h.b16 %v846
    %v1152 = vunpack.c.l.b16 %v847
    %v1153 = vunpack.c.h.b16 %v847
    %v1154 = vunpack.c.l.b16 %v848
    %v1155 = vunpack.c.h.b16 %v848
    %v1156 = vunpack.c.l.b16 %v849
    %v1157 = vunpack.c.h.b16 %v849
    %v1158 = vunpack.c.l.b16 %v850
    %v1159 = vunpack.c.h.b16 %v850
    %v1160 = vunpack.c.l.b16 %v851
    %v1161 = vunpack.c.h.b16 %v851
    %v1162 = vunpack.c.l.b16 %v852
    %v1163 = vunpack.c.h.b16 %v852
    %v1164 = vunpack.c.l.b16 %v853
    %v1165 = vunpack.c.h.b16 %v853
    %v1166 = vunpack.c.l.b16 %v854
    %v1167 = vunpack.c.h.b16 %v854
    %v1168 = vunpack.c.l.b16 %v855
    %v1169 = vunpack.c.h.b16 %v855
    %v1170 = vunpack.c.l.b16 %v856
    %v1171 = vunpack.c.h.b16 %v856
    %v1172 = vunpack.c.l.b16 %v857
    %v1173 = vunpack.c.h.b16 %v857
    %v1174 = vunpack.c.l.b16 %v858
    %v1175 = vunpack.c.h.b16 %v858
    %v1176 = vunpack.c.l.b16 %v859
    %v1177 = vunpack.c.h.b16 %v859
    %v1178 = vunpack.c.l.b16 %v860
    %v1179 = vunpack.c.h.b16 %v860
    %v1180 = vunpack.c.l.b16 %v861
    %v1181 = vunpack.c.h.b16 %v861
    %v1182 = vunpack.c.l.b16 %v862
    %v1183 = vunpack.c.h.b16 %v862
    %v1184 = vunpack.c.l.b16 %v863
    %v1185 = vunpack.c.h.b16 %v863
    %v1186 = vunpack.c.l.b16 %v864
    %v1187 = vunpack.c.h.b16 %v864
    %v1188 = vunpack.c.l.b16 %v865
    %v1189 = vunpack.c.h.b16 %v865
    %v1190 = vunpack.c.l.b16 %v866
    %v1191 = vunpack.c.h.b16 %v866
    %v1192 = vunpack.c.l.b16 %v867
    %v1193 = vunpack.c.h.b16 %v867
    %v1194 = vunpack.c.l.b16 %v868
    %v1195 = vunpack.c.h.b16 %v868
    %v1196 = vunpack.c.l.b16 %v869
    %v1197 = vunpack.c.h.b16 %v869
    %v1198 = vunpack.c.l.b16 %v870
    %v1199 = vunpack.c.h.b16 %v870
    %v1200 = vunpack.c.l.b16 %v871
    %v1201 = vunpack.c.h.b16 %v871
    %v1202 = vunpack.c.l.b16 %v872
    %v1203 = vunpack.c.h.b16 %v872
    %v1204 = vunpack.c.l.b16 %v873
    %v1205 = vunpack.c.h.b16 %v873
    %v1206 = vunpack.c.l.b16 %v874
    %v1207 = vunpack.c.h.b16 %v874
    %v1208 = vunpack.c.l.b16 %v875
    %v1209 = vunpack.c.h.b16 %v875
    %v1210 = vunpack.c.l.b16 %v876
    %v1211 = vunpack.c.h.b16 %v876
    %v1212 = vunpack.c.l.b16 %v877
    %v1213 = vunpack.c.h.b16 %v877
    %v1214 = vunpack.c.l.b16 %v878
    %v1215 = vunpack.c.h.b16 %v878
    %v1216 = vunpack.c.l.b16 %v879
    %v1217 = vunpack.c.h.b16 %v879
    %v1218 = vunpack.c.l.b16 %v880
    %v1219 = vunpack.c.h.b16 %v880
    %v1220 = vunpack.c.l.b16 %v881
    %v1221 = vunpack.c.h.b16 %v881
    %v1222 = vunpack.c.l.b16 %v882
    %v1223 = vunpack.c.h.b16 %v882
    %v1224 = vunpack.c.l.b16 %v883
    %v1225 = vunpack.c.h.b16 %v883
    %v1226 = vunpack.c.l.b16 %v884
    %v1227 = vunpack.c.h.b16 %v884
    %v1228 = vunpack.c.l.b16 %v885
    %v1229 = vunpack.c.h.b16 %v885
    %v1230 = vunpack.c.l.b16 %v886
    %v1231 = vunpack.c.h.b16 %v886
    %v1232 = vunpack.c.l.b16 %v887
    %v1233 = vunpack.c.h.b16 %v887
    %v1234 = vunpack.c.l.b16 %v888
    %v1235 = vunpack.c.h.b16 %v888
    %v1236 = vunpack.c.l.b16 %v889
    %v1237 = vunpack.c.h.b16 %v889
    %v1238 = vunpack.c.l.b16 %v890
    %v1239 = vunpack.c.h.b16 %v890
    %v1240 = vunpack.c.l.b16 %v891
    %v1241 = vunpack.c.h.b16 %v891
    %v1242 = vunpack.c.l.b16 %v892
    %v1243 = vunpack.c.h.b16 %v892
    %v1244 = vunpack.c.l.b16 %v893
    %v1245 = vunpack.c.h.b16 %v893
    %v1246 = vunpack.c.l.b16 %v894
    %v1247 = vunpack.c.h.b16 %v894
    %v1248 = vunpack.c.l.b16 %v895
    %v1249 = vunpack.c.h.b16 %v895
    %v1250 = vunpack.c.l.b16 %v896
    %v1251 = vunpack.c.h.b16 %v896
    %v1252 = vunpack.c.l.b16 %v897
    %v1253 = vunpack.c.h.b16 %v897
    %v1254 = vunpack.c.l.b16 %v898
    %v1255 = vunpack.c.h.b16 %v898
    %v1256 = vunpack.c.l.b16 %v899
    %v1257 = vunpack.c.h.b16 %v899
    %v1258 = vunpack.c.l.b16 %v900
    %v1259 = vunpack.c.h.b16 %v900
    %v1260 = vunpack.c.l.b16 %v901
    %v1261 = vunpack.c.h.b16 %v901
    %v1262 = vunpack.c.l.b16 %v902
    %v1263 = vunpack.c.h.b16 %v902
    %v1264 = vunpack.c.l.b16 %v903
    %v1265 = vunpack.c.h.b16 %v903
    %v1266 = vunpack.c.l.b16 %v904
    %v1267 = vunpack.c.h.b16 %v904
    %v1268 = vunpack.c.l.b16 %v905
    %v1269 = vunpack.c.h.b16 %v905
    %v1270 = vunpack.c.l.b16 %v906
    %v1271 = vunpack.c.h.b16 %v906
    %v1272 = vunpack.c.l.b16 %v907
    %v1273 = vunpack.c.h.b16 %v907
    %v1274 = vunpack.c.l.b16 %v908
    %v1275 = vunpack.c.h.b16 %v908
    %v1276 = vunpack.c.l.b16 %v909
    %v1277 = vunpack.c.h.b16 %v909
    %v1278 = vunpack.c.l.b16 %v910
    %v1279 = vunpack.c.h.b16 %v910
    %v1280 = vunpack.c.l.b16 %v911
    %v1281 = vunpack.c.h.b16 %v911
    %v1282 = vunpack.c.l.b16 %v912
    %v1283 = vunpack.c.h.b16 %v912
    %v1284 = vunpack.c.l.b16 %v913
    %v1285 = vunpack.c.h.b16 %v913
    %v1286 = vunpack.c.l.b16 %v914
    %v1287 = vunpack.c.h.b16 %v914
    %v1288 = vunpack.c.l.b16 %v915
    %v1289 = vunpack.c.h.b16 %v915
    %v1290 = vunpack.c.l.b16 %v916
    %v1291 = vunpack.c.h.b16 %v916
    %v1292 = vunpack.c.l.b16 %v917
    %v1293 = vunpack.c.h.b16 %v917
    %v1294 = vunpack.c.l.b16 %v918
    %v1295 = vunpack.c.h.b16 %v918
    %v1296 = vunpack.c.l.b16 %v919
    %v1297 = vunpack.c.h.b16 %v919
    %v1298 = vunpack.c.l.b16 %v920
    %v1299 = vunpack.c.h.b16 %v920
    %v1300 = vunpack.c.l.b16 %v921
    %v1301 = vunpack.c.h.b16 %v921
    %v1302 = vunpack.c.l.b16 %v922
    %v1303 = vunpack.c.h.b16 %v922
    %v1304 = vunpack.c.l.b16 %v923
    %v1305 = vunpack.c.h.b16 %v923
    %v1306 = vunpack.c.l.b16 %v924
    %v1307 = vunpack.c.h.b16 %v924
    %v1308 = vunpack.c.l.b16 %v925
    %v1309 = vunpack.c.h.b16 %v925
    %v1310 = vunpack.c.l.b16 %v926
    %v1311 = vunpack.c.h.b16 %v926
    %v1312 = vunpack.c.l.b16 %v927
    %v1313 = vunpack.c.h.b16 %v927
    %v1314 = vunpack.c.l.b16 %v928
    %v1315 = vunpack.c.h.b16 %v928
    %v1316 = vunpack.c.l.b16 %v929
    %v1317 = vunpack.c.h.b16 %v929
    %v1318 = vunpack.c.l.b16 %v930
    %v1319 = vunpack.c.h.b16 %v930
    %v1320 = vunpack.c.l.b16 %v931
    %v1321 = vunpack.c.h.b16 %v931
    %v1322 = vunpack.c.l.b16 %v932
    %v1323 = vunpack.c.h.b16 %v932
    %v1324 = vunpack.c.l.b16 %v933
    %v1325 = vunpack.c.h.b16 %v933
    %v1326 = vunpack.c.l.b16 %v934
    %v1327 = vunpack.c.h.b16 %v934
    %v1328 = vunpack.c.l.b16 %v935
    %v1329 = vunpack.c.h.b16 %v935
    %v1330 = vunpack.c.l.b16 %v936
    %v1331 = vunpack.c.h.b16 %v936
    %v1332 = vunpack.c.l.b16 %v937
    %v1333 = vunpack.c.h.b16 %v937
    %v1334 = vunpack.c.l.b16 %v938
    %v1335 = vunpack.c.h.b16 %v938
    %v1336 = vunpack.c.l.b16 %v939
    %v1337 = vunpack.c.h.b16 %v939
    %v1338 = vunpack.c.l.b16 %v940
    %v1339 = vunpack.c.h.b16 %v940
    %v1340 = vunpack.c.l.b16 %v941
    %v1341 = vunpack.c.h.b16 %v941
    %v1342 = vunpack.c.l.b16 %v942
    %v1343 = vunpack.c.h.b16 %v942
    %v1344 = vunpack.c.l.b16 %v943
    %v1345 = vunpack.c.h.b16 %v943
    %v1346 = vunpack.c.l.b16 %v944
    %v1347 = vunpack.c.h.b16 %v944
    %v1348 = vunpack.c.l.b16 %v945
    %v1349 = vunpack.c.h.b16 %v945
    %v1350 = vunpack.c.l.b16 %v946
    %v1351 = vunpack.c.h.b16 %v946
    %v1352 = vunpack.c.l.b16 %v947
    %v1353 = vunpack.c.h.b16 %v947
    %v1354 = vunpack.c.l.b16 %v948
    %v1355 = vunpack.c.h.b16 %v948
    %v1356 = vunpack.c.l.b16 %v949
    %v1357 = vunpack.c.h.b16 %v949
    %v1358 = vpack.c.b16 %v1106, %v1102
    %v1359 = vpack.c.b16 %v1107, %v1103
    %v1360 = vpack.c.b16 %v1108, %v1104
    %v1361 = vpack.c.b16 %v1109, %v1105
    %v1362 = vpack.c.b16 %v1114, %v1110
    %v1363 = vpack.c.b16 %v1115, %v1111
    %v1364 = vpack.c.b16 %v1116, %v1112
    %v1365 = vpack.c.b16 %v1117, %v1113
    %v1366 = vpack.c.b16 %v1122, %v1118
    %v1367 = vpack.c.b16 %v1123, %v1119
    %v1368 = vpack.c.b16 %v1124, %v1120
    %v1369 = vpack.c.b16 %v1125, %v1121
    %v1370 = vpack.c.b16 %v1130, %v1126
    %v1371 = vpack.c.b16 %v1131, %v1127
    %v1372 = vpack.c.b16 %v1132, %v1128
    %v1373 = vpack.c.b16 %v1133, %v1129
    %v1374 = vpack.c.b16 %v1138, %v1134
    %v1375 = vpack.c.b16 %v1139, %v1135
    %v1376 = vpack.c.b16 %v1140, %v1136
    %v1377 = vpack.c.b16 %v1141, %v1137
    %v1378 = vpack.c.b16 %v1146, %v1142
    %v1379 = vpack.c.b16 %v1147, %v1143
    %v1380 = vpack.c.b16 %v1148, %v1144
    %v1381 = vpack.c.b16 %v1149, %v1145
    %v1382 = vpack.c.b16 %v1154, %v1150
    %v1383 = vpack.c.b16 %v1155, %v1151
    %v1384 = vpack.c.b16 %v1156, %v1152
    %v1385 = vpack.c.b16 %v1157, %v1153
    %v1386 = vpack.c.b16 %v1162, %v1158
    %v1387 = vpack.c.b16 %v1163, %v1159
    %v1388 = vpack.c.b16 %v1164, %v1160
    %v1389 = vpack.c.b16 %v1165, %v1161
    %v1390 = vpack.c.b16 %v1170, %v1166
    %v1391 = vpack.c.b16 %v1171, %v1167
    %v1392 = vpack.c.b16 %v1172, %v1168
    %v1393 = vpack.c.b16 %v1173, %v1169
    %v1394 = vpack.c.b16 %v1178, %v1174
    %v1395 = vpack.c.b16 %v1179, %v1175
    %v1396 = vpack.c.b16 %v1180, %v1176
    %v1397 = vpack.c.b16 %v1181, %v1177
    %v1398 = vpack.c.b16 %v1186, %v1182
    %v1399 = vpack.c.b16 %v1187, %v1183
    %v1400 = vpack.c.b16 %v1188, %v1184
    %v1401 = vpack.c.b16 %v1189, %v1185
    %v1402 = vpack.c.b16 %v1194, %v1190
    %v1403 = vpack.c.b16 %v1195, %v1191
    %v1404 = vpack.c.b16 %v1196, %v1192
    %v1405 = vpack.c.b16 %v1197, %v1193
    %v1406 = vpack.c.b16 %v1202, %v1198
    %v1407 = vpack.c.b16 %v1203, %v1199
    %v1408 = vpack.c.b16 %v1204, %v1200
    %v1409 = vpack.c.b16 %v1205, %v1201
    %v1410 = vpack.c.b16 %v1210, %v1206
    %v1411 = vpack.c.b16 %v1211, %v1207
    %v1412 = vpack.c.b16 %v1212, %v1208
    %v1413 = vpack.c.b16 %v1213, %v1209
    %v1414 = vpack.c.b16 %v1218, %v1214
    %v1415 = vpack.c.b16 %v1219, %v1215
    %v1416 = vpack.c.b16 %v1220, %v1216
    %v1417 = vpack.c.b16 %v1221, %v1217
    %v1418 = vpack.c.b16 %v1226, %v1222
    %v1419 = vpack.c.b16 %v1227, %v1223
    %v1420 = vpack.c.b16 %v1228, %v1224
    %v1421 = vpack.c.b16 %v1229, %v1225
    %v1422 = vpack.c.b16 %v1234, %v1230
    %v1423 = vpack.c.b16 %v1235, %v1231
    %v1424 = vpack.c.b16 %v1236, %v1232
    %v1425 = vpack.c.b16 %v1237, %v1233
    %v1426 = vpack.c.b16 %v1242, %v1238
    %v1427 = vpack.c.b16 %v1243, %v1239
    %v1428 = vpack.c.b16 %v1244, %v1240
    %v1429 = vpack.c.b16 %v1245, %v1241
    %v1430 = vpack.c.b16 %v1250, %v1246
    %v1431 = vpack.c.b16 %v1251, %v1247
    %v1432 = vpack.c.b16 %v1252, %v1248
    %v1433 = vpack.c.b16 %v1253, %v1249
    %v1434 = vpack.c.b16 %v1258, %v1254
    %v1435 = vpack.c.b16 %v1259, %v1255
    %v1436 = vpack.c.b16 %v1260, %v1256
    %v1437 = vpack.c.b16 %v1261, %v1257
    %v1438 = vpack.c.b16 %v1266, %v1262
    %v1439 = vpack.c.b16 %v1267, %v1263
    %v1440 = vpack.c.b16 %v1268, %v1264
    %v1441 = vpack.c.b16 %v1269, %v1265
    %v1442 = vpack.c.b16 %v1274, %v1270
    %v1443 = vpack.c.b16 %v1275, %v1271
    %v1444 = vpack.c.b16 %v1276, %v1272
    %v1445 = vpack.c.b16 %v1277, %v1273
    %v1446 = vpack.c.b16 %v1282, %v1278
    %v1447 = vpack.c.b16 %v1283, %v1279
    %v1448 = vpack.c.b16 %v1284, %v1280
    %v1449 = vpack.c.b16 %v1285, %v1281
    %v1450 = vpack.c.b16 %v1290, %v1286
    %v1451 = vpack.c.b16 %v1291, %v1287
    %v1452 = vpack.c.b16 %v1292, %v1288
    %v1453 = vpack.c.b16 %v1293, %v1289
    %v1454 = vpack.c.b16 %v1298, %v1294
    %v1455 = vpack.c.b16 %v1299, %v1295
    %v1456 = vpack.c.b16 %v1300, %v1296
    %v1457 = vpack.c.b16 %v1301, %v1297
    %v1458 = vpack.c.b16 %v1306, %v1302
    %v1459 = vpack.c.b16 %v1307, %v1303
    %v1460 = vpack.c.b16 %v1308, %v1304
    %v1461 = vpack.c.b16 %v1309, %v1305
    %v1462 = vpack.c.b16 %v1314, %v1310
    %v1463 = vpack.c.b16 %v1315, %v1311
    %v1464 = vpack.c.b16 %v1316, %v1312
    %v1465 = vpack.c.b16 %v1317, %v1313
    %v1466 = vpack.c.b16 %v1322, %v1318
    %v1467 = vpack.c.b16 %v1323, %v1319
    %v1468 = vpack.c.b16 %v1324, %v1320
    %v1469 = vpack.c.b16 %v1325, %v1321
    %v1470 = vpack.c.b16 %v1330, %v1326
    %v1471 = vpack.c.b16 %v1331, %v1327
    %v1472 = vpack.c.b16 %v1332, %v1328
    %v1473 = vpack.c.b16 %v1333, %v1329
    %v1474 = vpack.c.b16 %v1338, %v1334
    %v1475 = vpack.c.b16 %v1339, %v1335
    %v1476 = vpack.c.b16 %v1340, %v1336
    %v1477 = vpack.c.b16 %v1341, %v1337
    %v1478 = vpack.c.b16 %v1346, %v1342
    %v1479 = vpack.c.b16 %v1347, %v1343
    %v1480 = vpack.c.b16 %v1348, %v1344
    %v1481 = vpack.c.b16 %v1349, %v1345
    %v1482 = vpack.c.b16 %v1354, %v1350
    %v1483 = vpack.c.b16 %v1355, %v1351
    %v1484 = vpack.c.b16 %v1356, %v1352
    %v1485 = vpack.c.b16 %v1357, %v1353
    %1614 = vmatpush.bf16.msra.mxu0 %v1386
    %1615 = vmatpush.bf16.msra.mxu0 %v1382
    %1616 = vmatpush.bf16.msra.mxu0 %v1378
    %1617 = vmatpush.bf16.msra.mxu0 %v1374
    %1618 = vmatpush.bf16.msra.mxu0 %v1370
    %1619 = vmatpush.bf16.msra.mxu0 %v1366
    %1620 = vmatpush.bf16.msra.mxu0 %v1362
    %1621 = vmatpush.bf16.msra.mxu0 %v1358
    %1622 = vmatmul.bf16.gmra.mxu0 %v966
    %v1623 = vpop.f32.mrf.mxu0
    %v1624 = vadd.f32 %v952, %v1623
    %v1625 = vpop.f32.mrf.mxu0
    %1626 = vdwg.mxu0
    %1627 = vmatpush.bf16.msra.mxu0 %v1418
    %1628 = vmatpush.bf16.msra.mxu0 %v1414
    %1629 = vmatpush.bf16.msra.mxu0 %v1410
    %1630 = vmatpush.bf16.msra.mxu0 %v1406
    %1631 = vmatpush.bf16.msra.mxu0 %v1402
    %1632 = vmatpush.bf16.msra.mxu0 %v1398
    %1633 = vmatpush.bf16.msra.mxu0 %v1394
    %1634 = vmatpush.bf16.msra.mxu0 %v1390
    %1635 = vmatmul.bf16.gmra.mxu0 %v967
    %v1636 = vpop.f32.mrf.mxu0
    %v1637 = vadd.f32 %v1624, %v1636
    %v1638 = vpop.f32.mrf.mxu0
    %1639 = vdwg.mxu0
    %1640 = vmatpush.bf16.msra.mxu0 %v1450
    %1641 = vmatpush.bf16.msra.mxu0 %v1446
    %1642 = vmatpush.bf16.msra.mxu0 %v1442
    %1643 = vmatpush.bf16.msra.mxu0 %v1438
    %1644 = vmatpush.bf16.msra.mxu0 %v1434
    %1645 = vmatpush.bf16.msra.mxu0 %v1430
    %1646 = vmatpush.bf16.msra.mxu0 %v1426
    %1647 = vmatpush.bf16.msra.mxu0 %v1422
    %1648 = vmatmul.bf16.gmra.mxu0 %v968
    %v1649 = vpop.f32.mrf.mxu0
    %v1650 = vadd.f32 %v1637, %v1649
    %v1651 = vpop.f32.mrf.mxu0
    %1652 = vdwg.mxu0
    %1653 = vmatpush.bf16.msra.mxu0 %v1482
    %1654 = vmatpush.bf16.msra.mxu0 %v1478
    %1655 = vmatpush.bf16.msra.mxu0 %v1474
    %1656 = vmatpush.bf16.msra.mxu0 %v1470
    %1657 = vmatpush.bf16.msra.mxu0 %v1466
    %1658 = vmatpush.bf16.msra.mxu0 %v1462
    %1659 = vmatpush.bf16.msra.mxu0 %v1458
    %1660 = vmatpush.bf16.msra.mxu0 %v1454
    %1661 = vmatmul.bf16.gmra.mxu0 %v969
    %v1662 = vpop.f32.mrf.mxu0
    %v1663 = vadd.f32 %v1650, %v1662
    %v1664 = vpop.f32.mrf.mxu0
    %1665 = vdwg.mxu0
    %1666 = vmatpush.bf16.msra.mxu0 %v1387
    %1667 = vmatpush.bf16.msra.mxu0 %v1383
    %1668 = vmatpush.bf16.msra.mxu0 %v1379
    %1669 = vmatpush.bf16.msra.mxu0 %v1375
    %1670 = vmatpush.bf16.msra.mxu0 %v1371
    %1671 = vmatpush.bf16.msra.mxu0 %v1367
    %1672 = vmatpush.bf16.msra.mxu0 %v1363
    %1673 = vmatpush.bf16.msra.mxu0 %v1359
    %1674 = vmatmul.bf16.gmra.mxu0 %v966
    %v1675 = vpop.f32.mrf.mxu0
    %v1676 = vadd.f32 %v953, %v1675
    %v1677 = vpop.f32.mrf.mxu0
    %1678 = vdwg.mxu0
    %1679 = vmatpush.bf16.msra.mxu0 %v1419
    %1680 = vmatpush.bf16.msra.mxu0 %v1415
    %1681 = vmatpush.bf16.msra.mxu0 %v1411
    %1682 = vmatpush.bf16.msra.mxu0 %v1407
    %1683 = vmatpush.bf16.msra.mxu0 %v1403
    %1684 = vmatpush.bf16.msra.mxu0 %v1399
    %1685 = vmatpush.bf16.msra.mxu0 %v1395
    %1686 = vmatpush.bf16.msra.mxu0 %v1391
    %1687 = vmatmul.bf16.gmra.mxu0 %v967
    %v1688 = vpop.f32.mrf.mxu0
    %v1689 = vadd.f32 %v1676, %v1688
    %v1690 = vpop.f32.mrf.mxu0
    %1691 = vdwg.mxu0
    %1692 = vmatpush.bf16.msra.mxu0 %v1451
    %1693 = vmatpush.bf16.msra.mxu0 %v1447
    %1694 = vmatpush.bf16.msra.mxu0 %v1443
    %1695 = vmatpush.bf16.msra.mxu0 %v1439
    %1696 = vmatpush.bf16.msra.mxu0 %v1435
    %1697 = vmatpush.bf16.msra.mxu0 %v1431
    %1698 = vmatpush.bf16.msra.mxu0 %v1427
    %1699 = vmatpush.bf16.msra.mxu0 %v1423
    %1700 = vmatmul.bf16.gmra.mxu0 %v968
    %v1701 = vpop.f32.mrf.mxu0
    %v1702 = vadd.f32 %v1689, %v1701
    %v1703 = vpop.f32.mrf.mxu0
    %1704 = vdwg.mxu0
    %1705 = vmatpush.bf16.msra.mxu0 %v1483
    %1706 = vmatpush.bf16.msra.mxu0 %v1479
    %1707 = vmatpush.bf16.msra.mxu0 %v1475
    %1708 = vmatpush.bf16.msra.mxu0 %v1471
    %1709 = vmatpush.bf16.msra.mxu0 %v1467
    %1710 = vmatpush.bf16.msra.mxu0 %v1463
    %1711 = vmatpush.bf16.msra.mxu0 %v1459
    %1712 = vmatpush.bf16.msra.mxu0 %v1455
    %1713 = vmatmul.bf16.gmra.mxu0 %v969
    %v1714 = vpop.f32.mrf.mxu0
    %v1715 = vadd.f32 %v1702, %v1714
    %v1716 = vpop.f32.mrf.mxu0
    %1717 = vdwg.mxu0
    %1718 = vmatpush.bf16.msra.mxu0 %v1388
    %1719 = vmatpush.bf16.msra.mxu0 %v1384
    %1720 = vmatpush.bf16.msra.mxu0 %v1380
    %1721 = vmatpush.bf16.msra.mxu0 %v1376
    %1722 = vmatpush.bf16.msra.mxu0 %v1372
    %1723 = vmatpush.bf16.msra.mxu0 %v1368
    %1724 = vmatpush.bf16.msra.mxu0 %v1364
    %1725 = vmatpush.bf16.msra.mxu0 %v1360
    %1726 = vmatmul.bf16.gmra.mxu0 %v966
    %v1727 = vpop.f32.mrf.mxu0
    %v1728 = vadd.f32 %v954, %v1727
    %v1729 = vpop.f32.mrf.mxu0
    %1730 = vdwg.mxu0
    %1731 = vmatpush.bf16.msra.mxu0 %v1420
    %1732 = vmatpush.bf16.msra.mxu0 %v1416
    %1733 = vmatpush.bf16.msra.mxu0 %v1412
    %1734 = vmatpush.bf16.msra.mxu0 %v1408
    %1735 = vmatpush.bf16.msra.mxu0 %v1404
    %1736 = vmatpush.bf16.msra.mxu0 %v1400
    %1737 = vmatpush.bf16.msra.mxu0 %v1396
    %1738 = vmatpush.bf16.msra.mxu0 %v1392
    %1739 = vmatmul.bf16.gmra.mxu0 %v967
    %v1740 = vpop.f32.mrf.mxu0
    %v1741 = vadd.f32 %v1728, %v1740
    %v1742 = vpop.f32.mrf.mxu0
    %1743 = vdwg.mxu0
    %1744 = vmatpush.bf16.msra.mxu0 %v1452
    %1745 = vmatpush.bf16.msra.mxu0 %v1448
    %1746 = vmatpush.bf16.msra.mxu0 %v1444
    %1747 = vmatpush.bf16.msra.mxu0 %v1440
    %1748 = vmatpush.bf16.msra.mxu0 %v1436
    %1749 = vmatpush.bf16.msra.mxu0 %v1432
    %1750 = vmatpush.bf16.msra.mxu0 %v1428
    %1751 = vmatpush.bf16.msra.mxu0 %v1424
    %1752 = vmatmul.bf16.gmra.mxu0 %v968
    %v1753 = vpop.f32.mrf.mxu0
    %v1754 = vadd.f32 %v1741, %v1753
    %v1755 = vpop.f32.mrf.mxu0
    %1756 = vdwg.mxu0
    %1757 = vmatpush.bf16.msra.mxu0 %v1484
    %1758 = vmatpush.bf16.msra.mxu0 %v1480
    %1759 = vmatpush.bf16.msra.mxu0 %v1476
    %1760 = vmatpush.bf16.msra.mxu0 %v1472
    %1761 = vmatpush.bf16.msra.mxu0 %v1468
    %1762 = vmatpush.bf16.msra.mxu0 %v1464
    %1763 = vmatpush.bf16.msra.mxu0 %v1460
    %1764 = vmatpush.bf16.msra.mxu0 %v1456
    %1765 = vmatmul.bf16.gmra.mxu0 %v969
    %v1766 = vpop.f32.mrf.mxu0
    %v1767 = vadd.f32 %v1754, %v1766
    %v1768 = vpop.f32.mrf.mxu0
    %1769 = vdwg.mxu0
    %1770 = vmatpush.bf16.msra.mxu0 %v1389
    %1771 = vmatpush.bf16.msra.mxu0 %v1385
    %1772 = vmatpush.bf16.msra.mxu0 %v1381
    %1773 = vmatpush.bf16.msra.mxu0 %v1377
    %1774 = vmatpush.bf16.msra.mxu0 %v1373
    %1775 = vmatpush.bf16.msra.mxu0 %v1369
    %1776 = vmatpush.bf16.msra.mxu0 %v1365
    %1777 = vmatpush.bf16.msra.mxu0 %v1361
    %1778 = vmatmul.bf16.gmra.mxu0 %v966
    %v1779 = vpop.f32.mrf.mxu0
    %v1780 = vadd.f32 %v955, %v1779
    %v1781 = vpop.f32.mrf.mxu0
    %1782 = vdwg.mxu0
    %1783 = vmatpush.bf16.msra.mxu0 %v1421
    %1784 = vmatpush.bf16.msra.mxu0 %v1417
    %1785 = vmatpush.bf16.msra.mxu0 %v1413
    %1786 = vmatpush.bf16.msra.mxu0 %v1409
    %1787 = vmatpush.bf16.msra.mxu0 %v1405
    %1788 = vmatpush.bf16.msra.mxu0 %v1401
    %1789 = vmatpush.bf16.msra.mxu0 %v1397
    %1790 = vmatpush.bf16.msra.mxu0 %v1393
    %1791 = vmatmul.bf16.gmra.mxu0 %v967
    %v1792 = vpop.f32.mrf.mxu0
    %v1793 = vadd.f32 %v1780, %v1792
    %v1794 = vpop.f32.mrf.mxu0
    %1795 = vdwg.mxu0
    %1796 = vmatpush.bf16.msra.mxu0 %v1453
    %1797 = vmatpush.bf16.msra.mxu0 %v1449
    %1798 = vmatpush.bf16.msra.mxu0 %v1445
    %1799 = vmatpush.bf16.msra.mxu0 %v1441
    %1800 = vmatpush.bf16.msra.mxu0 %v1437
    %1801 = vmatpush.bf16.msra.mxu0 %v1433
    %1802 = vmatpush.bf16.msra.mxu0 %v1429
    %1803 = vmatpush.bf16.msra.mxu0 %v1425
    %1804 = vmatmul.bf16.gmra.mxu0 %v968
    %v1805 = vpop.f32.mrf.mxu0
    %v1806 = vadd.f32 %v1793, %v1805
    %v1807 = vpop.f32.mrf.mxu0
    %1808 = vdwg.mxu0
    %1809 = vmatpush.bf16.msra.mxu0 %v1485
    %1810 = vmatpush.bf16.msra.mxu0 %v1481
    %1811 = vmatpush.bf16.msra.mxu0 %v1477
    %1812 = vmatpush.bf16.msra.mxu0 %v1473
    %1813 = vmatpush.bf16.msra.mxu0 %v1469
    %1814 = vmatpush.bf16.msra.mxu0 %v1465
    %1815 = vmatpush.bf16.msra.mxu0 %v1461
    %1816 = vmatpush.bf16.msra.mxu0 %v1457
    %1817 = vmatmul.bf16.gmra.mxu0 %v969
    %v1818 = vpop.f32.mrf.mxu0
    %v1819 = vadd.f32 %v1806, %v1818
    %v1820 = vpop.f32.mrf.mxu0
    %1821 = vdwg.mxu0
    %v1822 = vmax.f32 %v1663, 0.0
    %v1823 = vmax.f32 %v1715, 0.0
    %v1824 = vmax.f32 %v1767, 0.0
    %v1825 = vmax.f32 %v1819, 0.0
    %v1826 = vpack.c.bf16 %v1823, %v1822
    %v1827 = vpack.c.bf16 %v1825, %v1824
    %1828 = vst [vmem:[#allocation2] sm:$0xff] %v1826
    %1829 = vst [vmem:[#allocation2 + $0x8] sm:$0xff] %v1827
    %v1830 = vld [vmem:[#allocation2] sm:$0xff]
    %v1831 = vld [vmem:[#allocation2 + $0x8] sm:$0xff]
    %v1832 = vld [vmem:[#allocation5] sm:$0xff]
    %v1833 = vld [vmem:[#allocation5 + $0x8] sm:$0xff]
    %v1834 = vld [vmem:[#allocation5 + $0x10] sm:$0xff]
    %v1835 = vld [vmem:[#allocation5 + $0x18] sm:$0xff]
    %v1836 = vld [vmem:[#allocation5 + $0x20] sm:$0xff]
    %v1837 = vld [vmem:[#allocation5 + $0x28] sm:$0xff]
    %v1838 = vld [vmem:[#allocation5 + $0x30] sm:$0xff]
    %v1839 = vld [vmem:[#allocation5 + $0x38] sm:$0xff]
    %v1840 = vld [vmem:[#allocation5 + $0x40] sm:$0xff]
    %v1841 = vld [vmem:[#allocation5 + $0x48] sm:$0xff]
    %v1842 = vld [vmem:[#allocation5 + $0x50] sm:$0xff]
    %v1843 = vld [vmem:[#allocation5 + $0x58] sm:$0xff]
    %v1844 = vld [vmem:[#allocation5 + $0x60] sm:$0xff]
    %v1845 = vld [vmem:[#allocation5 + $0x68] sm:$0xff]
    %v1846 = vld [vmem:[#allocation5 + $0x70] sm:$0xff]
    %v1847 = vld [vmem:[#allocation5 + $0x78] sm:$0xff]
    %v1848 = vld [vmem:[#allocation5 + $0x80] sm:$0xff]
    %v1849 = vld [vmem:[#allocation5 + $0x88] sm:$0xff]
    %v1850 = vld [vmem:[#allocation5 + $0x90] sm:$0xff]
    %v1851 = vld [vmem:[#allocation5 + $0x98] sm:$0xff]
    %v1852 = vld [vmem:[#allocation5 + $0xa0] sm:$0xff]
    %v1853 = vld [vmem:[#allocation5 + $0xa8] sm:$0xff]
    %v1854 = vld [vmem:[#allocation5 + $0xb0] sm:$0xff]
    %v1855 = vld [vmem:[#allocation5 + $0xb8] sm:$0xff]
    %v1856 = vld [vmem:[#allocation5 + $0xc0] sm:$0xff]
    %v1857 = vld [vmem:[#allocation5 + $0xc8] sm:$0xff]
    %v1858 = vld [vmem:[#allocation5 + $0xd0] sm:$0xff]
    %v1859 = vld [vmem:[#allocation5 + $0xd8] sm:$0xff]
    %v1860 = vld [vmem:[#allocation5 + $0xe0] sm:$0xff]
    %v1861 = vld [vmem:[#allocation5 + $0xe8] sm:$0xff]
    %v1862 = vld [vmem:[#allocation5 + $0xf0] sm:$0xff]
    %v1863 = vld [vmem:[#allocation5 + $0xf8] sm:$0xff]
    %v1864 = vld [vmem:[#allocation5 + $0x100] sm:$0xff]
    %v1865 = vld [vmem:[#allocation5 + $0x108] sm:$0xff]
    %v1866 = vld [vmem:[#allocation5 + $0x110] sm:$0xff]
    %v1867 = vld [vmem:[#allocation5 + $0x118] sm:$0xff]
    %v1868 = vld [vmem:[#allocation5 + $0x120] sm:$0xff]
    %v1869 = vld [vmem:[#allocation5 + $0x128] sm:$0xff]
    %v1870 = vld [vmem:[#allocation5 + $0x130] sm:$0xff]
    %v1871 = vld [vmem:[#allocation5 + $0x138] sm:$0xff]
    %v1872 = vld [vmem:[#allocation5 + $0x140] sm:$0xff]
    %v1873 = vld [vmem:[#allocation5 + $0x148] sm:$0xff]
    %v1874 = vld [vmem:[#allocation5 + $0x150] sm:$0xff]
    %v1875 = vld [vmem:[#allocation5 + $0x158] sm:$0xff]
    %v1876 = vld [vmem:[#allocation5 + $0x160] sm:$0xff]
    %v1877 = vld [vmem:[#allocation5 + $0x168] sm:$0xff]
    %v1878 = vld [vmem:[#allocation5 + $0x170] sm:$0xff]
    %v1879 = vld [vmem:[#allocation5 + $0x178] sm:$0xff]
    %v1880 = vld [vmem:[#allocation5 + $0x180] sm:$0xff]
    %v1881 = vld [vmem:[#allocation5 + $0x188] sm:$0xff]
    %v1882 = vld [vmem:[#allocation5 + $0x190] sm:$0xff]
    %v1883 = vld [vmem:[#allocation5 + $0x198] sm:$0xff]
    %v1884 = vld [vmem:[#allocation5 + $0x1a0] sm:$0xff]
    %v1885 = vld [vmem:[#allocation5 + $0x1a8] sm:$0xff]
    %v1886 = vld [vmem:[#allocation5 + $0x1b0] sm:$0xff]
    %v1887 = vld [vmem:[#allocation5 + $0x1b8] sm:$0xff]
    %v1888 = vld [vmem:[#allocation5 + $0x1c0] sm:$0xff]
    %v1889 = vld [vmem:[#allocation5 + $0x1c8] sm:$0xff]
    %v1890 = vld [vmem:[#allocation5 + $0x1d0] sm:$0xff]
    %v1891 = vld [vmem:[#allocation5 + $0x1d8] sm:$0xff]
    %v1892 = vld [vmem:[#allocation5 + $0x1e0] sm:$0xff]
    %v1893 = vld [vmem:[#allocation5 + $0x1e8] sm:$0xff]
    %v1894 = vld [vmem:[#allocation5 + $0x1f0] sm:$0xff]
    %v1895 = vld [vmem:[#allocation5 + $0x1f8] sm:$0xff]
    %v1896 = vld [vmem:[#allocation5 + $0x200] sm:$0xff]
    %v1897 = vld [vmem:[#allocation5 + $0x208] sm:$0xff]
    %v1898 = vld [vmem:[#allocation5 + $0x210] sm:$0xff]
    %v1899 = vld [vmem:[#allocation5 + $0x218] sm:$0xff]
    %v1900 = vld [vmem:[#allocation5 + $0x220] sm:$0xff]
    %v1901 = vld [vmem:[#allocation5 + $0x228] sm:$0xff]
    %v1902 = vld [vmem:[#allocation5 + $0x230] sm:$0xff]
    %v1903 = vld [vmem:[#allocation5 + $0x238] sm:$0xff]
    %v1904 = vld [vmem:[#allocation5 + $0x240] sm:$0xff]
    %v1905 = vld [vmem:[#allocation5 + $0x248] sm:$0xff]
    %v1906 = vld [vmem:[#allocation5 + $0x250] sm:$0xff]
    %v1907 = vld [vmem:[#allocation5 + $0x258] sm:$0xff]
    %v1908 = vld [vmem:[#allocation5 + $0x260] sm:$0xff]
    %v1909 = vld [vmem:[#allocation5 + $0x268] sm:$0xff]
    %v1910 = vld [vmem:[#allocation5 + $0x270] sm:$0xff]
    %v1911 = vld [vmem:[#allocation5 + $0x278] sm:$0xff]
    %v1912 = vld [vmem:[#allocation5 + $0x280] sm:$0xff]
    %v1913 = vld [vmem:[#allocation5 + $0x288] sm:$0xff]
    %v1914 = vld [vmem:[#allocation5 + $0x290] sm:$0xff]
    %v1915 = vld [vmem:[#allocation5 + $0x298] sm:$0xff]
    %v1916 = vld [vmem:[#allocation5 + $0x2a0] sm:$0xff]
    %v1917 = vld [vmem:[#allocation5 + $0x2a8] sm:$0xff]
    %v1918 = vld [vmem:[#allocation5 + $0x2b0] sm:$0xff]
    %v1919 = vld [vmem:[#allocation5 + $0x2b8] sm:$0xff]
    %v1920 = vld [vmem:[#allocation5 + $0x2c0] sm:$0xff]
    %v1921 = vld [vmem:[#allocation5 + $0x2c8] sm:$0xff]
    %v1922 = vld [vmem:[#allocation5 + $0x2d0] sm:$0xff]
    %v1923 = vld [vmem:[#allocation5 + $0x2d8] sm:$0xff]
    %v1924 = vld [vmem:[#allocation5 + $0x2e0] sm:$0xff]
    %v1925 = vld [vmem:[#allocation5 + $0x2e8] sm:$0xff]
    %v1926 = vld [vmem:[#allocation5 + $0x2f0] sm:$0xff]
    %v1927 = vld [vmem:[#allocation5 + $0x2f8] sm:$0xff]
    %v1928 = vld [vmem:[#allocation5 + $0x300] sm:$0xff]
    %v1929 = vld [vmem:[#allocation5 + $0x308] sm:$0xff]
    %v1930 = vld [vmem:[#allocation5 + $0x310] sm:$0xff]
    %v1931 = vld [vmem:[#allocation5 + $0x318] sm:$0xff]
    %v1932 = vld [vmem:[#allocation5 + $0x320] sm:$0xff]
    %v1933 = vld [vmem:[#allocation5 + $0x328] sm:$0xff]
    %v1934 = vld [vmem:[#allocation5 + $0x330] sm:$0xff]
    %v1935 = vld [vmem:[#allocation5 + $0x338] sm:$0xff]
    %v1936 = vld [vmem:[#allocation5 + $0x340] sm:$0xff]
    %v1937 = vld [vmem:[#allocation5 + $0x348] sm:$0xff]
    %v1938 = vld [vmem:[#allocation5 + $0x350] sm:$0xff]
    %v1939 = vld [vmem:[#allocation5 + $0x358] sm:$0xff]
    %v1940 = vld [vmem:[#allocation5 + $0x360] sm:$0xff]
    %v1941 = vld [vmem:[#allocation5 + $0x368] sm:$0xff]
    %v1942 = vld [vmem:[#allocation5 + $0x370] sm:$0xff]
    %v1943 = vld [vmem:[#allocation5 + $0x378] sm:$0xff]
    %v1944 = vld [vmem:[#allocation5 + $0x380] sm:$0xff]
    %v1945 = vld [vmem:[#allocation5 + $0x388] sm:$0xff]
    %v1946 = vld [vmem:[#allocation5 + $0x390] sm:$0xff]
    %v1947 = vld [vmem:[#allocation5 + $0x398] sm:$0xff]
    %v1948 = vld [vmem:[#allocation5 + $0x3a0] sm:$0xff]
    %v1949 = vld [vmem:[#allocation5 + $0x3a8] sm:$0xff]
    %v1950 = vld [vmem:[#allocation5 + $0x3b0] sm:$0xff]
    %v1951 = vld [vmem:[#allocation5 + $0x3b8] sm:$0xff]
    %v1952 = vld [vmem:[#allocation5 + $0x3c0] sm:$0xff]
    %v1953 = vld [vmem:[#allocation5 + $0x3c8] sm:$0xff]
    %v1954 = vld [vmem:[#allocation5 + $0x3d0] sm:$0xff]
    %v1955 = vld [vmem:[#allocation5 + $0x3d8] sm:$0xff]
    %v1956 = vld [vmem:[#allocation5 + $0x3e0] sm:$0xff]
    %v1957 = vld [vmem:[#allocation5 + $0x3e8] sm:$0xff]
    %v1958 = vld [vmem:[#allocation5 + $0x3f0] sm:$0xff]
    %v1959 = vld [vmem:[#allocation5 + $0x3f8] sm:$0xff]
    %v1960 = vld [vmem:[%s6] sm:$0xf]
    %v1962 = vperm.slane %v1960, 0
    %v1963 = vperm.slane %v1960, 1
    %v1964 = vperm.slane %v1960, 2
    %v1965 = vperm.slane %v1960, 3
    %v1972 = vunpack.c.l.b16 %v1830
    %v1973 = vunpack.c.h.b16 %v1830
    %v1974 = vunpack.c.l.b16 %v1831
    %v1975 = vunpack.c.h.b16 %v1831
    %v1976 = vpack.c.b16 %v1972, %v1972
    %v1977 = vpack.c.b16 %v1973, %v1973
    %v1978 = vpack.c.b16 %v1974, %v1974
    %v1979 = vpack.c.b16 %v1975, %v1975
    %v2112 = vunpack.c.l.b16 %v1832
    %v2113 = vunpack.c.h.b16 %v1832
    %v2114 = vunpack.c.l.b16 %v1833
    %v2115 = vunpack.c.h.b16 %v1833
    %v2116 = vunpack.c.l.b16 %v1834
    %v2117 = vunpack.c.h.b16 %v1834
    %v2118 = vunpack.c.l.b16 %v1835
    %v2119 = vunpack.c.h.b16 %v1835
    %v2120 = vunpack.c.l.b16 %v1836
    %v2121 = vunpack.c.h.b16 %v1836
    %v2122 = vunpack.c.l.b16 %v1837
    %v2123 = vunpack.c.h.b16 %v1837
    %v2124 = vunpack.c.l.b16 %v1838
    %v2125 = vunpack.c.h.b16 %v1838
    %v2126 = vunpack.c.l.b16 %v1839
    %v2127 = vunpack.c.h.b16 %v1839
    %v2128 = vunpack.c.l.b16 %v1840
    %v2129 = vunpack.c.h.b16 %v1840
    %v2130 = vunpack.c.l.b16 %v1841
    %v2131 = vunpack.c.h.b16 %v1841
    %v2132 = vunpack.c.l.b16 %v1842
    %v2133 = vunpack.c.h.b16 %v1842
    %v2134 = vunpack.c.l.b16 %v1843
    %v2135 = vunpack.c.h.b16 %v1843
    %v2136 = vunpack.c.l.b16 %v1844
    %v2137 = vunpack.c.h.b16 %v1844
    %v2138 = vunpack.c.l.b16 %v1845
    %v2139 = vunpack.c.h.b16 %v1845
    %v2140 = vunpack.c.l.b16 %v1846
    %v2141 = vunpack.c.h.b16 %v1846
    %v2142 = vunpack.c.l.b16 %v1847
    %v2143 = vunpack.c.h.b16 %v1847
    %v2144 = vunpack.c.l.b16 %v1848
    %v2145 = vunpack.c.h.b16 %v1848
    %v2146 = vunpack.c.l.b16 %v1849
    %v2147 = vunpack.c.h.b16 %v1849
    %v2148 = vunpack.c.l.b16 %v1850
    %v2149 = vunpack.c.h.b16 %v1850
    %v2150 = vunpack.c.l.b16 %v1851
    %v2151 = vunpack.c.h.b16 %v1851
    %v2152 = vunpack.c.l.b16 %v1852
    %v2153 = vunpack.c.h.b16 %v1852
    %v2154 = vunpack.c.l.b16 %v1853
    %v2155 = vunpack.c.h.b16 %v1853
    %v2156 = vunpack.c.l.b16 %v1854
    %v2157 = vunpack.c.h.b16 %v1854
    %v2158 = vunpack.c.l.b16 %v1855
    %v2159 = vunpack.c.h.b16 %v1855
    %v2160 = vunpack.c.l.b16 %v1856
    %v2161 = vunpack.c.h.b16 %v1856
    %v2162 = vunpack.c.l.b16 %v1857
    %v2163 = vunpack.c.h.b16 %v1857
    %v2164 = vunpack.c.l.b16 %v1858
    %v2165 = vunpack.c.h.b16 %v1858
    %v2166 = vunpack.c.l.b16 %v1859
    %v2167 = vunpack.c.h.b16 %v1859
    %v2168 = vunpack.c.l.b16 %v1860
    %v2169 = vunpack.c.h.b16 %v1860
    %v2170 = vunpack.c.l.b16 %v1861
    %v2171 = vunpack.c.h.b16 %v1861
    %v2172 = vunpack.c.l.b16 %v1862
    %v2173 = vunpack.c.h.b16 %v1862
    %v2174 = vunpack.c.l.b16 %v1863
    %v2175 = vunpack.c.h.b16 %v1863
    %v2176 = vunpack.c.l.b16 %v1864
    %v2177 = vunpack.c.h.b16 %v1864
    %v2178 = vunpack.c.l.b16 %v1865
    %v2179 = vunpack.c.h.b16 %v1865
    %v2180 = vunpack.c.l.b16 %v1866
    %v2181 = vunpack.c.h.b16 %v1866
    %v2182 = vunpack.c.l.b16 %v1867
    %v2183 = vunpack.c.h.b16 %v1867
    %v2184 = vunpack.c.l.b16 %v1868
    %v2185 = vunpack.c.h.b16 %v1868
    %v2186 = vunpack.c.l.b16 %v1869
    %v2187 = vunpack.c.h.b16 %v1869
    %v2188 = vunpack.c.l.b16 %v1870
    %v2189 = vunpack.c.h.b16 %v1870
    %v2190 = vunpack.c.l.b16 %v1871
    %v2191 = vunpack.c.h.b16 %v1871
    %v2192 = vunpack.c.l.b16 %v1872
    %v2193 = vunpack.c.h.b16 %v1872
    %v2194 = vunpack.c.l.b16 %v1873
    %v2195 = vunpack.c.h.b16 %v1873
    %v2196 = vunpack.c.l.b16 %v1874
    %v2197 = vunpack.c.h.b16 %v1874
    %v2198 = vunpack.c.l.b16 %v1875
    %v2199 = vunpack.c.h.b16 %v1875
    %v2200 = vunpack.c.l.b16 %v1876
    %v2201 = vunpack.c.h.b16 %v1876
    %v2202 = vunpack.c.l.b16 %v1877
    %v2203 = vunpack.c.h.b16 %v1877
    %v2204 = vunpack.c.l.b16 %v1878
    %v2205 = vunpack.c.h.b16 %v1878
    %v2206 = vunpack.c.l.b16 %v1879
    %v2207 = vunpack.c.h.b16 %v1879
    %v2208 = vunpack.c.l.b16 %v1880
    %v2209 = vunpack.c.h.b16 %v1880
    %v2210 = vunpack.c.l.b16 %v1881
    %v2211 = vunpack.c.h.b16 %v1881
    %v2212 = vunpack.c.l.b16 %v1882
    %v2213 = vunpack.c.h.b16 %v1882
    %v2214 = vunpack.c.l.b16 %v1883
    %v2215 = vunpack.c.h.b16 %v1883
    %v2216 = vunpack.c.l.b16 %v1884
    %v2217 = vunpack.c.h.b16 %v1884
    %v2218 = vunpack.c.l.b16 %v1885
    %v2219 = vunpack.c.h.b16 %v1885
    %v2220 = vunpack.c.l.b16 %v1886
    %v2221 = vunpack.c.h.b16 %v1886
    %v2222 = vunpack.c.l.b16 %v1887
    %v2223 = vunpack.c.h.b16 %v1887
    %v2224 = vunpack.c.l.b16 %v1888
    %v2225 = vunpack.c.h.b16 %v1888
    %v2226 = vunpack.c.l.b16 %v1889
    %v2227 = vunpack.c.h.b16 %v1889
    %v2228 = vunpack.c.l.b16 %v1890
    %v2229 = vunpack.c.h.b16 %v1890
    %v2230 = vunpack.c.l.b16 %v1891
    %v2231 = vunpack.c.h.b16 %v1891
    %v2232 = vunpack.c.l.b16 %v1892
    %v2233 = vunpack.c.h.b16 %v1892
    %v2234 = vunpack.c.l.b16 %v1893
    %v2235 = vunpack.c.h.b16 %v1893
    %v2236 = vunpack.c.l.b16 %v1894
    %v2237 = vunpack.c.h.b16 %v1894
    %v2238 = vunpack.c.l.b16 %v1895
    %v2239 = vunpack.c.h.b16 %v1895
    %v2240 = vunpack.c.l.b16 %v1896
    %v2241 = vunpack.c.h.b16 %v1896
    %v2242 = vunpack.c.l.b16 %v1897
    %v2243 = vunpack.c.h.b16 %v1897
    %v2244 = vunpack.c.l.b16 %v1898
    %v2245 = vunpack.c.h.b16 %v1898
    %v2246 = vunpack.c.l.b16 %v1899
    %v2247 = vunpack.c.h.b16 %v1899
    %v2248 = vunpack.c.l.b16 %v1900
    %v2249 = vunpack.c.h.b16 %v1900
    %v2250 = vunpack.c.l.b16 %v1901
    %v2251 = vunpack.c.h.b16 %v1901
    %v2252 = vunpack.c.l.b16 %v1902
    %v2253 = vunpack.c.h.b16 %v1902
    %v2254 = vunpack.c.l.b16 %v1903
    %v2255 = vunpack.c.h.b16 %v1903
    %v2256 = vunpack.c.l.b16 %v1904
    %v2257 = vunpack.c.h.b16 %v1904
    %v2258 = vunpack.c.l.b16 %v1905
    %v2259 = vunpack.c.h.b16 %v1905
    %v2260 = vunpack.c.l.b16 %v1906
    %v2261 = vunpack.c.h.b16 %v1906
    %v2262 = vunpack.c.l.b16 %v1907
    %v2263 = vunpack.c.h.b16 %v1907
    %v2264 = vunpack.c.l.b16 %v1908
    %v2265 = vunpack.c.h.b16 %v1908
    %v2266 = vunpack.c.l.b16 %v1909
    %v2267 = vunpack.c.h.b16 %v1909
    %v2268 = vunpack.c.l.b16 %v1910
    %v2269 = vunpack.c.h.b16 %v1910
    %v2270 = vunpack.c.l.b16 %v1911
    %v2271 = vunpack.c.h.b16 %v1911
    %v2272 = vunpack.c.l.b16 %v1912
    %v2273 = vunpack.c.h.b16 %v1912
    %v2274 = vunpack.c.l.b16 %v1913
    %v2275 = vunpack.c.h.b16 %v1913
    %v2276 = vunpack.c.l.b16 %v1914
    %v2277 = vunpack.c.h.b16 %v1914
    %v2278 = vunpack.c.l.b16 %v1915
    %v2279 = vunpack.c.h.b16 %v1915
    %v2280 = vunpack.c.l.b16 %v1916
    %v2281 = vunpack.c.h.b16 %v1916
    %v2282 = vunpack.c.l.b16 %v1917
    %v2283 = vunpack.c.h.b16 %v1917
    %v2284 = vunpack.c.l.b16 %v1918
    %v2285 = vunpack.c.h.b16 %v1918
    %v2286 = vunpack.c.l.b16 %v1919
    %v2287 = vunpack.c.h.b16 %v1919
    %v2288 = vunpack.c.l.b16 %v1920
    %v2289 = vunpack.c.h.b16 %v1920
    %v2290 = vunpack.c.l.b16 %v1921
    %v2291 = vunpack.c.h.b16 %v1921
    %v2292 = vunpack.c.l.b16 %v1922
    %v2293 = vunpack.c.h.b16 %v1922
    %v2294 = vunpack.c.l.b16 %v1923
    %v2295 = vunpack.c.h.b16 %v1923
    %v2296 = vunpack.c.l.b16 %v1924
    %v2297 = vunpack.c.h.b16 %v1924
    %v2298 = vunpack.c.l.b16 %v1925
    %v2299 = vunpack.c.h.b16 %v1925
    %v2300 = vunpack.c.l.b16 %v1926
    %v2301 = vunpack.c.h.b16 %v1926
    %v2302 = vunpack.c.l.b16 %v1927
    %v2303 = vunpack.c.h.b16 %v1927
    %v2304 = vunpack.c.l.b16 %v1928
    %v2305 = vunpack.c.h.b16 %v1928
    %v2306 = vunpack.c.l.b16 %v1929
    %v2307 = vunpack.c.h.b16 %v1929
    %v2308 = vunpack.c.l.b16 %v1930
    %v2309 = vunpack.c.h.b16 %v1930
    %v2310 = vunpack.c.l.b16 %v1931
    %v2311 = vunpack.c.h.b16 %v1931
    %v2312 = vunpack.c.l.b16 %v1932
    %v2313 = vunpack.c.h.b16 %v1932
    %v2314 = vunpack.c.l.b16 %v1933
    %v2315 = vunpack.c.h.b16 %v1933
    %v2316 = vunpack.c.l.b16 %v1934
    %v2317 = vunpack.c.h.b16 %v1934
    %v2318 = vunpack.c.l.b16 %v1935
    %v2319 = vunpack.c.h.b16 %v1935
    %v2320 = vunpack.c.l.b16 %v1936
    %v2321 = vunpack.c.h.b16 %v1936
    %v2322 = vunpack.c.l.b16 %v1937
    %v2323 = vunpack.c.h.b16 %v1937
    %v2324 = vunpack.c.l.b16 %v1938
    %v2325 = vunpack.c.h.b16 %v1938
    %v2326 = vunpack.c.l.b16 %v1939
    %v2327 = vunpack.c.h.b16 %v1939
    %v2328 = vunpack.c.l.b16 %v1940
    %v2329 = vunpack.c.h.b16 %v1940
    %v2330 = vunpack.c.l.b16 %v1941
    %v2331 = vunpack.c.h.b16 %v1941
    %v2332 = vunpack.c.l.b16 %v1942
    %v2333 = vunpack.c.h.b16 %v1942
    %v2334 = vunpack.c.l.b16 %v1943
    %v2335 = vunpack.c.h.b16 %v1943
    %v2336 = vunpack.c.l.b16 %v1944
    %v2337 = vunpack.c.h.b16 %v1944
    %v2338 = vunpack.c.l.b16 %v1945
    %v2339 = vunpack.c.h.b16 %v1945
    %v2340 = vunpack.c.l.b16 %v1946
    %v2341 = vunpack.c.h.b16 %v1946
    %v2342 = vunpack.c.l.b16 %v1947
    %v2343 = vunpack.c.h.b16 %v1947
    %v2344 = vunpack.c.l.b16 %v1948
    %v2345 = vunpack.c.h.b16 %v1948
    %v2346 = vunpack.c.l.b16 %v1949
    %v2347 = vunpack.c.h.b16 %v1949
    %v2348 = vunpack.c.l.b16 %v1950
    %v2349 = vunpack.c.h.b16 %v1950
    %v2350 = vunpack.c.l.b16 %v1951
    %v2351 = vunpack.c.h.b16 %v1951
    %v2352 = vunpack.c.l.b16 %v1952
    %v2353 = vunpack.c.h.b16 %v1952
    %v2354 = vunpack.c.l.b16 %v1953
    %v2355 = vunpack.c.h.b16 %v1953
    %v2356 = vunpack.c.l.b16 %v1954
    %v2357 = vunpack.c.h.b16 %v1954
    %v2358 = vunpack.c.l.b16 %v1955
    %v2359 = vunpack.c.h.b16 %v1955
    %v2360 = vunpack.c.l.b16 %v1956
    %v2361 = vunpack.c.h.b16 %v1956
    %v2362 = vunpack.c.l.b16 %v1957
    %v2363 = vunpack.c.h.b16 %v1957
    %v2364 = vunpack.c.l.b16 %v1958
    %v2365 = vunpack.c.h.b16 %v1958
    %v2366 = vunpack.c.l.b16 %v1959
    %v2367 = vunpack.c.h.b16 %v1959
    %v2368 = vpack.c.b16 %v2116, %v2112
    %v2369 = vpack.c.b16 %v2117, %v2113
    %v2370 = vpack.c.b16 %v2118, %v2114
    %v2371 = vpack.c.b16 %v2119, %v2115
    %v2372 = vpack.c.b16 %v2124, %v2120
    %v2373 = vpack.c.b16 %v2125, %v2121
    %v2374 = vpack.c.b16 %v2126, %v2122
    %v2375 = vpack.c.b16 %v2127, %v2123
    %v2376 = vpack.c.b16 %v2132, %v2128
    %v2377 = vpack.c.b16 %v2133, %v2129
    %v2378 = vpack.c.b16 %v2134, %v2130
    %v2379 = vpack.c.b16 %v2135, %v2131
    %v2380 = vpack.c.b16 %v2140, %v2136
    %v2381 = vpack.c.b16 %v2141, %v2137
    %v2382 = vpack.c.b16 %v2142, %v2138
    %v2383 = vpack.c.b16 %v2143, %v2139
    %v2384 = vpack.c.b16 %v2148, %v2144
    %v2385 = vpack.c.b16 %v2149, %v2145
    %v2386 = vpack.c.b16 %v2150, %v2146
    %v2387 = vpack.c.b16 %v2151, %v2147
    %v2388 = vpack.c.b16 %v2156, %v2152
    %v2389 = vpack.c.b16 %v2157, %v2153
    %v2390 = vpack.c.b16 %v2158, %v2154
    %v2391 = vpack.c.b16 %v2159, %v2155
    %v2392 = vpack.c.b16 %v2164, %v2160
    %v2393 = vpack.c.b16 %v2165, %v2161
    %v2394 = vpack.c.b16 %v2166, %v2162
    %v2395 = vpack.c.b16 %v2167, %v2163
    %v2396 = vpack.c.b16 %v2172, %v2168
    %v2397 = vpack.c.b16 %v2173, %v2169
    %v2398 = vpack.c.b16 %v2174, %v2170
    %v2399 = vpack.c.b16 %v2175, %v2171
    %v2400 = vpack.c.b16 %v2180, %v2176
    %v2401 = vpack.c.b16 %v2181, %v2177
    %v2402 = vpack.c.b16 %v2182, %v2178
    %v2403 = vpack.c.b16 %v2183, %v2179
    %v2404 = vpack.c.b16 %v2188, %v2184
    %v2405 = vpack.c.b16 %v2189, %v2185
    %v2406 = vpack.c.b16 %v2190, %v2186
    %v2407 = vpack.c.b16 %v2191, %v2187
    %v2408 = vpack.c.b16 %v2196, %v2192
    %v2409 = vpack.c.b16 %v2197, %v2193
    %v2410 = vpack.c.b16 %v2198, %v2194
    %v2411 = vpack.c.b16 %v2199, %v2195
    %v2412 = vpack.c.b16 %v2204, %v2200
    %v2413 = vpack.c.b16 %v2205, %v2201
    %v2414 = vpack.c.b16 %v2206, %v2202
    %v2415 = vpack.c.b16 %v2207, %v2203
    %v2416 = vpack.c.b16 %v2212, %v2208
    %v2417 = vpack.c.b16 %v2213, %v2209
    %v2418 = vpack.c.b16 %v2214, %v2210
    %v2419 = vpack.c.b16 %v2215, %v2211
    %v2420 = vpack.c.b16 %v2220, %v2216
    %v2421 = vpack.c.b16 %v2221, %v2217
    %v2422 = vpack.c.b16 %v2222, %v2218
    %v2423 = vpack.c.b16 %v2223, %v2219
    %v2424 = vpack.c.b16 %v2228, %v2224
    %v2425 = vpack.c.b16 %v2229, %v2225
    %v2426 = vpack.c.b16 %v2230, %v2226
    %v2427 = vpack.c.b16 %v2231, %v2227
    %v2428 = vpack.c.b16 %v2236, %v2232
    %v2429 = vpack.c.b16 %v2237, %v2233
    %v2430 = vpack.c.b16 %v2238, %v2234
    %v2431 = vpack.c.b16 %v2239, %v2235
    %v2432 = vpack.c.b16 %v2244, %v2240
    %v2433 = vpack.c.b16 %v2245, %v2241
    %v2434 = vpack.c.b16 %v2246, %v2242
    %v2435 = vpack.c.b16 %v2247, %v2243
    %v2436 = vpack.c.b16 %v2252, %v2248
    %v2437 = vpack.c.b16 %v2253, %v2249
    %v2438 = vpack.c.b16 %v2254, %v2250
    %v2439 = vpack.c.b16 %v2255, %v2251
    %v2440 = vpack.c.b16 %v2260, %v2256
    %v2441 = vpack.c.b16 %v2261, %v2257
    %v2442 = vpack.c.b16 %v2262, %v2258
    %v2443 = vpack.c.b16 %v2263, %v2259
    %v2444 = vpack.c.b16 %v2268, %v2264
    %v2445 = vpack.c.b16 %v2269, %v2265
    %v2446 = vpack.c.b16 %v2270, %v2266
    %v2447 = vpack.c.b16 %v2271, %v2267
    %v2448 = vpack.c.b16 %v2276, %v2272
    %v2449 = vpack.c.b16 %v2277, %v2273
    %v2450 = vpack.c.b16 %v2278, %v2274
    %v2451 = vpack.c.b16 %v2279, %v2275
    %v2452 = vpack.c.b16 %v2284, %v2280
    %v2453 = vpack.c.b16 %v2285, %v2281
    %v2454 = vpack.c.b16 %v2286, %v2282
    %v2455 = vpack.c.b16 %v2287, %v2283
    %v2456 = vpack.c.b16 %v2292, %v2288
    %v2457 = vpack.c.b16 %v2293, %v2289
    %v2458 = vpack.c.b16 %v2294, %v2290
    %v2459 = vpack.c.b16 %v2295, %v2291
    %v2460 = vpack.c.b16 %v2300, %v2296
    %v2461 = vpack.c.b16 %v2301, %v2297
    %v2462 = vpack.c.b16 %v2302, %v2298
    %v2463 = vpack.c.b16 %v2303, %v2299
    %v2464 = vpack.c.b16 %v2308, %v2304
    %v2465 = vpack.c.b16 %v2309, %v2305
    %v2466 = vpack.c.b16 %v2310, %v2306
    %v2467 = vpack.c.b16 %v2311, %v2307
    %v2468 = vpack.c.b16 %v2316, %v2312
    %v2469 = vpack.c.b16 %v2317, %v2313
    %v2470 = vpack.c.b16 %v2318, %v2314
    %v2471 = vpack.c.b16 %v2319, %v2315
    %v2472 = vpack.c.b16 %v2324, %v2320
    %v2473 = vpack.c.b16 %v2325, %v2321
    %v2474 = vpack.c.b16 %v2326, %v2322
    %v2475 = vpack.c.b16 %v2327, %v2323
    %v2476 = vpack.c.b16 %v2332, %v2328
    %v2477 = vpack.c.b16 %v2333, %v2329
    %v2478 = vpack.c.b16 %v2334, %v2330
    %v2479 = vpack.c.b16 %v2335, %v2331
    %v2480 = vpack.c.b16 %v2340, %v2336
    %v2481 = vpack.c.b16 %v2341, %v2337
    %v2482 = vpack.c.b16 %v2342, %v2338
    %v2483 = vpack.c.b16 %v2343, %v2339
    %v2484 = vpack.c.b16 %v2348, %v2344
    %v2485 = vpack.c.b16 %v2349, %v2345
    %v2486 = vpack.c.b16 %v2350, %v2346
    %v2487 = vpack.c.b16 %v2351, %v2347
    %v2488 = vpack.c.b16 %v2356, %v2352
    %v2489 = vpack.c.b16 %v2357, %v2353
    %v2490 = vpack.c.b16 %v2358, %v2354
    %v2491 = vpack.c.b16 %v2359, %v2355
    %v2492 = vpack.c.b16 %v2364, %v2360
    %v2493 = vpack.c.b16 %v2365, %v2361
    %v2494 = vpack.c.b16 %v2366, %v2362
    %v2495 = vpack.c.b16 %v2367, %v2363
    %2624 = vmatpush.bf16.msra.mxu0 %v2396
    %2625 = vmatpush.bf16.msra.mxu0 %v2392
    %2626 = vmatpush.bf16.msra.mxu0 %v2388
    %2627 = vmatpush.bf16.msra.mxu0 %v2384
    %2628 = vmatpush.bf16.msra.mxu0 %v2380
    %2629 = vmatpush.bf16.msra.mxu0 %v2376
    %2630 = vmatpush.bf16.msra.mxu0 %v2372
    %2631 = vmatpush.bf16.msra.mxu0 %v2368
    %2632 = vmatmul.bf16.gmra.mxu0 %v1976
    %v2633 = vpop.f32.mrf.mxu0
    %v2634 = vadd.f32 %v1962, %v2633
    %v2635 = vpop.f32.mrf.mxu0
    %2636 = vdwg.mxu0
    %2637 = vmatpush.bf16.msra.mxu0 %v2428
    %2638 = vmatpush.bf16.msra.mxu0 %v2424
    %2639 = vmatpush.bf16.msra.mxu0 %v2420
    %2640 = vmatpush.bf16.msra.mxu0 %v2416
    %2641 = vmatpush.bf16.msra.mxu0 %v2412
    %2642 = vmatpush.bf16.msra.mxu0 %v2408
    %2643 = vmatpush.bf16.msra.mxu0 %v2404
    %2644 = vmatpush.bf16.msra.mxu0 %v2400
    %2645 = vmatmul.bf16.gmra.mxu0 %v1977
    %v2646 = vpop.f32.mrf.mxu0
    %v2647 = vadd.f32 %v2634, %v2646
    %v2648 = vpop.f32.mrf.mxu0
    %2649 = vdwg.mxu0
    %2650 = vmatpush.bf16.msra.mxu0 %v2460
    %2651 = vmatpush.bf16.msra.mxu0 %v2456
    %2652 = vmatpush.bf16.msra.mxu0 %v2452
    %2653 = vmatpush.bf16.msra.mxu0 %v2448
    %2654 = vmatpush.bf16.msra.mxu0 %v2444
    %2655 = vmatpush.bf16.msra.mxu0 %v2440
    %2656 = vmatpush.bf16.msra.mxu0 %v2436
    %2657 = vmatpush.bf16.msra.mxu0 %v2432
    %2658 = vmatmul.bf16.gmra.mxu0 %v1978
    %v2659 = vpop.f32.mrf.mxu0
    %v2660 = vadd.f32 %v2647, %v2659
    %v2661 = vpop.f32.mrf.mxu0
    %2662 = vdwg.mxu0
    %2663 = vmatpush.bf16.msra.mxu0 %v2492
    %2664 = vmatpush.bf16.msra.mxu0 %v2488
    %2665 = vmatpush.bf16.msra.mxu0 %v2484
    %2666 = vmatpush.bf16.msra.mxu0 %v2480
    %2667 = vmatpush.bf16.msra.mxu0 %v2476
    %2668 = vmatpush.bf16.msra.mxu0 %v2472
    %2669 = vmatpush.bf16.msra.mxu0 %v2468
    %2670 = vmatpush.bf16.msra.mxu0 %v2464
    %2671 = vmatmul.bf16.gmra.mxu0 %v1979
    %v2672 = vpop.f32.mrf.mxu0
    %v2673 = vadd.f32 %v2660, %v2672
    %v2674 = vpop.f32.mrf.mxu0
    %2675 = vdwg.mxu0
    %2676 = vmatpush.bf16.msra.mxu0 %v2397
    %2677 = vmatpush.bf16.msra.mxu0 %v2393
    %2678 = vmatpush.bf16.msra.mxu0 %v2389
    %2679 = vmatpush.bf16.msra.mxu0 %v2385
    %2680 = vmatpush.bf16.msra.mxu0 %v2381
    %2681 = vmatpush.bf16.msra.mxu0 %v2377
    %2682 = vmatpush.bf16.msra.mxu0 %v2373
    %2683 = vmatpush.bf16.msra.mxu0 %v2369
    %2684 = vmatmul.bf16.gmra.mxu0 %v1976
    %v2685 = vpop.f32.mrf.mxu0
    %v2686 = vadd.f32 %v1963, %v2685
    %v2687 = vpop.f32.mrf.mxu0
    %2688 = vdwg.mxu0
    %2689 = vmatpush.bf16.msra.mxu0 %v2429
    %2690 = vmatpush.bf16.msra.mxu0 %v2425
    %2691 = vmatpush.bf16.msra.mxu0 %v2421
    %2692 = vmatpush.bf16.msra.mxu0 %v2417
    %2693 = vmatpush.bf16.msra.mxu0 %v2413
    %2694 = vmatpush.bf16.msra.mxu0 %v2409
    %2695 = vmatpush.bf16.msra.mxu0 %v2405
    %2696 = vmatpush.bf16.msra.mxu0 %v2401
    %2697 = vmatmul.bf16.gmra.mxu0 %v1977
    %v2698 = vpop.f32.mrf.mxu0
    %v2699 = vadd.f32 %v2686, %v2698
    %v2700 = vpop.f32.mrf.mxu0
    %2701 = vdwg.mxu0
    %2702 = vmatpush.bf16.msra.mxu0 %v2461
    %2703 = vmatpush.bf16.msra.mxu0 %v2457
    %2704 = vmatpush.bf16.msra.mxu0 %v2453
    %2705 = vmatpush.bf16.msra.mxu0 %v2449
    %2706 = vmatpush.bf16.msra.mxu0 %v2445
    %2707 = vmatpush.bf16.msra.mxu0 %v2441
    %2708 = vmatpush.bf16.msra.mxu0 %v2437
    %2709 = vmatpush.bf16.msra.mxu0 %v2433
    %2710 = vmatmul.bf16.gmra.mxu0 %v1978
    %v2711 = vpop.f32.mrf.mxu0
    %v2712 = vadd.f32 %v2699, %v2711
    %v2713 = vpop.f32.mrf.mxu0
    %2714 = vdwg.mxu0
    %2715 = vmatpush.bf16.msra.mxu0 %v2493
    %2716 = vmatpush.bf16.msra.mxu0 %v2489
    %2717 = vmatpush.bf16.msra.mxu0 %v2485
    %2718 = vmatpush.bf16.msra.mxu0 %v2481
    %2719 = vmatpush.bf16.msra.mxu0 %v2477
    %2720 = vmatpush.bf16.msra.mxu0 %v2473
    %2721 = vmatpush.bf16.msra.mxu0 %v2469
    %2722 = vmatpush.bf16.msra.mxu0 %v2465
    %2723 = vmatmul.bf16.gmra.mxu0 %v1979
    %v2724 = vpop.f32.mrf.mxu0
    %v2725 = vadd.f32 %v2712, %v2724
    %v2726 = vpop.f32.mrf.mxu0
    %2727 = vdwg.mxu0
    %2728 = vmatpush.bf16.msra.mxu0 %v2398
    %2729 = vmatpush.bf16.msra.mxu0 %v2394
    %2730 = vmatpush.bf16.msra.mxu0 %v2390
    %2731 = vmatpush.bf16.msra.mxu0 %v2386
    %2732 = vmatpush.bf16.msra.mxu0 %v2382
    %2733 = vmatpush.bf16.msra.mxu0 %v2378
    %2734 = vmatpush.bf16.msra.mxu0 %v2374
    %2735 = vmatpush.bf16.msra.mxu0 %v2370
    %2736 = vmatmul.bf16.gmra.mxu0 %v1976
    %v2737 = vpop.f32.mrf.mxu0
    %v2738 = vadd.f32 %v1964, %v2737
    %v2739 = vpop.f32.mrf.mxu0
    %2740 = vdwg.mxu0
    %2741 = vmatpush.bf16.msra.mxu0 %v2430
    %2742 = vmatpush.bf16.msra.mxu0 %v2426
    %2743 = vmatpush.bf16.msra.mxu0 %v2422
    %2744 = vmatpush.bf16.msra.mxu0 %v2418
    %2745 = vmatpush.bf16.msra.mxu0 %v2414
    %2746 = vmatpush.bf16.msra.mxu0 %v2410
    %2747 = vmatpush.bf16.msra.mxu0 %v2406
    %2748 = vmatpush.bf16.msra.mxu0 %v2402
    %2749 = vmatmul.bf16.gmra.mxu0 %v1977
    %v2750 = vpop.f32.mrf.mxu0
    %v2751 = vadd.f32 %v2738, %v2750
    %v2752 = vpop.f32.mrf.mxu0
    %2753 = vdwg.mxu0
    %2754 = vmatpush.bf16.msra.mxu0 %v2462
    %2755 = vmatpush.bf16.msra.mxu0 %v2458
    %2756 = vmatpush.bf16.msra.mxu0 %v2454
    %2757 = vmatpush.bf16.msra.mxu0 %v2450
    %2758 = vmatpush.bf16.msra.mxu0 %v2446
    %2759 = vmatpush.bf16.msra.mxu0 %v2442
    %2760 = vmatpush.bf16.msra.mxu0 %v2438
    %2761 = vmatpush.bf16.msra.mxu0 %v2434
    %2762 = vmatmul.bf16.gmra.mxu0 %v1978
    %v2763 = vpop.f32.mrf.mxu0
    %v2764 = vadd.f32 %v2751, %v2763
    %v2765 = vpop.f32.mrf.mxu0
    %2766 = vdwg.mxu0
    %2767 = vmatpush.bf16.msra.mxu0 %v2494
    %2768 = vmatpush.bf16.msra.mxu0 %v2490
    %2769 = vmatpush.bf16.msra.mxu0 %v2486
    %2770 = vmatpush.bf16.msra.mxu0 %v2482
    %2771 = vmatpush.bf16.msra.mxu0 %v2478
    %2772 = vmatpush.bf16.msra.mxu0 %v2474
    %2773 = vmatpush.bf16.msra.mxu0 %v2470
    %2774 = vmatpush.bf16.msra.mxu0 %v2466
    %2775 = vmatmul.bf16.gmra.mxu0 %v1979
    %v2776 = vpop.f32.mrf.mxu0
    %v2777 = vadd.f32 %v2764, %v2776
    %v2778 = vpop.f32.mrf.mxu0
    %2779 = vdwg.mxu0
    %2780 = vmatpush.bf16.msra.mxu0 %v2399
    %2781 = vmatpush.bf16.msra.mxu0 %v2395
    %2782 = vmatpush.bf16.msra.mxu0 %v2391
    %2783 = vmatpush.bf16.msra.mxu0 %v2387
    %2784 = vmatpush.bf16.msra.mxu0 %v2383
    %2785 = vmatpush.bf16.msra.mxu0 %v2379
    %2786 = vmatpush.bf16.msra.mxu0 %v2375
    %2787 = vmatpush.bf16.msra.mxu0 %v2371
    %2788 = vmatmul.bf16.gmra.mxu0 %v1976
    %v2789 = vpop.f32.mrf.mxu0
    %v2790 = vadd.f32 %v1965, %v2789
    %v2791 = vpop.f32.mrf.mxu0
    %2792 = vdwg.mxu0
    %2793 = vmatpush.bf16.msra.mxu0 %v2431
    %2794 = vmatpush.bf16.msra.mxu0 %v2427
    %2795 = vmatpush.bf16.msra.mxu0 %v2423
    %2796 = vmatpush.bf16.msra.mxu0 %v2419
    %2797 = vmatpush.bf16.msra.mxu0 %v2415
    %2798 = vmatpush.bf16.msra.mxu0 %v2411
    %2799 = vmatpush.bf16.msra.mxu0 %v2407
    %2800 = vmatpush.bf16.msra.mxu0 %v2403
    %2801 = vmatmul.bf16.gmra.mxu0 %v1977
    %v2802 = vpop.f32.mrf.mxu0
    %v2803 = vadd.f32 %v2790, %v2802
    %v2804 = vpop.f32.mrf.mxu0
    %2805 = vdwg.mxu0
    %2806 = vmatpush.bf16.msra.mxu0 %v2463
    %2807 = vmatpush.bf16.msra.mxu0 %v2459
    %2808 = vmatpush.bf16.msra.mxu0 %v2455
    %2809 = vmatpush.bf16.msra.mxu0 %v2451
    %2810 = vmatpush.bf16.msra.mxu0 %v2447
    %2811 = vmatpush.bf16.msra.mxu0 %v2443
    %2812 = vmatpush.bf16.msra.mxu0 %v2439
    %2813 = vmatpush.bf16.msra.mxu0 %v2435
    %2814 = vmatmul.bf16.gmra.mxu0 %v1978
    %v2815 = vpop.f32.mrf.mxu0
    %v2816 = vadd.f32 %v2803, %v2815
    %v2817 = vpop.f32.mrf.mxu0
    %2818 = vdwg.mxu0
    %2819 = vmatpush.bf16.msra.mxu0 %v2495
    %2820 = vmatpush.bf16.msra.mxu0 %v2491
    %2821 = vmatpush.bf16.msra.mxu0 %v2487
    %2822 = vmatpush.bf16.msra.mxu0 %v2483
    %2823 = vmatpush.bf16.msra.mxu0 %v2479
    %2824 = vmatpush.bf16.msra.mxu0 %v2475
    %2825 = vmatpush.bf16.msra.mxu0 %v2471
    %2826 = vmatpush.bf16.msra.mxu0 %v2467
    %2827 = vmatmul.bf16.gmra.mxu0 %v1979
    %v2828 = vpop.f32.mrf.mxu0
    %v2829 = vadd.f32 %v2816, %v2828
    %v2830 = vpop.f32.mrf.mxu0
    %2831 = vdwg.mxu0
    %v2832 = vmax.f32 %v2673, 0.0
    %v2833 = vmax.f32 %v2725, 0.0
    %v2834 = vmax.f32 %v2777, 0.0
    %v2835 = vmax.f32 %v2829, 0.0
    %v2836 = vpack.c.bf16 %v2833, %v2832
    %v2837 = vpack.c.bf16 %v2835, %v2834
    %2838 = vst [vmem:[#allocation2] sm:$0xff] %v2836
    %2839 = vst [vmem:[#allocation2 + $0x8] sm:$0xff] %v2837
    %v2840 = vld [vmem:[#allocation2] sm:$0xff]
    %v2841 = vld [vmem:[#allocation2 + $0x8] sm:$0xff]
    %v2842 = vld [vmem:[%s7] sm:$0xf]
    %v2843 = vld [vmem:[%s7 + $0x4] sm:$0xf]
    %v2844 = vld [vmem:[%s7 + $0x8] sm:$0xf]
    %v2845 = vld [vmem:[%s7 + $0xc] sm:$0xf]
    %v2846 = vld [vmem:[%s7 + $0x10] sm:$0xf]
    %v2847 = vld [vmem:[%s7 + $0x14] sm:$0xf]
    %v2848 = vld [vmem:[%s7 + $0x18] sm:$0xf]
    %v2849 = vld [vmem:[%s7 + $0x1c] sm:$0xf]
    %v2850 = vld [vmem:[%s7 + $0x20] sm:$0xf]
    %v2851 = vld [vmem:[%s7 + $0x24] sm:$0xf]
    %v2852 = vld [vmem:[%s7 + $0x28] sm:$0xf]
    %v2853 = vld [vmem:[%s7 + $0x2c] sm:$0xf]
    %v2854 = vld [vmem:[%s7 + $0x30] sm:$0xf]
    %v2855 = vld [vmem:[%s7 + $0x34] sm:$0xf]
    %v2856 = vld [vmem:[%s7 + $0x38] sm:$0xf]
    %v2857 = vld [vmem:[%s7 + $0x3c] sm:$0xf]
    %v2858 = vld [vmem:[%s7 + $0x40] sm:$0xf]
    %v2859 = vld [vmem:[%s7 + $0x44] sm:$0xf]
    %v2860 = vld [vmem:[%s7 + $0x48] sm:$0xf]
    %v2861 = vld [vmem:[%s7 + $0x4c] sm:$0xf]
    %v2862 = vld [vmem:[%s7 + $0x50] sm:$0xf]
    %v2863 = vld [vmem:[%s7 + $0x54] sm:$0xf]
    %v2864 = vld [vmem:[%s7 + $0x58] sm:$0xf]
    %v2865 = vld [vmem:[%s7 + $0x5c] sm:$0xf]
    %v2866 = vld [vmem:[%s7 + $0x60] sm:$0xf]
    %v2867 = vld [vmem:[%s7 + $0x64] sm:$0xf]
    %v2868 = vld [vmem:[%s7 + $0x68] sm:$0xf]
    %v2869 = vld [vmem:[%s7 + $0x6c] sm:$0xf]
    %v2870 = vld [vmem:[%s7 + $0x70] sm:$0xf]
    %v2871 = vld [vmem:[%s7 + $0x74] sm:$0xf]
    %v2872 = vld [vmem:[%s7 + $0x78] sm:$0xf]
    %v2873 = vld [vmem:[%s7 + $0x7c] sm:$0xf]
    %v2874 = vld [vmem:[%s7 + $0x80] sm:$0xf]
    %v2875 = vld [vmem:[%s7 + $0x84] sm:$0xf]
    %v2876 = vld [vmem:[%s7 + $0x88] sm:$0xf]
    %v2877 = vld [vmem:[%s7 + $0x8c] sm:$0xf]
    %v2878 = vld [vmem:[%s7 + $0x90] sm:$0xf]
    %v2879 = vld [vmem:[%s7 + $0x94] sm:$0xf]
    %v2880 = vld [vmem:[%s7 + $0x98] sm:$0xf]
    %v2881 = vld [vmem:[%s7 + $0x9c] sm:$0xf]
    %v2882 = vld [vmem:[%s7 + $0xa0] sm:$0xf]
    %v2883 = vld [vmem:[%s7 + $0xa4] sm:$0xf]
    %v2884 = vld [vmem:[%s7 + $0xa8] sm:$0xf]
    %v2885 = vld [vmem:[%s7 + $0xac] sm:$0xf]
    %v2886 = vld [vmem:[%s7 + $0xb0] sm:$0xf]
    %v2887 = vld [vmem:[%s7 + $0xb4] sm:$0xf]
    %v2888 = vld [vmem:[%s7 + $0xb8] sm:$0xf]
    %v2889 = vld [vmem:[%s7 + $0xbc] sm:$0xf]
    %v2890 = vld [vmem:[%s7 + $0xc0] sm:$0xf]
    %v2891 = vld [vmem:[%s7 + $0xc4] sm:$0xf]
    %v2892 = vld [vmem:[%s7 + $0xc8] sm:$0xf]
    %v2893 = vld [vmem:[%s7 + $0xcc] sm:$0xf]
    %v2894 = vld [vmem:[%s7 + $0xd0] sm:$0xf]
    %v2895 = vld [vmem:[%s7 + $0xd4] sm:$0xf]
    %v2896 = vld [vmem:[%s7 + $0xd8] sm:$0xf]
    %v2897 = vld [vmem:[%s7 + $0xdc] sm:$0xf]
    %v2898 = vld [vmem:[%s7 + $0xe0] sm:$0xf]
    %v2899 = vld [vmem:[%s7 + $0xe4] sm:$0xf]
    %v2900 = vld [vmem:[%s7 + $0xe8] sm:$0xf]
    %v2901 = vld [vmem:[%s7 + $0xec] sm:$0xf]
    %v2902 = vld [vmem:[%s7 + $0xf0] sm:$0xf]
    %v2903 = vld [vmem:[%s7 + $0xf4] sm:$0xf]
    %v2904 = vld [vmem:[%s7 + $0xf8] sm:$0xf]
    %v2905 = vld [vmem:[%s7 + $0xfc] sm:$0xf]
    %v2906 = vld [vmem:[%s8] sm:$0x1]
    %v2908 = vperm.slane %v2906, 0
    %v2912 = vunpack.c.l.b16 %v2840
    %v2913 = vunpack.c.h.b16 %v2840
    %v2914 = vunpack.c.l.b16 %v2841
    %v2915 = vunpack.c.h.b16 %v2841
    %v2916 = vpack.c.b16 %v2912, %v2912
    %v2917 = vpack.c.b16 %v2913, %v2913
    %v2918 = vpack.c.b16 %v2914, %v2914
    %v2919 = vpack.c.b16 %v2915, %v2915
    %v2988 = vunpack.c.l.b16 %v2842
    %v2989 = vunpack.c.l.b16 %v2843
    %v2990 = vunpack.c.l.b16 %v2844
    %v2991 = vunpack.c.l.b16 %v2845
    %v2992 = vunpack.c.l.b16 %v2846
    %v2993 = vunpack.c.l.b16 %v2847
    %v2994 = vunpack.c.l.b16 %v2848
    %v2995 = vunpack.c.l.b16 %v2849
    %v2996 = vunpack.c.l.b16 %v2850
    %v2997 = vunpack.c.l.b16 %v2851
    %v2998 = vunpack.c.l.b16 %v2852
    %v2999 = vunpack.c.l.b16 %v2853
    %v3000 = vunpack.c.l.b16 %v2854
    %v3001 = vunpack.c.l.b16 %v2855
    %v3002 = vunpack.c.l.b16 %v2856
    %v3003 = vunpack.c.l.b16 %v2857
    %v3004 = vunpack.c.l.b16 %v2858
    %v3005 = vunpack.c.l.b16 %v2859
    %v3006 = vunpack.c.l.b16 %v2860
    %v3007 = vunpack.c.l.b16 %v2861
    %v3008 = vunpack.c.l.b16 %v2862
    %v3009 = vunpack.c.l.b16 %v2863
    %v3010 = vunpack.c.l.b16 %v2864
    %v3011 = vunpack.c.l.b16 %v2865
    %v3012 = vunpack.c.l.b16 %v2866
    %v3013 = vunpack.c.l.b16 %v2867
    %v3014 = vunpack.c.l.b16 %v2868
    %v3015 = vunpack.c.l.b16 %v2869
    %v3016 = vunpack.c.l.b16 %v2870
    %v3017 = vunpack.c.l.b16 %v2871
    %v3018 = vunpack.c.l.b16 %v2872
    %v3019 = vunpack.c.l.b16 %v2873
    %v3020 = vunpack.c.l.b16 %v2874
    %v3021 = vunpack.c.l.b16 %v2875
    %v3022 = vunpack.c.l.b16 %v2876
    %v3023 = vunpack.c.l.b16 %v2877
    %v3024 = vunpack.c.l.b16 %v2878
    %v3025 = vunpack.c.l.b16 %v2879
    %v3026 = vunpack.c.l.b16 %v2880
    %v3027 = vunpack.c.l.b16 %v2881
    %v3028 = vunpack.c.l.b16 %v2882
    %v3029 = vunpack.c.l.b16 %v2883
    %v3030 = vunpack.c.l.b16 %v2884
    %v3031 = vunpack.c.l.b16 %v2885
    %v3032 = vunpack.c.l.b16 %v2886
    %v3033 = vunpack.c.l.b16 %v2887
    %v3034 = vunpack.c.l.b16 %v2888
    %v3035 = vunpack.c.l.b16 %v2889
    %v3036 = vunpack.c.l.b16 %v2890
    %v3037 = vunpack.c.l.b16 %v2891
    %v3038 = vunpack.c.l.b16 %v2892
    %v3039 = vunpack.c.l.b16 %v2893
    %v3040 = vunpack.c.l.b16 %v2894
    %v3041 = vunpack.c.l.b16 %v2895
    %v3042 = vunpack.c.l.b16 %v2896
    %v3043 = vunpack.c.l.b16 %v2897
    %v3044 = vunpack.c.l.b16 %v2898
    %v3045 = vunpack.c.l.b16 %v2899
    %v3046 = vunpack.c.l.b16 %v2900
    %v3047 = vunpack.c.l.b16 %v2901
    %v3048 = vunpack.c.l.b16 %v2902
    %v3049 = vunpack.c.l.b16 %v2903
    %v3050 = vunpack.c.l.b16 %v2904
    %v3051 = vunpack.c.l.b16 %v2905
    %v3052 = vpack.c.b16 %v2989, %v2988
    %v3053 = vpack.c.b16 %v2991, %v2990
    %v3054 = vpack.c.b16 %v2993, %v2992
    %v3055 = vpack.c.b16 %v2995, %v2994
    %v3056 = vpack.c.b16 %v2997, %v2996
    %v3057 = vpack.c.b16 %v2999, %v2998
    %v3058 = vpack.c.b16 %v3001, %v3000
    %v3059 = vpack.c.b16 %v3003, %v3002
    %v3060 = vpack.c.b16 %v3005, %v3004
    %v3061 = vpack.c.b16 %v3007, %v3006
    %v3062 = vpack.c.b16 %v3009, %v3008
    %v3063 = vpack.c.b16 %v3011, %v3010
    %v3064 = vpack.c.b16 %v3013, %v3012
    %v3065 = vpack.c.b16 %v3015, %v3014
    %v3066 = vpack.c.b16 %v3017, %v3016
    %v3067 = vpack.c.b16 %v3019, %v3018
    %v3068 = vpack.c.b16 %v3021, %v3020
    %v3069 = vpack.c.b16 %v3023, %v3022
    %v3070 = vpack.c.b16 %v3025, %v3024
    %v3071 = vpack.c.b16 %v3027, %v3026
    %v3072 = vpack.c.b16 %v3029, %v3028
    %v3073 = vpack.c.b16 %v3031, %v3030
    %v3074 = vpack.c.b16 %v3033, %v3032
    %v3075 = vpack.c.b16 %v3035, %v3034
    %v3076 = vpack.c.b16 %v3037, %v3036
    %v3077 = vpack.c.b16 %v3039, %v3038
    %v3078 = vpack.c.b16 %v3041, %v3040
    %v3079 = vpack.c.b16 %v3043, %v3042
    %v3080 = vpack.c.b16 %v3045, %v3044
    %v3081 = vpack.c.b16 %v3047, %v3046
    %v3082 = vpack.c.b16 %v3049, %v3048
    %v3083 = vpack.c.b16 %v3051, %v3050
    %3116 = vmatpush.bf16.msra.mxu0 %v3059
    %3117 = vmatpush.bf16.msra.mxu0 %v3058
    %3118 = vmatpush.bf16.msra.mxu0 %v3057
    %3119 = vmatpush.bf16.msra.mxu0 %v3056
    %3120 = vmatpush.bf16.msra.mxu0 %v3055
    %3121 = vmatpush.bf16.msra.mxu0 %v3054
    %3122 = vmatpush.bf16.msra.mxu0 %v3053
    %3123 = vmatpush.bf16.msra.mxu0 %v3052
    %3124 = vmatmul.bf16.gmra.mxu0 %v2916
    %v3125 = vpop.f32.mrf.mxu0
    %v3126 = vadd.f32 %v2908, %v3125
    %v3127 = vpop.f32.mrf.mxu0
    %3128 = vdwg.mxu0
    %3129 = vmatpush.bf16.msra.mxu0 %v3067
    %3130 = vmatpush.bf16.msra.mxu0 %v3066
    %3131 = vmatpush.bf16.msra.mxu0 %v3065
    %3132 = vmatpush.bf16.msra.mxu0 %v3064
    %3133 = vmatpush.bf16.msra.mxu0 %v3063
    %3134 = vmatpush.bf16.msra.mxu0 %v3062
    %3135 = vmatpush.bf16.msra.mxu0 %v3061
    %3136 = vmatpush.bf16.msra.mxu0 %v3060
    %3137 = vmatmul.bf16.gmra.mxu0 %v2917
    %v3138 = vpop.f32.mrf.mxu0
    %v3139 = vadd.f32 %v3126, %v3138
    %v3140 = vpop.f32.mrf.mxu0
    %3141 = vdwg.mxu0
    %3142 = vmatpush.bf16.msra.mxu0 %v3075
    %3143 = vmatpush.bf16.msra.mxu0 %v3074
    %3144 = vmatpush.bf16.msra.mxu0 %v3073
    %3145 = vmatpush.bf16.msra.mxu0 %v3072
    %3146 = vmatpush.bf16.msra.mxu0 %v3071
    %3147 = vmatpush.bf16.msra.mxu0 %v3070
    %3148 = vmatpush.bf16.msra.mxu0 %v3069
    %3149 = vmatpush.bf16.msra.mxu0 %v3068
    %3150 = vmatmul.bf16.gmra.mxu0 %v2918
    %v3151 = vpop.f32.mrf.mxu0
    %v3152 = vadd.f32 %v3139, %v3151
    %v3153 = vpop.f32.mrf.mxu0
    %3154 = vdwg.mxu0
    %3155 = vmatpush.bf16.msra.mxu0 %v3083
    %3156 = vmatpush.bf16.msra.mxu0 %v3082
    %3157 = vmatpush.bf16.msra.mxu0 %v3081
    %3158 = vmatpush.bf16.msra.mxu0 %v3080
    %3159 = vmatpush.bf16.msra.mxu0 %v3079
    %3160 = vmatpush.bf16.msra.mxu0 %v3078
    %3161 = vmatpush.bf16.msra.mxu0 %v3077
    %3162 = vmatpush.bf16.msra.mxu0 %v3076
    %3163 = vmatmul.bf16.gmra.mxu0 %v2919
    %v3164 = vpop.f32.mrf.mxu0
    %v3165 = vadd.f32 %v3152, %v3164
    %v3166 = vpop.f32.mrf.mxu0
    %3167 = vdwg.mxu0
    %vm3168 = vcmask 130048
    %3169 = vst.msk [vmem:[%s9] sm:$0xff] %vm3168, %v3165
    // Predicated region
    $region46: #{pc_encoder_forward.1} parent=1 // pred_check
      _
    $region47: #{pc_encoder_forward.1} parent=1 // pred_check_branch
      %3171 = sbr.rel (0) target = $region49
    $region48: #{pc_encoder_forward.1} parent=1 // pred_region
      _
    $region49: #{pc_encoder_forward.1} parent=1 // pred_fallthru
      _
    // Predicated region
    $region50: #{pc_encoder_forward.1} parent=1 // pred_check
      _
    $region51: #{pc_encoder_forward.1} parent=1 // pred_check_branch
      %3173 = sbr.rel (0) target = $region53
    $region52: #{pc_encoder_forward.1} parent=1 // pred_region
      _
    $region53: #{pc_encoder_forward.1} parent=1 // pred_fallthru
      _
    %3174 = vsyncpa [#allocation4], 1
    %3175 = vsyncpa [#allocation6], 1

// kernel: pc_encoder_forward.1
$region0: #{pc_encoder_forward.1}
  #allocation0 [shape = 'u32[]', space=smem, size = 0x4, offset = 0x4, fixed_abs, tag = 'smem constant byte address 0x4 - core index']
  #allocation1 [shape = 'u32[72,128]{1,0:T(1,128)}', space=vmem, size = 0x9000, scoped, tag = 'internal scratch']
  #allocation2 [shape = 'bf16[8,512]{1,0:T(8,128)(2,1)}', space=vmem, size = 0x2000, scoped, tag = 'scratch operand']
  %s0 = inlined_call_operand.vmem [shape: f32[8,384], index: 0, kind: input, shape index: {}]
  %s1 = inlined_call_operand.vmem [shape: bf16[384,512], index: 1, kind: input, shape index: {}]
  %s2 = inlined_call_operand.vmem [shape: f32[1,512], index: 2, kind: input, shape index: {}]
  %s3 = inlined_call_operand.hbm [shape: bf16[512,512], index: 3, kind: input, shape index: {}]
  %s4 = inlined_call_operand.vmem [shape: f32[1,512], index: 4, kind: input, shape index: {}]
  %s5 = inlined_call_operand.hbm [shape: bf16[512,512], index: 5, kind: input, shape index: {}]
  %s6 = inlined_call_operand.vmem [shape: f32[1,512], index: 6, kind: input, shape index: {}]
  %s7 = inlined_call_operand.vmem [shape: bf16[512,16], index: 7, kind: input, shape index: {}]
  %s8 = inlined_call_operand.vmem [shape: f32[1,16], index: 8, kind: input, shape index: {}]
  %s9 = inlined_call_operand.vmem [shape: f32[8,16], index: 9, kind: output, shape index: {}]
  %s10 = sld [smem:[#allocation0]]
  $region54: #{pc_encoder_forward.1} parent=0
    _
  %s12 = ssub.s32 1, %s10
  %s13 = scalar_select 0, %s12, %s10
  $region1: #{pc_encoder_forward.1} parent=0
    #allocation3 [shape = 'u8[524288]{0}', space=vmem, size = 0x80000, scoped, tag = 'input window, operand 3, single buffered']
    #allocation4 [shape = 's32[1]{0}', space=sflag, size = 0x4, scoped, tag = 'scoped memory for pc_encoder_forward.1']
    #allocation5 [shape = 'u8[524288]{0}', space=vmem, size = 0x80000, scoped, tag = 'input window, operand 5, single buffered']
    #allocation6 [shape = 's32[1]{0}', space=sflag, size = 0x4, scoped, tag = 'scoped memory for pc_encoder_forward.1']
    %14 = vsyncpa [#allocation4], 0
    %15 = vsyncpa [#allocation6], 0
    // Predicated region
    $region2: #{pc_encoder_forward.1} parent=1 // pred_check
      _
    $region3: #{pc_encoder_forward.1} parent=1 // pred_check_branch
      %17 = sbr.rel (0) target = $region5
    $region4: #{pc_encoder_forward.1} parent=1 // pred_region
      _
    $region5: #{pc_encoder_forward.1} parent=1 // pred_fallthru
      _
    // Predicated region
    $region6: #{pc_encoder_forward.1} parent=1 // pred_check
      _
    $region7: #{pc_encoder_forward.1} parent=1 // pred_check_branch
      %19 = sbr.rel (0) target = $region9
    $region8: #{pc_encoder_forward.1} parent=1 // pred_region
      _
    $region9: #{pc_encoder_forward.1} parent=1 // pred_fallthru
      _
    // Predicated region
    $region10: #{pc_encoder_forward.1} parent=1 // pred_check
      _
    $region11: #{pc_encoder_forward.1} parent=1 // pred_check_branch
      %21 = sbr.rel (0) target = $region13
    $region12: #{pc_encoder_forward.1} parent=1 // pred_region
      _
    $region13: #{pc_encoder_forward.1} parent=1 // pred_fallthru
      _
    // Predicated region
    $region14: #{pc_encoder_forward.1} parent=1 // pred_check
      _
    $region15: #{pc_encoder_forward.1} parent=1 // pred_check_branch
      %23 = sbr.rel (0) target = $region17
    $region16: #{pc_encoder_forward.1} parent=1 // pred_region
      %25 = vsyncadd [#allocation4], 0
      %s26 = sshll.u32 %s3, 4
      %s27 = int_to_ptr.hbm [resolvable:$true] %s26
      %s28 = sshll.u32 [#allocation3], 4
      %s29 = int_to_ptr.vmem [resolvable:$true] %s28
      %34 = dma.hbm_to_vmem [thread:$0]  %s27, 16384, %s29, [#allocation4], 256, 256, 16
    $region17: #{pc_encoder_forward.1} parent=1 // pred_fallthru
      _
    // Predicated region
    $region18: #{pc_encoder_forward.1} parent=1 // pred_check
      _
    $region19: #{pc_encoder_forward.1} parent=1 // pred_check_branch
      %36 = sbr.rel (0) target = $region21
    $region20: #{pc_encoder_forward.1} parent=1 // pred_region
      _
    $region21: #{pc_encoder_forward.1} parent=1 // pred_fallthru
      _
    // Predicated region
    $region22: #{pc_encoder_forward.1} parent=1 // pred_check
      _
    $region23: #{pc_encoder_forward.1} parent=1 // pred_check_branch
      %38 = sbr.rel (0) target = $region25
    $region24: #{pc_encoder_forward.1} parent=1 // pred_region
      %40 = vsyncadd [#allocation6], 0
      %s41 = sshll.u32 %s5, 4
      %s42 = int_to_ptr.hbm [resolvable:$true] %s41
      %s43 = sshll.u32 [#allocation5], 4
      %s44 = int_to_ptr.vmem [resolvable:$true] %s43
      %49 = dma.hbm_to_vmem [thread:$0]  %s42, 16384, %s44, [#allocation6], 256, 256, 16
    $region25: #{pc_encoder_forward.1} parent=1 // pred_fallthru
      _
    // Predicated region
    $region26: #{pc_encoder_forward.1} parent=1 // pred_check
      _
    $region27: #{pc_encoder_forward.1} parent=1 // pred_check_branch
      %51 = sbr.rel (0) target = $region29
    $region28: #{pc_encoder_forward.1} parent=1 // pred_region
      _
    $region29: #{pc_encoder_forward.1} parent=1 // pred_fallthru
      _
    // Predicated region
    $region30: #{pc_encoder_forward.1} parent=1 // pred_check
      _
    $region31: #{pc_encoder_forward.1} parent=1 // pred_check_branch
      %53 = sbr.rel (0) target = $region33
    $region32: #{pc_encoder_forward.1} parent=1 // pred_region
      _
    $region33: #{pc_encoder_forward.1} parent=1 // pred_fallthru
      _
    // Predicated region
    $region34: #{pc_encoder_forward.1} parent=1 // pred_check
      _
    $region35: #{pc_encoder_forward.1} parent=1 // pred_check_branch
      %55 = sbr.rel (0) target = $region37
    $region36: #{pc_encoder_forward.1} parent=1 // pred_region
      _
    $region37: #{pc_encoder_forward.1} parent=1 // pred_fallthru
      _
    // Predicated region
    $region38: #{pc_encoder_forward.1} parent=1 // pred_check
      _
    $region39: #{pc_encoder_forward.1} parent=1 // pred_check_branch
      %57 = sbr.rel (0) target = $region41
    $region40: #{pc_encoder_forward.1} parent=1 // pred_region
      %59 = dma.done [#allocation4], 16384
    $region41: #{pc_encoder_forward.1} parent=1 // pred_fallthru
      _
    // Predicated region
    $region42: #{pc_encoder_forward.1} parent=1 // pred_check
      _
    $region43: #{pc_encoder_forward.1} parent=1 // pred_check_branch
      %61 = sbr.rel (0) target = $region45
    $region44: #{pc_encoder_forward.1} parent=1 // pred_region
      %63 = dma.done [#allocation6], 16384
    $region45: #{pc_encoder_forward.1} parent=1 // pred_fallthru
      _
    %v64 = vld [vmem:[%s0] sm:$0xff]
    %v65 = vld [vmem:[%s0 + $0x8] sm:$0xff]
    %v66 = vld [vmem:[%s0 + $0x10] sm:$0xff]
    %v67 = vpack.c.bf16 %v64, %v64
    %v68 = vpack.c.bf16 %v65, %v65
    %v69 = vpack.c.bf16 %v66, %v66
    %v70 = vld [vmem:[%s1] sm:$0xff]
    %v71 = vld [vmem:[%s1 + $0x8] sm:$0xff]
    %v72 = vld [vmem:[%s1 + $0x10] sm:$0xff]
    %v73 = vld [vmem:[%s1 + $0x18] sm:$0xff]
    %v74 = vld [vmem:[%s1 + $0x20] sm:$0xff]
    %v75 = vld [vmem:[%s1 + $0x28] sm:$0xff]
    %v76 = vld [vmem:[%s1 + $0x30] sm:$0xff]
    %v77 = vld [vmem:[%s1 + $0x38] sm:$0xff]
    %v78 = vld [vmem:[%s1 + $0x40] sm:$0xff]
    %v79 = vld [vmem:[%s1 + $0x48] sm:$0xff]
    %v80 = vld [vmem:[%s1 + $0x50] sm:$0xff]
    %v81 = vld [vmem:[%s1 + $0x58] sm:$0xff]
    %v82 = vld [vmem:[%s1 + $0x60] sm:$0xff]
    %v83 = vld [vmem:[%s1 + $0x68] sm:$0xff]
    %v84 = vld [vmem:[%s1 + $0x70] sm:$0xff]
    %v85 = vld [vmem:[%s1 + $0x78] sm:$0xff]
    %v86 = vld [vmem:[%s1 + $0x80] sm:$0xff]
    %v87 = vld [vmem:[%s1 + $0x88] sm:$0xff]
    %v88 = vld [vmem:[%s1 + $0x90] sm:$0xff]
    %v89 = vld [vmem:[%s1 + $0x98] sm:$0xff]
    %v90 = vld [vmem:[%s1 + $0xa0] sm:$0xff]
    %v91 = vld [vmem:[%s1 + $0xa8] sm:$0xff]
    %v92 = vld [vmem:[%s1 + $0xb0] sm:$0xff]
    %v93 = vld [vmem:[%s1 + $0xb8] sm:$0xff]
    %v94 = vld [vmem:[%s1 + $0xc0] sm:$0xff]
    %v95 = vld [vmem:[%s1 + $0xc8] sm:$0xff]
    %v96 = vld [vmem:[%s1 + $0xd0] sm:$0xff]
    %v97 = vld [vmem:[%s1 + $0xd8] sm:$0xff]
    %v98 = vld [vmem:[%s1 + $0xe0] sm:$0xff]
    %v99 = vld [vmem:[%s1 + $0xe8] sm:$0xff]
    %v100 = vld [vmem:[%s1 + $0xf0] sm:$0xff]
    %v101 = vld [vmem:[%s1 + $0xf8] sm:$0xff]
    %v102 = vld [vmem:[%s1 + $0x100] sm:$0xff]
    %v103 = vld [vmem:[%s1 + $0x108] sm:$0xff]
    %v104 = vld [vmem:[%s1 + $0x110] sm:$0xff]
    %v105 = vld [vmem:[%s1 + $0x118] sm:$0xff]
    %v106 = vld [vmem:[%s1 + $0x120] sm:$0xff]
    %v107 = vld [vmem:[%s1 + $0x128] sm:$0xff]
    %v108 = vld [vmem:[%s1 + $0x130] sm:$0xff]
    %v109 = vld [vmem:[%s1 + $0x138] sm:$0xff]
    %v110 = vld [vmem:[%s1 + $0x140] sm:$0xff]
    %v111 = vld [vmem:[%s1 + $0x148] sm:$0xff]
    %v112 = vld [vmem:[%s1 + $0x150] sm:$0xff]
    %v113 = vld [vmem:[%s1 + $0x158] sm:$0xff]
    %v114 = vld [vmem:[%s1 + $0x160] sm:$0xff]
    %v115 = vld [vmem:[%s1 + $0x168] sm:$0xff]
    %v116 = vld [vmem:[%s1 + $0x170] sm:$0xff]
    %v117 = vld [vmem:[%s1 + $0x178] sm:$0xff]
    %v118 = vld [vmem:[%s1 + $0x180] sm:$0xff]
    %v119 = vld [vmem:[%s1 + $0x188] sm:$0xff]
    %v120 = vld [vmem:[%s1 + $0x190] sm:$0xff]
    %v121 = vld [vmem:[%s1 + $0x198] sm:$0xff]
    %v122 = vld [vmem:[%s1 + $0x1a0] sm:$0xff]
    %v123 = vld [vmem:[%s1 + $0x1a8] sm:$0xff]
    %v124 = vld [vmem:[%s1 + $0x1b0] sm:$0xff]
    %v125 = vld [vmem:[%s1 + $0x1b8] sm:$0xff]
    %v126 = vld [vmem:[%s1 + $0x1c0] sm:$0xff]
    %v127 = vld [vmem:[%s1 + $0x1c8] sm:$0xff]
    %v128 = vld [vmem:[%s1 + $0x1d0] sm:$0xff]
    %v129 = vld [vmem:[%s1 + $0x1d8] sm:$0xff]
    %v130 = vld [vmem:[%s1 + $0x1e0] sm:$0xff]
    %v131 = vld [vmem:[%s1 + $0x1e8] sm:$0xff]
    %v132 = vld [vmem:[%s1 + $0x1f0] sm:$0xff]
    %v133 = vld [vmem:[%s1 + $0x1f8] sm:$0xff]
    %v134 = vld [vmem:[%s1 + $0x200] sm:$0xff]
    %v135 = vld [vmem:[%s1 + $0x208] sm:$0xff]
    %v136 = vld [vmem:[%s1 + $0x210] sm:$0xff]
    %v137 = vld [vmem:[%s1 + $0x218] sm:$0xff]
    %v138 = vld [vmem:[%s1 + $0x220] sm:$0xff]
    %v139 = vld [vmem:[%s1 + $0x228] sm:$0xff]
    %v140 = vld [vmem:[%s1 + $0x230] sm:$0xff]
    %v141 = vld [vmem:[%s1 + $0x238] sm:$0xff]
    %v142 = vld [vmem:[%s1 + $0x240] sm:$0xff]
    %v143 = vld [vmem:[%s1 + $0x248] sm:$0xff]
    %v144 = vld [vmem:[%s1 + $0x250] sm:$0xff]
    %v145 = vld [vmem:[%s1 + $0x258] sm:$0xff]
    %v146 = vld [vmem:[%s1 + $0x260] sm:$0xff]
    %v147 = vld [vmem:[%s1 + $0x268] sm:$0xff]
    %v148 = vld [vmem:[%s1 + $0x270] sm:$0xff]
    %v149 = vld [vmem:[%s1 + $0x278] sm:$0xff]
    %v150 = vld [vmem:[%s1 + $0x280] sm:$0xff]
    %v151 = vld [vmem:[%s1 + $0x288] sm:$0xff]
    %v152 = vld [vmem:[%s1 + $0x290] sm:$0xff]
    %v153 = vld [vmem:[%s1 + $0x298] sm:$0xff]
    %v154 = vld [vmem:[%s1 + $0x2a0] sm:$0xff]
    %v155 = vld [vmem:[%s1 + $0x2a8] sm:$0xff]
    %v156 = vld [vmem:[%s1 + $0x2b0] sm:$0xff]
    %v157 = vld [vmem:[%s1 + $0x2b8] sm:$0xff]
    %v158 = vld [vmem:[%s1 + $0x2c0] sm:$0xff]
    %v159 = vld [vmem:[%s1 + $0x2c8] sm:$0xff]
    %v160 = vld [vmem:[%s1 + $0x2d0] sm:$0xff]
    %v161 = vld [vmem:[%s1 + $0x2d8] sm:$0xff]
    %v162 = vld [vmem:[%s1 + $0x2e0] sm:$0xff]
    %v163 = vld [vmem:[%s1 + $0x2e8] sm:$0xff]
    %v164 = vld [vmem:[%s1 + $0x2f0] sm:$0xff]
    %v165 = vld [vmem:[%s1 + $0x2f8] sm:$0xff]
    %v166 = vld [vmem:[%s2] sm:$0xf]
    %v168 = vperm.slane %v166, 0
    %v169 = vperm.slane %v166, 1
    %v170 = vperm.slane %v166, 2
    %v171 = vperm.slane %v166, 3
    %v272 = vunpack.c.l.b16 %v70
    %v273 = vunpack.c.h.b16 %v70
    %v274 = vunpack.c.l.b16 %v71
    %v275 = vunpack.c.h.b16 %v71
    %v276 = vunpack.c.l.b16 %v72
    %v277 = vunpack.c.h.b16 %v72
    %v278 = vunpack.c.l.b16 %v73
    %v279 = vunpack.c.h.b16 %v73
    %v280 = vunpack.c.l.b16 %v74
    %v281 = vunpack.c.h.b16 %v74
    %v282 = vunpack.c.l.b16 %v75
    %v283 = vunpack.c.h.b16 %v75
    %v284 = vunpack.c.l.b16 %v76
    %v285 = vunpack.c.h.b16 %v76
    %v286 = vunpack.c.l.b16 %v77
    %v287 = vunpack.c.h.b16 %v77
    %v288 = vunpack.c.l.b16 %v78
    %v289 = vunpack.c.h.b16 %v78
    %v290 = vunpack.c.l.b16 %v79
    %v291 = vunpack.c.h.b16 %v79
    %v292 = vunpack.c.l.b16 %v80
    %v293 = vunpack.c.h.b16 %v80
    %v294 = vunpack.c.l.b16 %v81
    %v295 = vunpack.c.h.b16 %v81
    %v296 = vunpack.c.l.b16 %v82
    %v297 = vunpack.c.h.b16 %v82
    %v298 = vunpack.c.l.b16 %v83
    %v299 = vunpack.c.h.b16 %v83
    %v300 = vunpack.c.l.b16 %v84
    %v301 = vunpack.c.h.b16 %v84
    %v302 = vunpack.c.l.b16 %v85
    %v303 = vunpack.c.h.b16 %v85
    %v304 = vunpack.c.l.b16 %v86
    %v305 = vunpack.c.h.b16 %v86
    %v306 = vunpack.c.l.b16 %v87
    %v307 = vunpack.c.h.b16 %v87
    %v308 = vunpack.c.l.b16 %v88
    %v309 = vunpack.c.h.b16 %v88
    %v310 = vunpack.c.l.b16 %v89
    %v311 = vunpack.c.h.b16 %v89
    %v312 = vunpack.c.l.b16 %v90
    %v313 = vunpack.c.h.b16 %v90
    %v314 = vunpack.c.l.b16 %v91
    %v315 = vunpack.c.h.b16 %v91
    %v316 = vunpack.c.l.b16 %v92
    %v317 = vunpack.c.h.b16 %v92
    %v318 = vunpack.c.l.b16 %v93
    %v319 = vunpack.c.h.b16 %v93
    %v320 = vunpack.c.l.b16 %v94
    %v321 = vunpack.c.h.b16 %v94
    %v322 = vunpack.c.l.b16 %v95
    %v323 = vunpack.c.h.b16 %v95
    %v324 = vunpack.c.l.b16 %v96
    %v325 = vunpack.c.h.b16 %v96
    %v326 = vunpack.c.l.b16 %v97
    %v327 = vunpack.c.h.b16 %v97
    %v328 = vunpack.c.l.b16 %v98
    %v329 = vunpack.c.h.b16 %v98
    %v330 = vunpack.c.l.b16 %v99
    %v331 = vunpack.c.h.b16 %v99
    %v332 = vunpack.c.l.b16 %v100
    %v333 = vunpack.c.h.b16 %v100
    %v334 = vunpack.c.l.b16 %v101
    %v335 = vunpack.c.h.b16 %v101
    %v336 = vunpack.c.l.b16 %v102
    %v337 = vunpack.c.h.b16 %v102
    %v338 = vunpack.c.l.b16 %v103
    %v339 = vunpack.c.h.b16 %v103
    %v340 = vunpack.c.l.b16 %v104
    %v341 = vunpack.c.h.b16 %v104
    %v342 = vunpack.c.l.b16 %v105
    %v343 = vunpack.c.h.b16 %v105
    %v344 = vunpack.c.l.b16 %v106
    %v345 = vunpack.c.h.b16 %v106
    %v346 = vunpack.c.l.b16 %v107
    %v347 = vunpack.c.h.b16 %v107
    %v348 = vunpack.c.l.b16 %v108
    %v349 = vunpack.c.h.b16 %v108
    %v350 = vunpack.c.l.b16 %v109
    %v351 = vunpack.c.h.b16 %v109
    %v352 = vunpack.c.l.b16 %v110
    %v353 = vunpack.c.h.b16 %v110
    %v354 = vunpack.c.l.b16 %v111
    %v355 = vunpack.c.h.b16 %v111
    %v356 = vunpack.c.l.b16 %v112
    %v357 = vunpack.c.h.b16 %v112
    %v358 = vunpack.c.l.b16 %v113
    %v359 = vunpack.c.h.b16 %v113
    %v360 = vunpack.c.l.b16 %v114
    %v361 = vunpack.c.h.b16 %v114
    %v362 = vunpack.c.l.b16 %v115
    %v363 = vunpack.c.h.b16 %v115
    %v364 = vunpack.c.l.b16 %v116
    %v365 = vunpack.c.h.b16 %v116
    %v366 = vunpack.c.l.b16 %v117
    %v367 = vunpack.c.h.b16 %v117
    %v368 = vunpack.c.l.b16 %v118
    %v369 = vunpack.c.h.b16 %v118
    %v370 = vunpack.c.l.b16 %v119
    %v371 = vunpack.c.h.b16 %v119
    %v372 = vunpack.c.l.b16 %v120
    %v373 = vunpack.c.h.b16 %v120
    %v374 = vunpack.c.l.b16 %v121
    %v375 = vunpack.c.h.b16 %v121
    %v376 = vunpack.c.l.b16 %v122
    %v377 = vunpack.c.h.b16 %v122
    %v378 = vunpack.c.l.b16 %v123
    %v379 = vunpack.c.h.b16 %v123
    %v380 = vunpack.c.l.b16 %v124
    %v381 = vunpack.c.h.b16 %v124
    %v382 = vunpack.c.l.b16 %v125
    %v383 = vunpack.c.h.b16 %v125
    %v384 = vunpack.c.l.b16 %v126
    %v385 = vunpack.c.h.b16 %v126
    %v386 = vunpack.c.l.b16 %v127
    %v387 = vunpack.c.h.b16 %v127
    %v388 = vunpack.c.l.b16 %v128
    %v389 = vunpack.c.h.b16 %v128
    %v390 = vunpack.c.l.b16 %v129
    %v391 = vunpack.c.h.b16 %v129
    %v392 = vunpack.c.l.b16 %v130
    %v393 = vunpack.c.h.b16 %v130
    %v394 = vunpack.c.l.b16 %v131
    %v395 = vunpack.c.h.b16 %v131
    %v396 = vunpack.c.l.b16 %v132
    %v397 = vunpack.c.h.b16 %v132
    %v398 = vunpack.c.l.b16 %v133
    %v399 = vunpack.c.h.b16 %v133
    %v400 = vunpack.c.l.b16 %v134
    %v401 = vunpack.c.h.b16 %v134
    %v402 = vunpack.c.l.b16 %v135
    %v403 = vunpack.c.h.b16 %v135
    %v404 = vunpack.c.l.b16 %v136
    %v405 = vunpack.c.h.b16 %v136
    %v406 = vunpack.c.l.b16 %v137
    %v407 = vunpack.c.h.b16 %v137
    %v408 = vunpack.c.l.b16 %v138
    %v409 = vunpack.c.h.b16 %v138
    %v410 = vunpack.c.l.b16 %v139
    %v411 = vunpack.c.h.b16 %v139
    %v412 = vunpack.c.l.b16 %v140
    %v413 = vunpack.c.h.b16 %v140
    %v414 = vunpack.c.l.b16 %v141
    %v415 = vunpack.c.h.b16 %v141
    %v416 = vunpack.c.l.b16 %v142
    %v417 = vunpack.c.h.b16 %v142
    %v418 = vunpack.c.l.b16 %v143
    %v419 = vunpack.c.h.b16 %v143
    %v420 = vunpack.c.l.b16 %v144
    %v421 = vunpack.c.h.b16 %v144
    %v422 = vunpack.c.l.b16 %v145
    %v423 = vunpack.c.h.b16 %v145
    %v424 = vunpack.c.l.b16 %v146
    %v425 = vunpack.c.h.b16 %v146
    %v426 = vunpack.c.l.b16 %v147
    %v427 = vunpack.c.h.b16 %v147
    %v428 = vunpack.c.l.b16 %v148
    %v429 = vunpack.c.h.b16 %v148
    %v430 = vunpack.c.l.b16 %v149
    %v431 = vunpack.c.h.b16 %v149
    %v432 = vunpack.c.l.b16 %v150
    %v433 = vunpack.c.h.b16 %v150
    %v434 = vunpack.c.l.b16 %v151
    %v435 = vunpack.c.h.b16 %v151
    %v436 = vunpack.c.l.b16 %v152
    %v437 = vunpack.c.h.b16 %v152
    %v438 = vunpack.c.l.b16 %v153
    %v439 = vunpack.c.h.b16 %v153
    %v440 = vunpack.c.l.b16 %v154
    %v441 = vunpack.c.h.b16 %v154
    %v442 = vunpack.c.l.b16 %v155
    %v443 = vunpack.c.h.b16 %v155
    %v444 = vunpack.c.l.b16 %v156
    %v445 = vunpack.c.h.b16 %v156
    %v446 = vunpack.c.l.b16 %v157
    %v447 = vunpack.c.h.b16 %v157
    %v448 = vunpack.c.l.b16 %v158
    %v449 = vunpack.c.h.b16 %v158
    %v450 = vunpack.c.l.b16 %v159
    %v451 = vunpack.c.h.b16 %v159
    %v452 = vunpack.c.l.b16 %v160
    %v453 = vunpack.c.h.b16 %v160
    %v454 = vunpack.c.l.b16 %v161
    %v455 = vunpack.c.h.b16 %v161
    %v456 = vunpack.c.l.b16 %v162
    %v457 = vunpack.c.h.b16 %v162
    %v458 = vunpack.c.l.b16 %v163
    %v459 = vunpack.c.h.b16 %v163
    %v460 = vunpack.c.l.b16 %v164
    %v461 = vunpack.c.h.b16 %v164
    %v462 = vunpack.c.l.b16 %v165
    %v463 = vunpack.c.h.b16 %v165
    %v464 = vpack.c.b16 %v276, %v272
    %v465 = vpack.c.b16 %v277, %v273
    %v466 = vpack.c.b16 %v278, %v274
    %v467 = vpack.c.b16 %v279, %v275
    %v468 = vpack.c.b16 %v284, %v280
    %v469 = vpack.c.b16 %v285, %v281
    %v470 = vpack.c.b16 %v286, %v282
    %v471 = vpack.c.b16 %v287, %v283
    %v472 = vpack.c.b16 %v292, %v288
    %v473 = vpack.c.b16 %v293, %v289
    %v474 = vpack.c.b16 %v294, %v290
    %v475 = vpack.c.b16 %v295, %v291
    %v476 = vpack.c.b16 %v300, %v296
    %v477 = vpack.c.b16 %v301, %v297
    %v478 = vpack.c.b16 %v302, %v298
    %v479 = vpack.c.b16 %v303, %v299
    %v480 = vpack.c.b16 %v308, %v304
    %v481 = vpack.c.b16 %v309, %v305
    %v482 = vpack.c.b16 %v310, %v306
    %v483 = vpack.c.b16 %v311, %v307
    %v484 = vpack.c.b16 %v316, %v312
    %v485 = vpack.c.b16 %v317, %v313
    %v486 = vpack.c.b16 %v318, %v314
    %v487 = vpack.c.b16 %v319, %v315
    %v488 = vpack.c.b16 %v324, %v320
    %v489 = vpack.c.b16 %v325, %v321
    %v490 = vpack.c.b16 %v326, %v322
    %v491 = vpack.c.b16 %v327, %v323
    %v492 = vpack.c.b16 %v332, %v328
    %v493 = vpack.c.b16 %v333, %v329
    %v494 = vpack.c.b16 %v334, %v330
    %v495 = vpack.c.b16 %v335, %v331
    %v496 = vpack.c.b16 %v340, %v336
    %v497 = vpack.c.b16 %v341, %v337
    %v498 = vpack.c.b16 %v342, %v338
    %v499 = vpack.c.b16 %v343, %v339
    %v500 = vpack.c.b16 %v348, %v344
    %v501 = vpack.c.b16 %v349, %v345
    %v502 = vpack.c.b16 %v350, %v346
    %v503 = vpack.c.b16 %v351, %v347
    %v504 = vpack.c.b16 %v356, %v352
    %v505 = vpack.c.b16 %v357, %v353
    %v506 = vpack.c.b16 %v358, %v354
    %v507 = vpack.c.b16 %v359, %v355
    %v508 = vpack.c.b16 %v364, %v360
    %v509 = vpack.c.b16 %v365, %v361
    %v510 = vpack.c.b16 %v366, %v362
    %v511 = vpack.c.b16 %v367, %v363
    %v512 = vpack.c.b16 %v372, %v368
    %v513 = vpack.c.b16 %v373, %v369
    %v514 = vpack.c.b16 %v374, %v370
    %v515 = vpack.c.b16 %v375, %v371
    %v516 = vpack.c.b16 %v380, %v376
    %v517 = vpack.c.b16 %v381, %v377
    %v518 = vpack.c.b16 %v382, %v378
    %v519 = vpack.c.b16 %v383, %v379
    %v520 = vpack.c.b16 %v388, %v384
    %v521 = vpack.c.b16 %v389, %v385
    %v522 = vpack.c.b16 %v390, %v386
    %v523 = vpack.c.b16 %v391, %v387
    %v524 = vpack.c.b16 %v396, %v392
    %v525 = vpack.c.b16 %v397, %v393
    %v526 = vpack.c.b16 %v398, %v394
    %v527 = vpack.c.b16 %v399, %v395
    %v528 = vpack.c.b16 %v404, %v400
    %v529 = vpack.c.b16 %v405, %v401
    %v530 = vpack.c.b16 %v406, %v402
    %v531 = vpack.c.b16 %v407, %v403
    %v532 = vpack.c.b16 %v412, %v408
    %v533 = vpack.c.b16 %v413, %v409
    %v534 = vpack.c.b16 %v414, %v410
    %v535 = vpack.c.b16 %v415, %v411
    %v536 = vpack.c.b16 %v420, %v416
    %v537 = vpack.c.b16 %v421, %v417
    %v538 = vpack.c.b16 %v422, %v418
    %v539 = vpack.c.b16 %v423, %v419
    %v540 = vpack.c.b16 %v428, %v424
    %v541 = vpack.c.b16 %v429, %v425
    %v542 = vpack.c.b16 %v430, %v426
    %v543 = vpack.c.b16 %v431, %v427
    %v544 = vpack.c.b16 %v436, %v432
    %v545 = vpack.c.b16 %v437, %v433
    %v546 = vpack.c.b16 %v438, %v434
    %v547 = vpack.c.b16 %v439, %v435
    %v548 = vpack.c.b16 %v444, %v440
    %v549 = vpack.c.b16 %v445, %v441
    %v550 = vpack.c.b16 %v446, %v442
    %v551 = vpack.c.b16 %v447, %v443
    %v552 = vpack.c.b16 %v452, %v448
    %v553 = vpack.c.b16 %v453, %v449
    %v554 = vpack.c.b16 %v454, %v450
    %v555 = vpack.c.b16 %v455, %v451
    %v556 = vpack.c.b16 %v460, %v456
    %v557 = vpack.c.b16 %v461, %v457
    %v558 = vpack.c.b16 %v462, %v458
    %v559 = vpack.c.b16 %v463, %v459
    %656 = vmatpush.bf16.msra.mxu0 %v492
    %657 = vmatpush.bf16.msra.mxu0 %v488
    %658 = vmatpush.bf16.msra.mxu0 %v484
    %659 = vmatpush.bf16.msra.mxu0 %v480
    %660 = vmatpush.bf16.msra.mxu0 %v476
    %661 = vmatpush.bf16.msra.mxu0 %v472
    %662 = vmatpush.bf16.msra.mxu0 %v468
    %663 = vmatpush.bf16.msra.mxu0 %v464
    %664 = vmatmul.bf16.gmra.mxu0 %v67
    %v665 = vpop.f32.mrf.mxu0
    %v666 = vadd.f32 %v168, %v665
    %v667 = vpop.f32.mrf.mxu0
    %668 = vdwg.mxu0
    %669 = vmatpush.bf16.msra.mxu0 %v524
    %670 = vmatpush.bf16.msra.mxu0 %v520
    %671 = vmatpush.bf16.msra.mxu0 %v516
    %672 = vmatpush.bf16.msra.mxu0 %v512
    %673 = vmatpush.bf16.msra.mxu0 %v508
    %674 = vmatpush.bf16.msra.mxu0 %v504
    %675 = vmatpush.bf16.msra.mxu0 %v500
    %676 = vmatpush.bf16.msra.mxu0 %v496
    %677 = vmatmul.bf16.gmra.mxu0 %v68
    %v678 = vpop.f32.mrf.mxu0
    %v679 = vadd.f32 %v666, %v678
    %v680 = vpop.f32.mrf.mxu0
    %681 = vdwg.mxu0
    %682 = vmatpush.bf16.msra.mxu0 %v556
    %683 = vmatpush.bf16.msra.mxu0 %v552
    %684 = vmatpush.bf16.msra.mxu0 %v548
    %685 = vmatpush.bf16.msra.mxu0 %v544
    %686 = vmatpush.bf16.msra.mxu0 %v540
    %687 = vmatpush.bf16.msra.mxu0 %v536
    %688 = vmatpush.bf16.msra.mxu0 %v532
    %689 = vmatpush.bf16.msra.mxu0 %v528
    %690 = vmatmul.bf16.gmra.mxu0 %v69
    %v691 = vpop.f32.mrf.mxu0
    %v692 = vadd.f32 %v679, %v691
    %v693 = vpop.f32.mrf.mxu0
    %694 = vdwg.mxu0
    %695 = vmatpush.bf16.msra.mxu0 %v493
    %696 = vmatpush.bf16.msra.mxu0 %v489
    %697 = vmatpush.bf16.msra.mxu0 %v485
    %698 = vmatpush.bf16.msra.mxu0 %v481
    %699 = vmatpush.bf16.msra.mxu0 %v477
    %700 = vmatpush.bf16.msra.mxu0 %v473
    %701 = vmatpush.bf16.msra.mxu0 %v469
    %702 = vmatpush.bf16.msra.mxu0 %v465
    %703 = vmatmul.bf16.gmra.mxu0 %v67
    %v704 = vpop.f32.mrf.mxu0
    %v705 = vadd.f32 %v169, %v704
    %v706 = vpop.f32.mrf.mxu0
    %707 = vdwg.mxu0
    %708 = vmatpush.bf16.msra.mxu0 %v525
    %709 = vmatpush.bf16.msra.mxu0 %v521
    %710 = vmatpush.bf16.msra.mxu0 %v517
    %711 = vmatpush.bf16.msra.mxu0 %v513
    %712 = vmatpush.bf16.msra.mxu0 %v509
    %713 = vmatpush.bf16.msra.mxu0 %v505
    %714 = vmatpush.bf16.msra.mxu0 %v501
    %715 = vmatpush.bf16.msra.mxu0 %v497
    %716 = vmatmul.bf16.gmra.mxu0 %v68
    %v717 = vpop.f32.mrf.mxu0
    %v718 = vadd.f32 %v705, %v717
    %v719 = vpop.f32.mrf.mxu0
    %720 = vdwg.mxu0
    %721 = vmatpush.bf16.msra.mxu0 %v557
    %722 = vmatpush.bf16.msra.mxu0 %v553
    %723 = vmatpush.bf16.msra.mxu0 %v549
    %724 = vmatpush.bf16.msra.mxu0 %v545
    %725 = vmatpush.bf16.msra.mxu0 %v541
    %726 = vmatpush.bf16.msra.mxu0 %v537
    %727 = vmatpush.bf16.msra.mxu0 %v533
    %728 = vmatpush.bf16.msra.mxu0 %v529
    %729 = vmatmul.bf16.gmra.mxu0 %v69
    %v730 = vpop.f32.mrf.mxu0
    %v731 = vadd.f32 %v718, %v730
    %v732 = vpop.f32.mrf.mxu0
    %733 = vdwg.mxu0
    %734 = vmatpush.bf16.msra.mxu0 %v494
    %735 = vmatpush.bf16.msra.mxu0 %v490
    %736 = vmatpush.bf16.msra.mxu0 %v486
    %737 = vmatpush.bf16.msra.mxu0 %v482
    %738 = vmatpush.bf16.msra.mxu0 %v478
    %739 = vmatpush.bf16.msra.mxu0 %v474
    %740 = vmatpush.bf16.msra.mxu0 %v470
    %741 = vmatpush.bf16.msra.mxu0 %v466
    %742 = vmatmul.bf16.gmra.mxu0 %v67
    %v743 = vpop.f32.mrf.mxu0
    %v744 = vadd.f32 %v170, %v743
    %v745 = vpop.f32.mrf.mxu0
    %746 = vdwg.mxu0
    %747 = vmatpush.bf16.msra.mxu0 %v526
    %748 = vmatpush.bf16.msra.mxu0 %v522
    %749 = vmatpush.bf16.msra.mxu0 %v518
    %750 = vmatpush.bf16.msra.mxu0 %v514
    %751 = vmatpush.bf16.msra.mxu0 %v510
    %752 = vmatpush.bf16.msra.mxu0 %v506
    %753 = vmatpush.bf16.msra.mxu0 %v502
    %754 = vmatpush.bf16.msra.mxu0 %v498
    %755 = vmatmul.bf16.gmra.mxu0 %v68
    %v756 = vpop.f32.mrf.mxu0
    %v757 = vadd.f32 %v744, %v756
    %v758 = vpop.f32.mrf.mxu0
    %759 = vdwg.mxu0
    %760 = vmatpush.bf16.msra.mxu0 %v558
    %761 = vmatpush.bf16.msra.mxu0 %v554
    %762 = vmatpush.bf16.msra.mxu0 %v550
    %763 = vmatpush.bf16.msra.mxu0 %v546
    %764 = vmatpush.bf16.msra.mxu0 %v542
    %765 = vmatpush.bf16.msra.mxu0 %v538
    %766 = vmatpush.bf16.msra.mxu0 %v534
    %767 = vmatpush.bf16.msra.mxu0 %v530
    %768 = vmatmul.bf16.gmra.mxu0 %v69
    %v769 = vpop.f32.mrf.mxu0
    %v770 = vadd.f32 %v757, %v769
    %v771 = vpop.f32.mrf.mxu0
    %772 = vdwg.mxu0
    %773 = vmatpush.bf16.msra.mxu0 %v495
    %774 = vmatpush.bf16.msra.mxu0 %v491
    %775 = vmatpush.bf16.msra.mxu0 %v487
    %776 = vmatpush.bf16.msra.mxu0 %v483
    %777 = vmatpush.bf16.msra.mxu0 %v479
    %778 = vmatpush.bf16.msra.mxu0 %v475
    %779 = vmatpush.bf16.msra.mxu0 %v471
    %780 = vmatpush.bf16.msra.mxu0 %v467
    %781 = vmatmul.bf16.gmra.mxu0 %v67
    %v782 = vpop.f32.mrf.mxu0
    %v783 = vadd.f32 %v171, %v782
    %v784 = vpop.f32.mrf.mxu0
    %785 = vdwg.mxu0
    %786 = vmatpush.bf16.msra.mxu0 %v527
    %787 = vmatpush.bf16.msra.mxu0 %v523
    %788 = vmatpush.bf16.msra.mxu0 %v519
    %789 = vmatpush.bf16.msra.mxu0 %v515
    %790 = vmatpush.bf16.msra.mxu0 %v511
    %791 = vmatpush.bf16.msra.mxu0 %v507
    %792 = vmatpush.bf16.msra.mxu0 %v503
    %793 = vmatpush.bf16.msra.mxu0 %v499
    %794 = vmatmul.bf16.gmra.mxu0 %v68
    %v795 = vpop.f32.mrf.mxu0
    %v796 = vadd.f32 %v783, %v795
    %v797 = vpop.f32.mrf.mxu0
    %798 = vdwg.mxu0
    %799 = vmatpush.bf16.msra.mxu0 %v559
    %800 = vmatpush.bf16.msra.mxu0 %v555
    %801 = vmatpush.bf16.msra.mxu0 %v551
    %802 = vmatpush.bf16.msra.mxu0 %v547
    %803 = vmatpush.bf16.msra.mxu0 %v543
    %804 = vmatpush.bf16.msra.mxu0 %v539
    %805 = vmatpush.bf16.msra.mxu0 %v535
    %806 = vmatpush.bf16.msra.mxu0 %v531
    %807 = vmatmul.bf16.gmra.mxu0 %v69
    %v808 = vpop.f32.mrf.mxu0
    %v809 = vadd.f32 %v796, %v808
    %v810 = vpop.f32.mrf.mxu0
    %811 = vdwg.mxu0
    %v812 = vmax.f32 %v692, 0.0
    %v813 = vmax.f32 %v731, 0.0
    %v814 = vmax.f32 %v770, 0.0
    %v815 = vmax.f32 %v809, 0.0
    %v816 = vpack.c.bf16 %v813, %v812
    %v817 = vpack.c.bf16 %v815, %v814
    %818 = vst [vmem:[#allocation2] sm:$0xff] %v816
    %819 = vst [vmem:[#allocation2 + $0x8] sm:$0xff] %v817
    %v820 = vld [vmem:[#allocation2] sm:$0xff]
    %v821 = vld [vmem:[#allocation2 + $0x8] sm:$0xff]
    %v822 = vld [vmem:[#allocation3] sm:$0xff]
    %v823 = vld [vmem:[#allocation3 + $0x8] sm:$0xff]
    %v824 = vld [vmem:[#allocation3 + $0x10] sm:$0xff]
    %v825 = vld [vmem:[#allocation3 + $0x18] sm:$0xff]
    %v826 = vld [vmem:[#allocation3 + $0x20] sm:$0xff]
    %v827 = vld [vmem:[#allocation3 + $0x28] sm:$0xff]
    %v828 = vld [vmem:[#allocation3 + $0x30] sm:$0xff]
    %v829 = vld [vmem:[#allocation3 + $0x38] sm:$0xff]
    %v830 = vld [vmem:[#allocation3 + $0x40] sm:$0xff]
    %v831 = vld [vmem:[#allocation3 + $0x48] sm:$0xff]
    %v832 = vld [vmem:[#allocation3 + $0x50] sm:$0xff]
    %v833 = vld [vmem:[#allocation3 + $0x58] sm:$0xff]
    %v834 = vld [vmem:[#allocation3 + $0x60] sm:$0xff]
    %v835 = vld [vmem:[#allocation3 + $0x68] sm:$0xff]
    %v836 = vld [vmem:[#allocation3 + $0x70] sm:$0xff]
    %v837 = vld [vmem:[#allocation3 + $0x78] sm:$0xff]
    %v838 = vld [vmem:[#allocation3 + $0x80] sm:$0xff]
    %v839 = vld [vmem:[#allocation3 + $0x88] sm:$0xff]
    %v840 = vld [vmem:[#allocation3 + $0x90] sm:$0xff]
    %v841 = vld [vmem:[#allocation3 + $0x98] sm:$0xff]
    %v842 = vld [vmem:[#allocation3 + $0xa0] sm:$0xff]
    %v843 = vld [vmem:[#allocation3 + $0xa8] sm:$0xff]
    %v844 = vld [vmem:[#allocation3 + $0xb0] sm:$0xff]
    %v845 = vld [vmem:[#allocation3 + $0xb8] sm:$0xff]
    %v846 = vld [vmem:[#allocation3 + $0xc0] sm:$0xff]
    %v847 = vld [vmem:[#allocation3 + $0xc8] sm:$0xff]
    %v848 = vld [vmem:[#allocation3 + $0xd0] sm:$0xff]
    %v849 = vld [vmem:[#allocation3 + $0xd8] sm:$0xff]
    %v850 = vld [vmem:[#allocation3 + $0xe0] sm:$0xff]
    %v851 = vld [vmem:[#allocation3 + $0xe8] sm:$0xff]
    %v852 = vld [vmem:[#allocation3 + $0xf0] sm:$0xff]
    %v853 = vld [vmem:[#allocation3 + $0xf8] sm:$0xff]
    %v854 = vld [vmem:[#allocation3 + $0x100] sm:$0xff]
    %v855 = vld [vmem:[#allocation3 + $0x108] sm:$0xff]
    %v856 = vld [vmem:[#allocation3 + $0x110] sm:$0xff]
    %v857 = vld [vmem:[#allocation3 + $0x118] sm:$0xff]
    %v858 = vld [vmem:[#allocation3 + $0x120] sm:$0xff]
    %v859 = vld [vmem:[#allocation3 + $0x128] sm:$0xff]
    %v860 = vld [vmem:[#allocation3 + $0x130] sm:$0xff]
    %v861 = vld [vmem:[#allocation3 + $0x138] sm:$0xff]
    %v862 = vld [vmem:[#allocation3 + $0x140] sm:$0xff]
    %v863 = vld [vmem:[#allocation3 + $0x148] sm:$0xff]
    %v864 = vld [vmem:[#allocation3 + $0x150] sm:$0xff]
    %v865 = vld [vmem:[#allocation3 + $0x158] sm:$0xff]
    %v866 = vld [vmem:[#allocation3 + $0x160] sm:$0xff]
    %v867 = vld [vmem:[#allocation3 + $0x168] sm:$0xff]
    %v868 = vld [vmem:[#allocation3 + $0x170] sm:$0xff]
    %v869 = vld [vmem:[#allocation3 + $0x178] sm:$0xff]
    %v870 = vld [vmem:[#allocation3 + $0x180] sm:$0xff]
    %v871 = vld [vmem:[#allocation3 + $0x188] sm:$0xff]
    %v872 = vld [vmem:[#allocation3 + $0x190] sm:$0xff]
    %v873 = vld [vmem:[#allocation3 + $0x198] sm:$0xff]
    %v874 = vld [vmem:[#allocation3 + $0x1a0] sm:$0xff]
    %v875 = vld [vmem:[#allocation3 + $0x1a8] sm:$0xff]
    %v876 = vld [vmem:[#allocation3 + $0x1b0] sm:$0xff]
    %v877 = vld [vmem:[#allocation3 + $0x1b8] sm:$0xff]
    %v878 = vld [vmem:[#allocation3 + $0x1c0] sm:$0xff]
    %v879 = vld [vmem:[#allocation3 + $0x1c8] sm:$0xff]
    %v880 = vld [vmem:[#allocation3 + $0x1d0] sm:$0xff]
    %v881 = vld [vmem:[#allocation3 + $0x1d8] sm:$0xff]
    %v882 = vld [vmem:[#allocation3 + $0x1e0] sm:$0xff]
    %v883 = vld [vmem:[#allocation3 + $0x1e8] sm:$0xff]
    %v884 = vld [vmem:[#allocation3 + $0x1f0] sm:$0xff]
    %v885 = vld [vmem:[#allocation3 + $0x1f8] sm:$0xff]
    %v886 = vld [vmem:[#allocation3 + $0x200] sm:$0xff]
    %v887 = vld [vmem:[#allocation3 + $0x208] sm:$0xff]
    %v888 = vld [vmem:[#allocation3 + $0x210] sm:$0xff]
    %v889 = vld [vmem:[#allocation3 + $0x218] sm:$0xff]
    %v890 = vld [vmem:[#allocation3 + $0x220] sm:$0xff]
    %v891 = vld [vmem:[#allocation3 + $0x228] sm:$0xff]
    %v892 = vld [vmem:[#allocation3 + $0x230] sm:$0xff]
    %v893 = vld [vmem:[#allocation3 + $0x238] sm:$0xff]
    %v894 = vld [vmem:[#allocation3 + $0x240] sm:$0xff]
    %v895 = vld [vmem:[#allocation3 + $0x248] sm:$0xff]
    %v896 = vld [vmem:[#allocation3 + $0x250] sm:$0xff]
    %v897 = vld [vmem:[#allocation3 + $0x258] sm:$0xff]
    %v898 = vld [vmem:[#allocation3 + $0x260] sm:$0xff]
    %v899 = vld [vmem:[#allocation3 + $0x268] sm:$0xff]
    %v900 = vld [vmem:[#allocation3 + $0x270] sm:$0xff]
    %v901 = vld [vmem:[#allocation3 + $0x278] sm:$0xff]
    %v902 = vld [vmem:[#allocation3 + $0x280] sm:$0xff]
    %v903 = vld [vmem:[#allocation3 + $0x288] sm:$0xff]
    %v904 = vld [vmem:[#allocation3 + $0x290] sm:$0xff]
    %v905 = vld [vmem:[#allocation3 + $0x298] sm:$0xff]
    %v906 = vld [vmem:[#allocation3 + $0x2a0] sm:$0xff]
    %v907 = vld [vmem:[#allocation3 + $0x2a8] sm:$0xff]
    %v908 = vld [vmem:[#allocation3 + $0x2b0] sm:$0xff]
    %v909 = vld [vmem:[#allocation3 + $0x2b8] sm:$0xff]
    %v910 = vld [vmem:[#allocation3 + $0x2c0] sm:$0xff]
    %v911 = vld [vmem:[#allocation3 + $0x2c8] sm:$0xff]
    %v912 = vld [vmem:[#allocation3 + $0x2d0] sm:$0xff]
    %v913 = vld [vmem:[#allocation3 + $0x2d8] sm:$0xff]
    %v914 = vld [vmem:[#allocation3 + $0x2e0] sm:$0xff]
    %v915 = vld [vmem:[#allocation3 + $0x2e8] sm:$0xff]
    %v916 = vld [vmem:[#allocation3 + $0x2f0] sm:$0xff]
    %v917 = vld [vmem:[#allocation3 + $0x2f8] sm:$0xff]
    %v918 = vld [vmem:[#allocation3 + $0x300] sm:$0xff]
    %v919 = vld [vmem:[#allocation3 + $0x308] sm:$0xff]
    %v920 = vld [vmem:[#allocation3 + $0x310] sm:$0xff]
    %v921 = vld [vmem:[#allocation3 + $0x318] sm:$0xff]
    %v922 = vld [vmem:[#allocation3 + $0x320] sm:$0xff]
    %v923 = vld [vmem:[#allocation3 + $0x328] sm:$0xff]
    %v924 = vld [vmem:[#allocation3 + $0x330] sm:$0xff]
    %v925 = vld [vmem:[#allocation3 + $0x338] sm:$0xff]
    %v926 = vld [vmem:[#allocation3 + $0x340] sm:$0xff]
    %v927 = vld [vmem:[#allocation3 + $0x348] sm:$0xff]
    %v928 = vld [vmem:[#allocation3 + $0x350] sm:$0xff]
    %v929 = vld [vmem:[#allocation3 + $0x358] sm:$0xff]
    %v930 = vld [vmem:[#allocation3 + $0x360] sm:$0xff]
    %v931 = vld [vmem:[#allocation3 + $0x368] sm:$0xff]
    %v932 = vld [vmem:[#allocation3 + $0x370] sm:$0xff]
    %v933 = vld [vmem:[#allocation3 + $0x378] sm:$0xff]
    %v934 = vld [vmem:[#allocation3 + $0x380] sm:$0xff]
    %v935 = vld [vmem:[#allocation3 + $0x388] sm:$0xff]
    %v936 = vld [vmem:[#allocation3 + $0x390] sm:$0xff]
    %v937 = vld [vmem:[#allocation3 + $0x398] sm:$0xff]
    %v938 = vld [vmem:[#allocation3 + $0x3a0] sm:$0xff]
    %v939 = vld [vmem:[#allocation3 + $0x3a8] sm:$0xff]
    %v940 = vld [vmem:[#allocation3 + $0x3b0] sm:$0xff]
    %v941 = vld [vmem:[#allocation3 + $0x3b8] sm:$0xff]
    %v942 = vld [vmem:[#allocation3 + $0x3c0] sm:$0xff]
    %v943 = vld [vmem:[#allocation3 + $0x3c8] sm:$0xff]
    %v944 = vld [vmem:[#allocation3 + $0x3d0] sm:$0xff]
    %v945 = vld [vmem:[#allocation3 + $0x3d8] sm:$0xff]
    %v946 = vld [vmem:[#allocation3 + $0x3e0] sm:$0xff]
    %v947 = vld [vmem:[#allocation3 + $0x3e8] sm:$0xff]
    %v948 = vld [vmem:[#allocation3 + $0x3f0] sm:$0xff]
    %v949 = vld [vmem:[#allocation3 + $0x3f8] sm:$0xff]
    %v950 = vld [vmem:[%s4] sm:$0xf]
    %v952 = vperm.slane %v950, 0
    %v953 = vperm.slane %v950, 1
    %v954 = vperm.slane %v950, 2
    %v955 = vperm.slane %v950, 3
    %v962 = vunpack.c.l.b16 %v820
    %v963 = vunpack.c.h.b16 %v820
    %v964 = vunpack.c.l.b16 %v821
    %v965 = vunpack.c.h.b16 %v821
    %v966 = vpack.c.b16 %v962, %v962
    %v967 = vpack.c.b16 %v963, %v963
    %v968 = vpack.c.b16 %v964, %v964
    %v969 = vpack.c.b16 %v965, %v965
    %v1102 = vunpack.c.l.b16 %v822
    %v1103 = vunpack.c.h.b16 %v822
    %v1104 = vunpack.c.l.b16 %v823
    %v1105 = vunpack.c.h.b16 %v823
    %v1106 = vunpack.c.l.b16 %v824
    %v1107 = vunpack.c.h.b16 %v824
    %v1108 = vunpack.c.l.b16 %v825
    %v1109 = vunpack.c.h.b16 %v825
    %v1110 = vunpack.c.l.b16 %v826
    %v1111 = vunpack.c.h.b16 %v826
    %v1112 = vunpack.c.l.b16 %v827
    %v1113 = vunpack.c.h.b16 %v827
    %v1114 = vunpack.c.l.b16 %v828
    %v1115 = vunpack.c.h.b16 %v828
    %v1116 = vunpack.c.l.b16 %v829
    %v1117 = vunpack.c.h.b16 %v829
    %v1118 = vunpack.c.l.b16 %v830
    %v1119 = vunpack.c.h.b16 %v830
    %v1120 = vunpack.c.l.b16 %v831
    %v1121 = vunpack.c.h.b16 %v831
    %v1122 = vunpack.c.l.b16 %v832
    %v1123 = vunpack.c.h.b16 %v832
    %v1124 = vunpack.c.l.b16 %v833
    %v1125 = vunpack.c.h.b16 %v833
    %v1126 = vunpack.c.l.b16 %v834
    %v1127 = vunpack.c.h.b16 %v834
    %v1128 = vunpack.c.l.b16 %v835
    %v1129 = vunpack.c.h.b16 %v835
    %v1130 = vunpack.c.l.b16 %v836
    %v1131 = vunpack.c.h.b16 %v836
    %v1132 = vunpack.c.l.b16 %v837
    %v1133 = vunpack.c.h.b16 %v837
    %v1134 = vunpack.c.l.b16 %v838
    %v1135 = vunpack.c.h.b16 %v838
    %v1136 = vunpack.c.l.b16 %v839
    %v1137 = vunpack.c.h.b16 %v839
    %v1138 = vunpack.c.l.b16 %v840
    %v1139 = vunpack.c.h.b16 %v840
    %v1140 = vunpack.c.l.b16 %v841
    %v1141 = vunpack.c.h.b16 %v841
    %v1142 = vunpack.c.l.b16 %v842
    %v1143 = vunpack.c.h.b16 %v842
    %v1144 = vunpack.c.l.b16 %v843
    %v1145 = vunpack.c.h.b16 %v843
    %v1146 = vunpack.c.l.b16 %v844
    %v1147 = vunpack.c.h.b16 %v844
    %v1148 = vunpack.c.l.b16 %v845
    %v1149 = vunpack.c.h.b16 %v845
    %v1150 = vunpack.c.l.b16 %v846
    %v1151 = vunpack.c.h.b16 %v846
    %v1152 = vunpack.c.l.b16 %v847
    %v1153 = vunpack.c.h.b16 %v847
    %v1154 = vunpack.c.l.b16 %v848
    %v1155 = vunpack.c.h.b16 %v848
    %v1156 = vunpack.c.l.b16 %v849
    %v1157 = vunpack.c.h.b16 %v849
    %v1158 = vunpack.c.l.b16 %v850
    %v1159 = vunpack.c.h.b16 %v850
    %v1160 = vunpack.c.l.b16 %v851
    %v1161 = vunpack.c.h.b16 %v851
    %v1162 = vunpack.c.l.b16 %v852
    %v1163 = vunpack.c.h.b16 %v852
    %v1164 = vunpack.c.l.b16 %v853
    %v1165 = vunpack.c.h.b16 %v853
    %v1166 = vunpack.c.l.b16 %v854
    %v1167 = vunpack.c.h.b16 %v854
    %v1168 = vunpack.c.l.b16 %v855
    %v1169 = vunpack.c.h.b16 %v855
    %v1170 = vunpack.c.l.b16 %v856
    %v1171 = vunpack.c.h.b16 %v856
    %v1172 = vunpack.c.l.b16 %v857
    %v1173 = vunpack.c.h.b16 %v857
    %v1174 = vunpack.c.l.b16 %v858
    %v1175 = vunpack.c.h.b16 %v858
    %v1176 = vunpack.c.l.b16 %v859
    %v1177 = vunpack.c.h.b16 %v859
    %v1178 = vunpack.c.l.b16 %v860
    %v1179 = vunpack.c.h.b16 %v860
    %v1180 = vunpack.c.l.b16 %v861
    %v1181 = vunpack.c.h.b16 %v861
    %v1182 = vunpack.c.l.b16 %v862
    %v1183 = vunpack.c.h.b16 %v862
    %v1184 = vunpack.c.l.b16 %v863
    %v1185 = vunpack.c.h.b16 %v863
    %v1186 = vunpack.c.l.b16 %v864
    %v1187 = vunpack.c.h.b16 %v864
    %v1188 = vunpack.c.l.b16 %v865
    %v1189 = vunpack.c.h.b16 %v865
    %v1190 = vunpack.c.l.b16 %v866
    %v1191 = vunpack.c.h.b16 %v866
    %v1192 = vunpack.c.l.b16 %v867
    %v1193 = vunpack.c.h.b16 %v867
    %v1194 = vunpack.c.l.b16 %v868
    %v1195 = vunpack.c.h.b16 %v868
    %v1196 = vunpack.c.l.b16 %v869
    %v1197 = vunpack.c.h.b16 %v869
    %v1198 = vunpack.c.l.b16 %v870
    %v1199 = vunpack.c.h.b16 %v870
    %v1200 = vunpack.c.l.b16 %v871
    %v1201 = vunpack.c.h.b16 %v871
    %v1202 = vunpack.c.l.b16 %v872
    %v1203 = vunpack.c.h.b16 %v872
    %v1204 = vunpack.c.l.b16 %v873
    %v1205 = vunpack.c.h.b16 %v873
    %v1206 = vunpack.c.l.b16 %v874
    %v1207 = vunpack.c.h.b16 %v874
    %v1208 = vunpack.c.l.b16 %v875
    %v1209 = vunpack.c.h.b16 %v875
    %v1210 = vunpack.c.l.b16 %v876
    %v1211 = vunpack.c.h.b16 %v876
    %v1212 = vunpack.c.l.b16 %v877
    %v1213 = vunpack.c.h.b16 %v877
    %v1214 = vunpack.c.l.b16 %v878
    %v1215 = vunpack.c.h.b16 %v878
    %v1216 = vunpack.c.l.b16 %v879
    %v1217 = vunpack.c.h.b16 %v879
    %v1218 = vunpack.c.l.b16 %v880
    %v1219 = vunpack.c.h.b16 %v880
    %v1220 = vunpack.c.l.b16 %v881
    %v1221 = vunpack.c.h.b16 %v881
    %v1222 = vunpack.c.l.b16 %v882
    %v1223 = vunpack.c.h.b16 %v882
    %v1224 = vunpack.c.l.b16 %v883
    %v1225 = vunpack.c.h.b16 %v883
    %v1226 = vunpack.c.l.b16 %v884
    %v1227 = vunpack.c.h.b16 %v884
    %v1228 = vunpack.c.l.b16 %v885
    %v1229 = vunpack.c.h.b16 %v885
    %v1230 = vunpack.c.l.b16 %v886
    %v1231 = vunpack.c.h.b16 %v886
    %v1232 = vunpack.c.l.b16 %v887
    %v1233 = vunpack.c.h.b16 %v887
    %v1234 = vunpack.c.l.b16 %v888
    %v1235 = vunpack.c.h.b16 %v888
    %v1236 = vunpack.c.l.b16 %v889
    %v1237 = vunpack.c.h.b16 %v889
    %v1238 = vunpack.c.l.b16 %v890
    %v1239 = vunpack.c.h.b16 %v890
    %v1240 = vunpack.c.l.b16 %v891
    %v1241 = vunpack.c.h.b16 %v891
    %v1242 = vunpack.c.l.b16 %v892
    %v1243 = vunpack.c.h.b16 %v892
    %v1244 = vunpack.c.l.b16 %v893
    %v1245 = vunpack.c.h.b16 %v893
    %v1246 = vunpack.c.l.b16 %v894
    %v1247 = vunpack.c.h.b16 %v894
    %v1248 = vunpack.c.l.b16 %v895
    %v1249 = vunpack.c.h.b16 %v895
    %v1250 = vunpack.c.l.b16 %v896
    %v1251 = vunpack.c.h.b16 %v896
    %v1252 = vunpack.c.l.b16 %v897
    %v1253 = vunpack.c.h.b16 %v897
    %v1254 = vunpack.c.l.b16 %v898
    %v1255 = vunpack.c.h.b16 %v898
    %v1256 = vunpack.c.l.b16 %v899
    %v1257 = vunpack.c.h.b16 %v899
    %v1258 = vunpack.c.l.b16 %v900
    %v1259 = vunpack.c.h.b16 %v900
    %v1260 = vunpack.c.l.b16 %v901
    %v1261 = vunpack.c.h.b16 %v901
    %v1262 = vunpack.c.l.b16 %v902
    %v1263 = vunpack.c.h.b16 %v902
    %v1264 = vunpack.c.l.b16 %v903
    %v1265 = vunpack.c.h.b16 %v903
    %v1266 = vunpack.c.l.b16 %v904
    %v1267 = vunpack.c.h.b16 %v904
    %v1268 = vunpack.c.l.b16 %v905
    %v1269 = vunpack.c.h.b16 %v905
    %v1270 = vunpack.c.l.b16 %v906
    %v1271 = vunpack.c.h.b16 %v906
    %v1272 = vunpack.c.l.b16 %v907
    %v1273 = vunpack.c.h.b16 %v907
    %v1274 = vunpack.c.l.b16 %v908
    %v1275 = vunpack.c.h.b16 %v908
    %v1276 = vunpack.c.l.b16 %v909
    %v1277 = vunpack.c.h.b16 %v909
    %v1278 = vunpack.c.l.b16 %v910
    %v1279 = vunpack.c.h.b16 %v910
    %v1280 = vunpack.c.l.b16 %v911
    %v1281 = vunpack.c.h.b16 %v911
    %v1282 = vunpack.c.l.b16 %v912
    %v1283 = vunpack.c.h.b16 %v912
    %v1284 = vunpack.c.l.b16 %v913
    %v1285 = vunpack.c.h.b16 %v913
    %v1286 = vunpack.c.l.b16 %v914
    %v1287 = vunpack.c.h.b16 %v914
    %v1288 = vunpack.c.l.b16 %v915
    %v1289 = vunpack.c.h.b16 %v915
    %v1290 = vunpack.c.l.b16 %v916
    %v1291 = vunpack.c.h.b16 %v916
    %v1292 = vunpack.c.l.b16 %v917
    %v1293 = vunpack.c.h.b16 %v917
    %v1294 = vunpack.c.l.b16 %v918
    %v1295 = vunpack.c.h.b16 %v918
    %v1296 = vunpack.c.l.b16 %v919
    %v1297 = vunpack.c.h.b16 %v919
    %v1298 = vunpack.c.l.b16 %v920
    %v1299 = vunpack.c.h.b16 %v920
    %v1300 = vunpack.c.l.b16 %v921
    %v1301 = vunpack.c.h.b16 %v921
    %v1302 = vunpack.c.l.b16 %v922
    %v1303 = vunpack.c.h.b16 %v922
    %v1304 = vunpack.c.l.b16 %v923
    %v1305 = vunpack.c.h.b16 %v923
    %v1306 = vunpack.c.l.b16 %v924
    %v1307 = vunpack.c.h.b16 %v924
    %v1308 = vunpack.c.l.b16 %v925
    %v1309 = vunpack.c.h.b16 %v925
    %v1310 = vunpack.c.l.b16 %v926
    %v1311 = vunpack.c.h.b16 %v926
    %v1312 = vunpack.c.l.b16 %v927
    %v1313 = vunpack.c.h.b16 %v927
    %v1314 = vunpack.c.l.b16 %v928
    %v1315 = vunpack.c.h.b16 %v928
    %v1316 = vunpack.c.l.b16 %v929
    %v1317 = vunpack.c.h.b16 %v929
    %v1318 = vunpack.c.l.b16 %v930
    %v1319 = vunpack.c.h.b16 %v930
    %v1320 = vunpack.c.l.b16 %v931
    %v1321 = vunpack.c.h.b16 %v931
    %v1322 = vunpack.c.l.b16 %v932
    %v1323 = vunpack.c.h.b16 %v932
    %v1324 = vunpack.c.l.b16 %v933
    %v1325 = vunpack.c.h.b16 %v933
    %v1326 = vunpack.c.l.b16 %v934
    %v1327 = vunpack.c.h.b16 %v934
    %v1328 = vunpack.c.l.b16 %v935
    %v1329 = vunpack.c.h.b16 %v935
    %v1330 = vunpack.c.l.b16 %v936
    %v1331 = vunpack.c.h.b16 %v936
    %v1332 = vunpack.c.l.b16 %v937
    %v1333 = vunpack.c.h.b16 %v937
    %v1334 = vunpack.c.l.b16 %v938
    %v1335 = vunpack.c.h.b16 %v938
    %v1336 = vunpack.c.l.b16 %v939
    %v1337 = vunpack.c.h.b16 %v939
    %v1338 = vunpack.c.l.b16 %v940
    %v1339 = vunpack.c.h.b16 %v940
    %v1340 = vunpack.c.l.b16 %v941
    %v1341 = vunpack.c.h.b16 %v941
    %v1342 = vunpack.c.l.b16 %v942
    %v1343 = vunpack.c.h.b16 %v942
    %v1344 = vunpack.c.l.b16 %v943
    %v1345 = vunpack.c.h.b16 %v943
    %v1346 = vunpack.c.l.b16 %v944
    %v1347 = vunpack.c.h.b16 %v944
    %v1348 = vunpack.c.l.b16 %v945
    %v1349 = vunpack.c.h.b16 %v945
    %v1350 = vunpack.c.l.b16 %v946
    %v1351 = vunpack.c.h.b16 %v946
    %v1352 = vunpack.c.l.b16 %v947
    %v1353 = vunpack.c.h.b16 %v947
    %v1354 = vunpack.c.l.b16 %v948
    %v1355 = vunpack.c.h.b16 %v948
    %v1356 = vunpack.c.l.b16 %v949
    %v1357 = vunpack.c.h.b16 %v949
    %v1358 = vpack.c.b16 %v1106, %v1102
    %v1359 = vpack.c.b16 %v1107, %v1103
    %v1360 = vpack.c.b16 %v1108, %v1104
    %v1361 = vpack.c.b16 %v1109, %v1105
    %v1362 = vpack.c.b16 %v1114, %v1110
    %v1363 = vpack.c.b16 %v1115, %v1111
    %v1364 = vpack.c.b16 %v1116, %v1112
    %v1365 = vpack.c.b16 %v1117, %v1113
    %v1366 = vpack.c.b16 %v1122, %v1118
    %v1367 = vpack.c.b16 %v1123, %v1119
    %v1368 = vpack.c.b16 %v1124, %v1120
    %v1369 = vpack.c.b16 %v1125, %v1121
    %v1370 = vpack.c.b16 %v1130, %v1126
    %v1371 = vpack.c.b16 %v1131, %v1127
    %v1372 = vpack.c.b16 %v1132, %v1128
    %v1373 = vpack.c.b16 %v1133, %v1129
    %v1374 = vpack.c.b16 %v1138, %v1134
    %v1375 = vpack.c.b16 %v1139, %v1135
    %v1376 = vpack.c.b16 %v1140, %v1136
    %v1377 = vpack.c.b16 %v1141, %v1137
    %v1378 = vpack.c.b16 %v1146, %v1142
    %v1379 = vpack.c.b16 %v1147, %v1143
    %v1380 = vpack.c.b16 %v1148, %v1144
    %v1381 = vpack.c.b16 %v1149, %v1145
    %v1382 = vpack.c.b16 %v1154, %v1150
    %v1383 = vpack.c.b16 %v1155, %v1151
    %v1384 = vpack.c.b16 %v1156, %v1152
    %v1385 = vpack.c.b16 %v1157, %v1153
    %v1386 = vpack.c.b16 %v1162, %v1158
    %v1387 = vpack.c.b16 %v1163, %v1159
    %v1388 = vpack.c.b16 %v1164, %v1160
    %v1389 = vpack.c.b16 %v1165, %v1161
    %v1390 = vpack.c.b16 %v1170, %v1166
    %v1391 = vpack.c.b16 %v1171, %v1167
    %v1392 = vpack.c.b16 %v1172, %v1168
    %v1393 = vpack.c.b16 %v1173, %v1169
    %v1394 = vpack.c.b16 %v1178, %v1174
    %v1395 = vpack.c.b16 %v1179, %v1175
    %v1396 = vpack.c.b16 %v1180, %v1176
    %v1397 = vpack.c.b16 %v1181, %v1177
    %v1398 = vpack.c.b16 %v1186, %v1182
    %v1399 = vpack.c.b16 %v1187, %v1183
    %v1400 = vpack.c.b16 %v1188, %v1184
    %v1401 = vpack.c.b16 %v1189, %v1185
    %v1402 = vpack.c.b16 %v1194, %v1190
    %v1403 = vpack.c.b16 %v1195, %v1191
    %v1404 = vpack.c.b16 %v1196, %v1192
    %v1405 = vpack.c.b16 %v1197, %v1193
    %v1406 = vpack.c.b16 %v1202, %v1198
    %v1407 = vpack.c.b16 %v1203, %v1199
    %v1408 = vpack.c.b16 %v1204, %v1200
    %v1409 = vpack.c.b16 %v1205, %v1201
    %v1410 = vpack.c.b16 %v1210, %v1206
    %v1411 = vpack.c.b16 %v1211, %v1207
    %v1412 = vpack.c.b16 %v1212, %v1208
    %v1413 = vpack.c.b16 %v1213, %v1209
    %v1414 = vpack.c.b16 %v1218, %v1214
    %v1415 = vpack.c.b16 %v1219, %v1215
    %v1416 = vpack.c.b16 %v1220, %v1216
    %v1417 = vpack.c.b16 %v1221, %v1217
    %v1418 = vpack.c.b16 %v1226, %v1222
    %v1419 = vpack.c.b16 %v1227, %v1223
    %v1420 = vpack.c.b16 %v1228, %v1224
    %v1421 = vpack.c.b16 %v1229, %v1225
    %v1422 = vpack.c.b16 %v1234, %v1230
    %v1423 = vpack.c.b16 %v1235, %v1231
    %v1424 = vpack.c.b16 %v1236, %v1232
    %v1425 = vpack.c.b16 %v1237, %v1233
    %v1426 = vpack.c.b16 %v1242, %v1238
    %v1427 = vpack.c.b16 %v1243, %v1239
    %v1428 = vpack.c.b16 %v1244, %v1240
    %v1429 = vpack.c.b16 %v1245, %v1241
    %v1430 = vpack.c.b16 %v1250, %v1246
    %v1431 = vpack.c.b16 %v1251, %v1247
    %v1432 = vpack.c.b16 %v1252, %v1248
    %v1433 = vpack.c.b16 %v1253, %v1249
    %v1434 = vpack.c.b16 %v1258, %v1254
    %v1435 = vpack.c.b16 %v1259, %v1255
    %v1436 = vpack.c.b16 %v1260, %v1256
    %v1437 = vpack.c.b16 %v1261, %v1257
    %v1438 = vpack.c.b16 %v1266, %v1262
    %v1439 = vpack.c.b16 %v1267, %v1263
    %v1440 = vpack.c.b16 %v1268, %v1264
    %v1441 = vpack.c.b16 %v1269, %v1265
    %v1442 = vpack.c.b16 %v1274, %v1270
    %v1443 = vpack.c.b16 %v1275, %v1271
    %v1444 = vpack.c.b16 %v1276, %v1272
    %v1445 = vpack.c.b16 %v1277, %v1273
    %v1446 = vpack.c.b16 %v1282, %v1278
    %v1447 = vpack.c.b16 %v1283, %v1279
    %v1448 = vpack.c.b16 %v1284, %v1280
    %v1449 = vpack.c.b16 %v1285, %v1281
    %v1450 = vpack.c.b16 %v1290, %v1286
    %v1451 = vpack.c.b16 %v1291, %v1287
    %v1452 = vpack.c.b16 %v1292, %v1288
    %v1453 = vpack.c.b16 %v1293, %v1289
    %v1454 = vpack.c.b16 %v1298, %v1294
    %v1455 = vpack.c.b16 %v1299, %v1295
    %v1456 = vpack.c.b16 %v1300, %v1296
    %v1457 = vpack.c.b16 %v1301, %v1297
    %v1458 = vpack.c.b16 %v1306, %v1302
    %v1459 = vpack.c.b16 %v1307, %v1303
    %v1460 = vpack.c.b16 %v1308, %v1304
    %v1461 = vpack.c.b16 %v1309, %v1305
    %v1462 = vpack.c.b16 %v1314, %v1310
    %v1463 = vpack.c.b16 %v1315, %v1311
    %v1464 = vpack.c.b16 %v1316, %v1312
    %v1465 = vpack.c.b16 %v1317, %v1313
    %v1466 = vpack.c.b16 %v1322, %v1318
    %v1467 = vpack.c.b16 %v1323, %v1319
    %v1468 = vpack.c.b16 %v1324, %v1320
    %v1469 = vpack.c.b16 %v1325, %v1321
    %v1470 = vpack.c.b16 %v1330, %v1326
    %v1471 = vpack.c.b16 %v1331, %v1327
    %v1472 = vpack.c.b16 %v1332, %v1328
    %v1473 = vpack.c.b16 %v1333, %v1329
    %v1474 = vpack.c.b16 %v1338, %v1334
    %v1475 = vpack.c.b16 %v1339, %v1335
    %v1476 = vpack.c.b16 %v1340, %v1336
    %v1477 = vpack.c.b16 %v1341, %v1337
    %v1478 = vpack.c.b16 %v1346, %v1342
    %v1479 = vpack.c.b16 %v1347, %v1343
    %v1480 = vpack.c.b16 %v1348, %v1344
    %v1481 = vpack.c.b16 %v1349, %v1345
    %v1482 = vpack.c.b16 %v1354, %v1350
    %v1483 = vpack.c.b16 %v1355, %v1351
    %v1484 = vpack.c.b16 %v1356, %v1352
    %v1485 = vpack.c.b16 %v1357, %v1353
    %1614 = vmatpush.bf16.msra.mxu0 %v1386
    %1615 = vmatpush.bf16.msra.mxu0 %v1382
    %1616 = vmatpush.bf16.msra.mxu0 %v1378
    %1617 = vmatpush.bf16.msra.mxu0 %v1374
    %1618 = vmatpush.bf16.msra.mxu0 %v1370
    %1619 = vmatpush.bf16.msra.mxu0 %v1366
    %1620 = vmatpush.bf16.msra.mxu0 %v1362
    %1621 = vmatpush.bf16.msra.mxu0 %v1358
    %1622 = vmatmul.bf16.gmra.mxu0 %v966
    %v1623 = vpop.f32.mrf.mxu0
    %v1624 = vadd.f32 %v952, %v1623
    %v1625 = vpop.f32.mrf.mxu0
    %1626 = vdwg.mxu0
    %1627 = vmatpush.bf16.msra.mxu0 %v1418
    %1628 = vmatpush.bf16.msra.mxu0 %v1414
    %1629 = vmatpush.bf16.msra.mxu0 %v1410
    %1630 = vmatpush.bf16.msra.mxu0 %v1406
    %1631 = vmatpush.bf16.msra.mxu0 %v1402
    %1632 = vmatpush.bf16.msra.mxu0 %v1398
    %1633 = vmatpush.bf16.msra.mxu0 %v1394
    %1634 = vmatpush.bf16.msra.mxu0 %v1390
    %1635 = vmatmul.bf16.gmra.mxu0 %v967
    %v1636 = vpop.f32.mrf.mxu0
    %v1637 = vadd.f32 %v1624, %v1636
    %v1638 = vpop.f32.mrf.mxu0
    %1639 = vdwg.mxu0
    %1640 = vmatpush.bf16.msra.mxu0 %v1450
    %1641 = vmatpush.bf16.msra.mxu0 %v1446
    %1642 = vmatpush.bf16.msra.mxu0 %v1442
    %1643 = vmatpush.bf16.msra.mxu0 %v1438
    %1644 = vmatpush.bf16.msra.mxu0 %v1434
    %1645 = vmatpush.bf16.msra.mxu0 %v1430
    %1646 = vmatpush.bf16.msra.mxu0 %v1426
    %1647 = vmatpush.bf16.msra.mxu0 %v1422
    %1648 = vmatmul.bf16.gmra.mxu0 %v968
    %v1649 = vpop.f32.mrf.mxu0
    %v1650 = vadd.f32 %v1637, %v1649
    %v1651 = vpop.f32.mrf.mxu0
    %1652 = vdwg.mxu0
    %1653 = vmatpush.bf16.msra.mxu0 %v1482
    %1654 = vmatpush.bf16.msra.mxu0 %v1478
    %1655 = vmatpush.bf16.msra.mxu0 %v1474
    %1656 = vmatpush.bf16.msra.mxu0 %v1470
    %1657 = vmatpush.bf16.msra.mxu0 %v1466
    %1658 = vmatpush.bf16.msra.mxu0 %v1462
    %1659 = vmatpush.bf16.msra.mxu0 %v1458
    %1660 = vmatpush.bf16.msra.mxu0 %v1454
    %1661 = vmatmul.bf16.gmra.mxu0 %v969
    %v1662 = vpop.f32.mrf.mxu0
    %v1663 = vadd.f32 %v1650, %v1662
    %v1664 = vpop.f32.mrf.mxu0
    %1665 = vdwg.mxu0
    %1666 = vmatpush.bf16.msra.mxu0 %v1387
    %1667 = vmatpush.bf16.msra.mxu0 %v1383
    %1668 = vmatpush.bf16.msra.mxu0 %v1379
    %1669 = vmatpush.bf16.msra.mxu0 %v1375
    %1670 = vmatpush.bf16.msra.mxu0 %v1371
    %1671 = vmatpush.bf16.msra.mxu0 %v1367
    %1672 = vmatpush.bf16.msra.mxu0 %v1363
    %1673 = vmatpush.bf16.msra.mxu0 %v1359
    %1674 = vmatmul.bf16.gmra.mxu0 %v966
    %v1675 = vpop.f32.mrf.mxu0
    %v1676 = vadd.f32 %v953, %v1675
    %v1677 = vpop.f32.mrf.mxu0
    %1678 = vdwg.mxu0
    %1679 = vmatpush.bf16.msra.mxu0 %v1419
    %1680 = vmatpush.bf16.msra.mxu0 %v1415
    %1681 = vmatpush.bf16.msra.mxu0 %v1411
    %1682 = vmatpush.bf16.msra.mxu0 %v1407
    %1683 = vmatpush.bf16.msra.mxu0 %v1403
    %1684 = vmatpush.bf16.msra.mxu0 %v1399
    %1685 = vmatpush.bf16.msra.mxu0 %v1395
    %1686 = vmatpush.bf16.msra.mxu0 %v1391
    %1687 = vmatmul.bf16.gmra.mxu0 %v967
    %v1688 = vpop.f32.mrf.mxu0
    %v1689 = vadd.f32 %v1676, %v1688
    %v1690 = vpop.f32.mrf.mxu0
    %1691 = vdwg.mxu0
    %1692 = vmatpush.bf16.msra.mxu0 %v1451
    %1693 = vmatpush.bf16.msra.mxu0 %v1447
    %1694 = vmatpush.bf16.msra.mxu0 %v1443
    %1695 = vmatpush.bf16.msra.mxu0 %v1439
    %1696 = vmatpush.bf16.msra.mxu0 %v1435
    %1697 = vmatpush.bf16.msra.mxu0 %v1431
    %1698 = vmatpush.bf16.msra.mxu0 %v1427
    %1699 = vmatpush.bf16.msra.mxu0 %v1423
    %1700 = vmatmul.bf16.gmra.mxu0 %v968
    %v1701 = vpop.f32.mrf.mxu0
    %v1702 = vadd.f32 %v1689, %v1701
    %v1703 = vpop.f32.mrf.mxu0
    %1704 = vdwg.mxu0
    %1705 = vmatpush.bf16.msra.mxu0 %v1483
    %1706 = vmatpush.bf16.msra.mxu0 %v1479
    %1707 = vmatpush.bf16.msra.mxu0 %v1475
    %1708 = vmatpush.bf16.msra.mxu0 %v1471
    %1709 = vmatpush.bf16.msra.mxu0 %v1467
    %1710 = vmatpush.bf16.msra.mxu0 %v1463
    %1711 = vmatpush.bf16.msra.mxu0 %v1459
    %1712 = vmatpush.bf16.msra.mxu0 %v1455
    %1713 = vmatmul.bf16.gmra.mxu0 %v969
    %v1714 = vpop.f32.mrf.mxu0
    %v1715 = vadd.f32 %v1702, %v1714
    %v1716 = vpop.f32.mrf.mxu0
    %1717 = vdwg.mxu0
    %1718 = vmatpush.bf16.msra.mxu0 %v1388
    %1719 = vmatpush.bf16.msra.mxu0 %v1384
    %1720 = vmatpush.bf16.msra.mxu0 %v1380
    %1721 = vmatpush.bf16.msra.mxu0 %v1376
    %1722 = vmatpush.bf16.msra.mxu0 %v1372
    %1723 = vmatpush.bf16.msra.mxu0 %v1368
    %1724 = vmatpush.bf16.msra.mxu0 %v1364
    %1725 = vmatpush.bf16.msra.mxu0 %v1360
    %1726 = vmatmul.bf16.gmra.mxu0 %v966
    %v1727 = vpop.f32.mrf.mxu0
    %v1728 = vadd.f32 %v954, %v1727
    %v1729 = vpop.f32.mrf.mxu0
    %1730 = vdwg.mxu0
    %1731 = vmatpush.bf16.msra.mxu0 %v1420
    %1732 = vmatpush.bf16.msra.mxu0 %v1416
    %1733 = vmatpush.bf16.msra.mxu0 %v1412
    %1734 = vmatpush.bf16.msra.mxu0 %v1408
    %1735 = vmatpush.bf16.msra.mxu0 %v1404
    %1736 = vmatpush.bf16.msra.mxu0 %v1400
    %1737 = vmatpush.bf16.msra.mxu0 %v1396
    %1738 = vmatpush.bf16.msra.mxu0 %v1392
    %1739 = vmatmul.bf16.gmra.mxu0 %v967
    %v1740 = vpop.f32.mrf.mxu0
    %v1741 = vadd.f32 %v1728, %v1740
    %v1742 = vpop.f32.mrf.mxu0
    %1743 = vdwg.mxu0
    %1744 = vmatpush.bf16.msra.mxu0 %v1452
    %1745 = vmatpush.bf16.msra.mxu0 %v1448
    %1746 = vmatpush.bf16.msra.mxu0 %v1444
    %1747 = vmatpush.bf16.msra.mxu0 %v1440
    %1748 = vmatpush.bf16.msra.mxu0 %v1436
    %1749 = vmatpush.bf16.msra.mxu0 %v1432
    %1750 = vmatpush.bf16.msra.mxu0 %v1428
    %1751 = vmatpush.bf16.msra.mxu0 %v1424
    %1752 = vmatmul.bf16.gmra.mxu0 %v968
    %v1753 = vpop.f32.mrf.mxu0
    %v1754 = vadd.f32 %v1741, %v1753
    %v1755 = vpop.f32.mrf.mxu0
    %1756 = vdwg.mxu0
    %1757 = vmatpush.bf16.msra.mxu0 %v1484
    %1758 = vmatpush.bf16.msra.mxu0 %v1480
    %1759 = vmatpush.bf16.msra.mxu0 %v1476
    %1760 = vmatpush.bf16.msra.mxu0 %v1472
    %1761 = vmatpush.bf16.msra.mxu0 %v1468
    %1762 = vmatpush.bf16.msra.mxu0 %v1464
    %1763 = vmatpush.bf16.msra.mxu0 %v1460
    %1764 = vmatpush.bf16.msra.mxu0 %v1456
    %1765 = vmatmul.bf16.gmra.mxu0 %v969
    %v1766 = vpop.f32.mrf.mxu0
    %v1767 = vadd.f32 %v1754, %v1766
    %v1768 = vpop.f32.mrf.mxu0
    %1769 = vdwg.mxu0
    %1770 = vmatpush.bf16.msra.mxu0 %v1389
    %1771 = vmatpush.bf16.msra.mxu0 %v1385
    %1772 = vmatpush.bf16.msra.mxu0 %v1381
    %1773 = vmatpush.bf16.msra.mxu0 %v1377
    %1774 = vmatpush.bf16.msra.mxu0 %v1373
    %1775 = vmatpush.bf16.msra.mxu0 %v1369
    %1776 = vmatpush.bf16.msra.mxu0 %v1365
    %1777 = vmatpush.bf16.msra.mxu0 %v1361
    %1778 = vmatmul.bf16.gmra.mxu0 %v966
    %v1779 = vpop.f32.mrf.mxu0
    %v1780 = vadd.f32 %v955, %v1779
    %v1781 = vpop.f32.mrf.mxu0
    %1782 = vdwg.mxu0
    %1783 = vmatpush.bf16.msra.mxu0 %v1421
    %1784 = vmatpush.bf16.msra.mxu0 %v1417
    %1785 = vmatpush.bf16.msra.mxu0 %v1413
    %1786 = vmatpush.bf16.msra.mxu0 %v1409
    %1787 = vmatpush.bf16.msra.mxu0 %v1405
    %1788 = vmatpush.bf16.msra.mxu0 %v1401
    %1789 = vmatpush.bf16.msra.mxu0 %v1397
    %1790 = vmatpush.bf16.msra.mxu0 %v1393
    %1791 = vmatmul.bf16.gmra.mxu0 %v967
    %v1792 = vpop.f32.mrf.mxu0
    %v1793 = vadd.f32 %v1780, %v1792
    %v1794 = vpop.f32.mrf.mxu0
    %1795 = vdwg.mxu0
    %1796 = vmatpush.bf16.msra.mxu0 %v1453
    %1797 = vmatpush.bf16.msra.mxu0 %v1449
    %1798 = vmatpush.bf16.msra.mxu0 %v1445
    %1799 = vmatpush.bf16.msra.mxu0 %v1441
    %1800 = vmatpush.bf16.msra.mxu0 %v1437
    %1801 = vmatpush.bf16.msra.mxu0 %v1433
    %1802 = vmatpush.bf16.msra.mxu0 %v1429
    %1803 = vmatpush.bf16.msra.mxu0 %v1425
    %1804 = vmatmul.bf16.gmra.mxu0 %v968
    %v1805 = vpop.f32.mrf.mxu0
    %v1806 = vadd.f32 %v1793, %v1805
    %v1807 = vpop.f32.mrf.mxu0
    %1808 = vdwg.mxu0
    %1809 = vmatpush.bf16.msra.mxu0 %v1485
    %1810 = vmatpush.bf16.msra.mxu0 %v1481
    %1811 = vmatpush.bf16.msra.mxu0 %v1477
    %1812 = vmatpush.bf16.msra.mxu0 %v1473
    %1813 = vmatpush.bf16.msra.mxu0 %v1469
    %1814 = vmatpush.bf16.msra.mxu0 %v1465
    %1815 = vmatpush.bf16.msra.mxu0 %v1461
    %1816 = vmatpush.bf16.msra.mxu0 %v1457
    %1817 = vmatmul.bf16.gmra.mxu0 %v969
    %v1818 = vpop.f32.mrf.mxu0
    %v1819 = vadd.f32 %v1806, %v1818
    %v1820 = vpop.f32.mrf.mxu0
    %1821 = vdwg.mxu0
    %v1822 = vmax.f32 %v1663, 0.0
    %v1823 = vmax.f32 %v1715, 0.0
    %v1824 = vmax.f32 %v1767, 0.0
    %v1825 = vmax.f32 %v1819, 0.0
    %v1826 = vpack.c.bf16 %v1823, %v1822
    %v1827 = vpack.c.bf16 %v1825, %v1824
    %1828 = vst [vmem:[#allocation2] sm:$0xff] %v1826
    %1829 = vst [vmem:[#allocation2 + $0x8] sm:$0xff] %v1827
    %v1830 = vld [vmem:[#allocation2] sm:$0xff]
    %v1831 = vld [vmem:[#allocation2 + $0x8] sm:$0xff]
    %v1832 = vld [vmem:[#allocation5] sm:$0xff]
    %v1833 = vld [vmem:[#allocation5 + $0x8] sm:$0xff]
    %v1834 = vld [vmem:[#allocation5 + $0x10] sm:$0xff]
    %v1835 = vld [vmem:[#allocation5 + $0x18] sm:$0xff]
    %v1836 = vld [vmem:[#allocation5 + $0x20] sm:$0xff]
    %v1837 = vld [vmem:[#allocation5 + $0x28] sm:$0xff]
    %v1838 = vld [vmem:[#allocation5 + $0x30] sm:$0xff]
    %v1839 = vld [vmem:[#allocation5 + $0x38] sm:$0xff]
    %v1840 = vld [vmem:[#allocation5 + $0x40] sm:$0xff]
    %v1841 = vld [vmem:[#allocation5 + $0x48] sm:$0xff]
    %v1842 = vld [vmem:[#allocation5 + $0x50] sm:$0xff]
    %v1843 = vld [vmem:[#allocation5 + $0x58] sm:$0xff]
    %v1844 = vld [vmem:[#allocation5 + $0x60] sm:$0xff]
    %v1845 = vld [vmem:[#allocation5 + $0x68] sm:$0xff]
    %v1846 = vld [vmem:[#allocation5 + $0x70] sm:$0xff]
    %v1847 = vld [vmem:[#allocation5 + $0x78] sm:$0xff]
    %v1848 = vld [vmem:[#allocation5 + $0x80] sm:$0xff]
    %v1849 = vld [vmem:[#allocation5 + $0x88] sm:$0xff]
    %v1850 = vld [vmem:[#allocation5 + $0x90] sm:$0xff]
    %v1851 = vld [vmem:[#allocation5 + $0x98] sm:$0xff]
    %v1852 = vld [vmem:[#allocation5 + $0xa0] sm:$0xff]
    %v1853 = vld [vmem:[#allocation5 + $0xa8] sm:$0xff]
    %v1854 = vld [vmem:[#allocation5 + $0xb0] sm:$0xff]
    %v1855 = vld [vmem:[#allocation5 + $0xb8] sm:$0xff]
    %v1856 = vld [vmem:[#allocation5 + $0xc0] sm:$0xff]
    %v1857 = vld [vmem:[#allocation5 + $0xc8] sm:$0xff]
    %v1858 = vld [vmem:[#allocation5 + $0xd0] sm:$0xff]
    %v1859 = vld [vmem:[#allocation5 + $0xd8] sm:$0xff]
    %v1860 = vld [vmem:[#allocation5 + $0xe0] sm:$0xff]
    %v1861 = vld [vmem:[#allocation5 + $0xe8] sm:$0xff]
    %v1862 = vld [vmem:[#allocation5 + $0xf0] sm:$0xff]
    %v1863 = vld [vmem:[#allocation5 + $0xf8] sm:$0xff]
    %v1864 = vld [vmem:[#allocation5 + $0x100] sm:$0xff]
    %v1865 = vld [vmem:[#allocation5 + $0x108] sm:$0xff]
    %v1866 = vld [vmem:[#allocation5 + $0x110] sm:$0xff]
    %v1867 = vld [vmem:[#allocation5 + $0x118] sm:$0xff]
    %v1868 = vld [vmem:[#allocation5 + $0x120] sm:$0xff]
    %v1869 = vld [vmem:[#allocation5 + $0x128] sm:$0xff]
    %v1870 = vld [vmem:[#allocation5 + $0x130] sm:$0xff]
    %v1871 = vld [vmem:[#allocation5 + $0x138] sm:$0xff]
    %v1872 = vld [vmem:[#allocation5 + $0x140] sm:$0xff]
    %v1873 = vld [vmem:[#allocation5 + $0x148] sm:$0xff]
    %v1874 = vld [vmem:[#allocation5 + $0x150] sm:$0xff]
    %v1875 = vld [vmem:[#allocation5 + $0x158] sm:$0xff]
    %v1876 = vld [vmem:[#allocation5 + $0x160] sm:$0xff]
    %v1877 = vld [vmem:[#allocation5 + $0x168] sm:$0xff]
    %v1878 = vld [vmem:[#allocation5 + $0x170] sm:$0xff]
    %v1879 = vld [vmem:[#allocation5 + $0x178] sm:$0xff]
    %v1880 = vld [vmem:[#allocation5 + $0x180] sm:$0xff]
    %v1881 = vld [vmem:[#allocation5 + $0x188] sm:$0xff]
    %v1882 = vld [vmem:[#allocation5 + $0x190] sm:$0xff]
    %v1883 = vld [vmem:[#allocation5 + $0x198] sm:$0xff]
    %v1884 = vld [vmem:[#allocation5 + $0x1a0] sm:$0xff]
    %v1885 = vld [vmem:[#allocation5 + $0x1a8] sm:$0xff]
    %v1886 = vld [vmem:[#allocation5 + $0x1b0] sm:$0xff]
    %v1887 = vld [vmem:[#allocation5 + $0x1b8] sm:$0xff]
    %v1888 = vld [vmem:[#allocation5 + $0x1c0] sm:$0xff]
    %v1889 = vld [vmem:[#allocation5 + $0x1c8] sm:$0xff]
    %v1890 = vld [vmem:[#allocation5 + $0x1d0] sm:$0xff]
    %v1891 = vld [vmem:[#allocation5 + $0x1d8] sm:$0xff]
    %v1892 = vld [vmem:[#allocation5 + $0x1e0] sm:$0xff]
    %v1893 = vld [vmem:[#allocation5 + $0x1e8] sm:$0xff]
    %v1894 = vld [vmem:[#allocation5 + $0x1f0] sm:$0xff]
    %v1895 = vld [vmem:[#allocation5 + $0x1f8] sm:$0xff]
    %v1896 = vld [vmem:[#allocation5 + $0x200] sm:$0xff]
    %v1897 = vld [vmem:[#allocation5 + $0x208] sm:$0xff]
    %v1898 = vld [vmem:[#allocation5 + $0x210] sm:$0xff]
    %v1899 = vld [vmem:[#allocation5 + $0x218] sm:$0xff]
    %v1900 = vld [vmem:[#allocation5 + $0x220] sm:$0xff]
    %v1901 = vld [vmem:[#allocation5 + $0x228] sm:$0xff]
    %v1902 = vld [vmem:[#allocation5 + $0x230] sm:$0xff]
    %v1903 = vld [vmem:[#allocation5 + $0x238] sm:$0xff]
    %v1904 = vld [vmem:[#allocation5 + $0x240] sm:$0xff]
    %v1905 = vld [vmem:[#allocation5 + $0x248] sm:$0xff]
    %v1906 = vld [vmem:[#allocation5 + $0x250] sm:$0xff]
    %v1907 = vld [vmem:[#allocation5 + $0x258] sm:$0xff]
    %v1908 = vld [vmem:[#allocation5 + $0x260] sm:$0xff]
    %v1909 = vld [vmem:[#allocation5 + $0x268] sm:$0xff]
    %v1910 = vld [vmem:[#allocation5 + $0x270] sm:$0xff]
    %v1911 = vld [vmem:[#allocation5 + $0x278] sm:$0xff]
    %v1912 = vld [vmem:[#allocation5 + $0x280] sm:$0xff]
    %v1913 = vld [vmem:[#allocation5 + $0x288] sm:$0xff]
    %v1914 = vld [vmem:[#allocation5 + $0x290] sm:$0xff]
    %v1915 = vld [vmem:[#allocation5 + $0x298] sm:$0xff]
    %v1916 = vld [vmem:[#allocation5 + $0x2a0] sm:$0xff]
    %v1917 = vld [vmem:[#allocation5 + $0x2a8] sm:$0xff]
    %v1918 = vld [vmem:[#allocation5 + $0x2b0] sm:$0xff]
    %v1919 = vld [vmem:[#allocation5 + $0x2b8] sm:$0xff]
    %v1920 = vld [vmem:[#allocation5 + $0x2c0] sm:$0xff]
    %v1921 = vld [vmem:[#allocation5 + $0x2c8] sm:$0xff]
    %v1922 = vld [vmem:[#allocation5 + $0x2d0] sm:$0xff]
    %v1923 = vld [vmem:[#allocation5 + $0x2d8] sm:$0xff]
    %v1924 = vld [vmem:[#allocation5 + $0x2e0] sm:$0xff]
    %v1925 = vld [vmem:[#allocation5 + $0x2e8] sm:$0xff]
    %v1926 = vld [vmem:[#allocation5 + $0x2f0] sm:$0xff]
    %v1927 = vld [vmem:[#allocation5 + $0x2f8] sm:$0xff]
    %v1928 = vld [vmem:[#allocation5 + $0x300] sm:$0xff]
    %v1929 = vld [vmem:[#allocation5 + $0x308] sm:$0xff]
    %v1930 = vld [vmem:[#allocation5 + $0x310] sm:$0xff]
    %v1931 = vld [vmem:[#allocation5 + $0x318] sm:$0xff]
    %v1932 = vld [vmem:[#allocation5 + $0x320] sm:$0xff]
    %v1933 = vld [vmem:[#allocation5 + $0x328] sm:$0xff]
    %v1934 = vld [vmem:[#allocation5 + $0x330] sm:$0xff]
    %v1935 = vld [vmem:[#allocation5 + $0x338] sm:$0xff]
    %v1936 = vld [vmem:[#allocation5 + $0x340] sm:$0xff]
    %v1937 = vld [vmem:[#allocation5 + $0x348] sm:$0xff]
    %v1938 = vld [vmem:[#allocation5 + $0x350] sm:$0xff]
    %v1939 = vld [vmem:[#allocation5 + $0x358] sm:$0xff]
    %v1940 = vld [vmem:[#allocation5 + $0x360] sm:$0xff]
    %v1941 = vld [vmem:[#allocation5 + $0x368] sm:$0xff]
    %v1942 = vld [vmem:[#allocation5 + $0x370] sm:$0xff]
    %v1943 = vld [vmem:[#allocation5 + $0x378] sm:$0xff]
    %v1944 = vld [vmem:[#allocation5 + $0x380] sm:$0xff]
    %v1945 = vld [vmem:[#allocation5 + $0x388] sm:$0xff]
    %v1946 = vld [vmem:[#allocation5 + $0x390] sm:$0xff]
    %v1947 = vld [vmem:[#allocation5 + $0x398] sm:$0xff]
    %v1948 = vld [vmem:[#allocation5 + $0x3a0] sm:$0xff]
    %v1949 = vld [vmem:[#allocation5 + $0x3a8] sm:$0xff]
    %v1950 = vld [vmem:[#allocation5 + $0x3b0] sm:$0xff]
    %v1951 = vld [vmem:[#allocation5 + $0x3b8] sm:$0xff]
    %v1952 = vld [vmem:[#allocation5 + $0x3c0] sm:$0xff]
    %v1953 = vld [vmem:[#allocation5 + $0x3c8] sm:$0xff]
    %v1954 = vld [vmem:[#allocation5 + $0x3d0] sm:$0xff]
    %v1955 = vld [vmem:[#allocation5 + $0x3d8] sm:$0xff]
    %v1956 = vld [vmem:[#allocation5 + $0x3e0] sm:$0xff]
    %v1957 = vld [vmem:[#allocation5 + $0x3e8] sm:$0xff]
    %v1958 = vld [vmem:[#allocation5 + $0x3f0] sm:$0xff]
    %v1959 = vld [vmem:[#allocation5 + $0x3f8] sm:$0xff]
    %v1960 = vld [vmem:[%s6] sm:$0xf]
    %v1962 = vperm.slane %v1960, 0
    %v1963 = vperm.slane %v1960, 1
    %v1964 = vperm.slane %v1960, 2
    %v1965 = vperm.slane %v1960, 3
    %v1972 = vunpack.c.l.b16 %v1830
    %v1973 = vunpack.c.h.b16 %v1830
    %v1974 = vunpack.c.l.b16 %v1831
    %v1975 = vunpack.c.h.b16 %v1831
    %v1976 = vpack.c.b16 %v1972, %v1972
    %v1977 = vpack.c.b16 %v1973, %v1973
    %v1978 = vpack.c.b16 %v1974, %v1974
    %v1979 = vpack.c.b16 %v1975, %v1975
    %v2112 = vunpack.c.l.b16 %v1832
    %v2113 = vunpack.c.h.b16 %v1832
    %v2114 = vunpack.c.l.b16 %v1833
    %v2115 = vunpack.c.h.b16 %v1833
    %v2116 = vunpack.c.l.b16 %v1834
    %v2117 = vunpack.c.h.b16 %v1834
    %v2118 = vunpack.c.l.b16 %v1835
    %v2119 = vunpack.c.h.b16 %v1835
    %v2120 = vunpack.c.l.b16 %v1836
    %v2121 = vunpack.c.h.b16 %v1836
    %v2122 = vunpack.c.l.b16 %v1837
    %v2123 = vunpack.c.h.b16 %v1837
    %v2124 = vunpack.c.l.b16 %v1838
    %v2125 = vunpack.c.h.b16 %v1838
    %v2126 = vunpack.c.l.b16 %v1839
    %v2127 = vunpack.c.h.b16 %v1839
    %v2128 = vunpack.c.l.b16 %v1840
    %v2129 = vunpack.c.h.b16 %v1840
    %v2130 = vunpack.c.l.b16 %v1841
    %v2131 = vunpack.c.h.b16 %v1841
    %v2132 = vunpack.c.l.b16 %v1842
    %v2133 = vunpack.c.h.b16 %v1842
    %v2134 = vunpack.c.l.b16 %v1843
    %v2135 = vunpack.c.h.b16 %v1843
    %v2136 = vunpack.c.l.b16 %v1844
    %v2137 = vunpack.c.h.b16 %v1844
    %v2138 = vunpack.c.l.b16 %v1845
    %v2139 = vunpack.c.h.b16 %v1845
    %v2140 = vunpack.c.l.b16 %v1846
    %v2141 = vunpack.c.h.b16 %v1846
    %v2142 = vunpack.c.l.b16 %v1847
    %v2143 = vunpack.c.h.b16 %v1847
    %v2144 = vunpack.c.l.b16 %v1848
    %v2145 = vunpack.c.h.b16 %v1848
    %v2146 = vunpack.c.l.b16 %v1849
    %v2147 = vunpack.c.h.b16 %v1849
    %v2148 = vunpack.c.l.b16 %v1850
    %v2149 = vunpack.c.h.b16 %v1850
    %v2150 = vunpack.c.l.b16 %v1851
    %v2151 = vunpack.c.h.b16 %v1851
    %v2152 = vunpack.c.l.b16 %v1852
    %v2153 = vunpack.c.h.b16 %v1852
    %v2154 = vunpack.c.l.b16 %v1853
    %v2155 = vunpack.c.h.b16 %v1853
    %v2156 = vunpack.c.l.b16 %v1854
    %v2157 = vunpack.c.h.b16 %v1854
    %v2158 = vunpack.c.l.b16 %v1855
    %v2159 = vunpack.c.h.b16 %v1855
    %v2160 = vunpack.c.l.b16 %v1856
    %v2161 = vunpack.c.h.b16 %v1856
    %v2162 = vunpack.c.l.b16 %v1857
    %v2163 = vunpack.c.h.b16 %v1857
    %v2164 = vunpack.c.l.b16 %v1858
    %v2165 = vunpack.c.h.b16 %v1858
    %v2166 = vunpack.c.l.b16 %v1859
    %v2167 = vunpack.c.h.b16 %v1859
    %v2168 = vunpack.c.l.b16 %v1860
    %v2169 = vunpack.c.h.b16 %v1860
    %v2170 = vunpack.c.l.b16 %v1861
    %v2171 = vunpack.c.h.b16 %v1861
    %v2172 = vunpack.c.l.b16 %v1862
    %v2173 = vunpack.c.h.b16 %v1862
    %v2174 = vunpack.c.l.b16 %v1863
    %v2175 = vunpack.c.h.b16 %v1863
    %v2176 = vunpack.c.l.b16 %v1864
    %v2177 = vunpack.c.h.b16 %v1864
    %v2178 = vunpack.c.l.b16 %v1865
    %v2179 = vunpack.c.h.b16 %v1865
    %v2180 = vunpack.c.l.b16 %v1866
    %v2181 = vunpack.c.h.b16 %v1866
    %v2182 = vunpack.c.l.b16 %v1867
    %v2183 = vunpack.c.h.b16 %v1867
    %v2184 = vunpack.c.l.b16 %v1868
    %v2185 = vunpack.c.h.b16 %v1868
    %v2186 = vunpack.c.l.b16 %v1869
    %v2187 = vunpack.c.h.b16 %v1869
    %v2188 = vunpack.c.l.b16 %v1870
    %v2189 = vunpack.c.h.b16 %v1870
    %v2190 = vunpack.c.l.b16 %v1871
    %v2191 = vunpack.c.h.b16 %v1871
    %v2192 = vunpack.c.l.b16 %v1872
    %v2193 = vunpack.c.h.b16 %v1872
    %v2194 = vunpack.c.l.b16 %v1873
    %v2195 = vunpack.c.h.b16 %v1873
    %v2196 = vunpack.c.l.b16 %v1874
    %v2197 = vunpack.c.h.b16 %v1874
    %v2198 = vunpack.c.l.b16 %v1875
    %v2199 = vunpack.c.h.b16 %v1875
    %v2200 = vunpack.c.l.b16 %v1876
    %v2201 = vunpack.c.h.b16 %v1876
    %v2202 = vunpack.c.l.b16 %v1877
    %v2203 = vunpack.c.h.b16 %v1877
    %v2204 = vunpack.c.l.b16 %v1878
    %v2205 = vunpack.c.h.b16 %v1878
    %v2206 = vunpack.c.l.b16 %v1879
    %v2207 = vunpack.c.h.b16 %v1879
    %v2208 = vunpack.c.l.b16 %v1880
    %v2209 = vunpack.c.h.b16 %v1880
    %v2210 = vunpack.c.l.b16 %v1881
    %v2211 = vunpack.c.h.b16 %v1881
    %v2212 = vunpack.c.l.b16 %v1882
    %v2213 = vunpack.c.h.b16 %v1882
    %v2214 = vunpack.c.l.b16 %v1883
    %v2215 = vunpack.c.h.b16 %v1883
    %v2216 = vunpack.c.l.b16 %v1884
    %v2217 = vunpack.c.h.b16 %v1884
    %v2218 = vunpack.c.l.b16 %v1885
    %v2219 = vunpack.c.h.b16 %v1885
    %v2220 = vunpack.c.l.b16 %v1886
    %v2221 = vunpack.c.h.b16 %v1886
    %v2222 = vunpack.c.l.b16 %v1887
    %v2223 = vunpack.c.h.b16 %v1887
    %v2224 = vunpack.c.l.b16 %v1888
    %v2225 = vunpack.c.h.b16 %v1888
    %v2226 = vunpack.c.l.b16 %v1889
    %v2227 = vunpack.c.h.b16 %v1889
    %v2228 = vunpack.c.l.b16 %v1890
    %v2229 = vunpack.c.h.b16 %v1890
    %v2230 = vunpack.c.l.b16 %v1891
    %v2231 = vunpack.c.h.b16 %v1891
    %v2232 = vunpack.c.l.b16 %v1892
    %v2233 = vunpack.c.h.b16 %v1892
    %v2234 = vunpack.c.l.b16 %v1893
    %v2235 = vunpack.c.h.b16 %v1893
    %v2236 = vunpack.c.l.b16 %v1894
    %v2237 = vunpack.c.h.b16 %v1894
    %v2238 = vunpack.c.l.b16 %v1895
    %v2239 = vunpack.c.h.b16 %v1895
    %v2240 = vunpack.c.l.b16 %v1896
    %v2241 = vunpack.c.h.b16 %v1896
    %v2242 = vunpack.c.l.b16 %v1897
    %v2243 = vunpack.c.h.b16 %v1897
    %v2244 = vunpack.c.l.b16 %v1898
    %v2245 = vunpack.c.h.b16 %v1898
    %v2246 = vunpack.c.l.b16 %v1899
    %v2247 = vunpack.c.h.b16 %v1899
    %v2248 = vunpack.c.l.b16 %v1900
    %v2249 = vunpack.c.h.b16 %v1900
    %v2250 = vunpack.c.l.b16 %v1901
    %v2251 = vunpack.c.h.b16 %v1901
    %v2252 = vunpack.c.l.b16 %v1902
    %v2253 = vunpack.c.h.b16 %v1902
    %v2254 = vunpack.c.l.b16 %v1903
    %v2255 = vunpack.c.h.b16 %v1903
    %v2256 = vunpack.c.l.b16 %v1904
    %v2257 = vunpack.c.h.b16 %v1904
    %v2258 = vunpack.c.l.b16 %v1905
    %v2259 = vunpack.c.h.b16 %v1905
    %v2260 = vunpack.c.l.b16 %v1906
    %v2261 = vunpack.c.h.b16 %v1906
    %v2262 = vunpack.c.l.b16 %v1907
    %v2263 = vunpack.c.h.b16 %v1907
    %v2264 = vunpack.c.l.b16 %v1908
    %v2265 = vunpack.c.h.b16 %v1908
    %v2266 = vunpack.c.l.b16 %v1909
    %v2267 = vunpack.c.h.b16 %v1909
    %v2268 = vunpack.c.l.b16 %v1910
    %v2269 = vunpack.c.h.b16 %v1910
    %v2270 = vunpack.c.l.b16 %v1911
    %v2271 = vunpack.c.h.b16 %v1911
    %v2272 = vunpack.c.l.b16 %v1912
    %v2273 = vunpack.c.h.b16 %v1912
    %v2274 = vunpack.c.l.b16 %v1913
    %v2275 = vunpack.c.h.b16 %v1913
    %v2276 = vunpack.c.l.b16 %v1914
    %v2277 = vunpack.c.h.b16 %v1914
    %v2278 = vunpack.c.l.b16 %v1915
    %v2279 = vunpack.c.h.b16 %v1915
    %v2280 = vunpack.c.l.b16 %v1916
    %v2281 = vunpack.c.h.b16 %v1916
    %v2282 = vunpack.c.l.b16 %v1917
    %v2283 = vunpack.c.h.b16 %v1917
    %v2284 = vunpack.c.l.b16 %v1918
    %v2285 = vunpack.c.h.b16 %v1918
    %v2286 = vunpack.c.l.b16 %v1919
    %v2287 = vunpack.c.h.b16 %v1919
    %v2288 = vunpack.c.l.b16 %v1920
    %v2289 = vunpack.c.h.b16 %v1920
    %v2290 = vunpack.c.l.b16 %v1921
    %v2291 = vunpack.c.h.b16 %v1921
    %v2292 = vunpack.c.l.b16 %v1922
    %v2293 = vunpack.c.h.b16 %v1922
    %v2294 = vunpack.c.l.b16 %v1923
    %v2295 = vunpack.c.h.b16 %v1923
    %v2296 = vunpack.c.l.b16 %v1924
    %v2297 = vunpack.c.h.b16 %v1924
    %v2298 = vunpack.c.l.b16 %v1925
    %v2299 = vunpack.c.h.b16 %v1925
    %v2300 = vunpack.c.l.b16 %v1926
    %v2301 = vunpack.c.h.b16 %v1926
    %v2302 = vunpack.c.l.b16 %v1927
    %v2303 = vunpack.c.h.b16 %v1927
    %v2304 = vunpack.c.l.b16 %v1928
    %v2305 = vunpack.c.h.b16 %v1928
    %v2306 = vunpack.c.l.b16 %v1929
    %v2307 = vunpack.c.h.b16 %v1929
    %v2308 = vunpack.c.l.b16 %v1930
    %v2309 = vunpack.c.h.b16 %v1930
    %v2310 = vunpack.c.l.b16 %v1931
    %v2311 = vunpack.c.h.b16 %v1931
    %v2312 = vunpack.c.l.b16 %v1932
    %v2313 = vunpack.c.h.b16 %v1932
    %v2314 = vunpack.c.l.b16 %v1933
    %v2315 = vunpack.c.h.b16 %v1933
    %v2316 = vunpack.c.l.b16 %v1934
    %v2317 = vunpack.c.h.b16 %v1934
    %v2318 = vunpack.c.l.b16 %v1935
    %v2319 = vunpack.c.h.b16 %v1935
    %v2320 = vunpack.c.l.b16 %v1936
    %v2321 = vunpack.c.h.b16 %v1936
    %v2322 = vunpack.c.l.b16 %v1937
    %v2323 = vunpack.c.h.b16 %v1937
    %v2324 = vunpack.c.l.b16 %v1938
    %v2325 = vunpack.c.h.b16 %v1938
    %v2326 = vunpack.c.l.b16 %v1939
    %v2327 = vunpack.c.h.b16 %v1939
    %v2328 = vunpack.c.l.b16 %v1940
    %v2329 = vunpack.c.h.b16 %v1940
    %v2330 = vunpack.c.l.b16 %v1941
    %v2331 = vunpack.c.h.b16 %v1941
    %v2332 = vunpack.c.l.b16 %v1942
    %v2333 = vunpack.c.h.b16 %v1942
    %v2334 = vunpack.c.l.b16 %v1943
    %v2335 = vunpack.c.h.b16 %v1943
    %v2336 = vunpack.c.l.b16 %v1944
    %v2337 = vunpack.c.h.b16 %v1944
    %v2338 = vunpack.c.l.b16 %v1945
    %v2339 = vunpack.c.h.b16 %v1945
    %v2340 = vunpack.c.l.b16 %v1946
    %v2341 = vunpack.c.h.b16 %v1946
    %v2342 = vunpack.c.l.b16 %v1947
    %v2343 = vunpack.c.h.b16 %v1947
    %v2344 = vunpack.c.l.b16 %v1948
    %v2345 = vunpack.c.h.b16 %v1948
    %v2346 = vunpack.c.l.b16 %v1949
    %v2347 = vunpack.c.h.b16 %v1949
    %v2348 = vunpack.c.l.b16 %v1950
    %v2349 = vunpack.c.h.b16 %v1950
    %v2350 = vunpack.c.l.b16 %v1951
    %v2351 = vunpack.c.h.b16 %v1951
    %v2352 = vunpack.c.l.b16 %v1952
    %v2353 = vunpack.c.h.b16 %v1952
    %v2354 = vunpack.c.l.b16 %v1953
    %v2355 = vunpack.c.h.b16 %v1953
    %v2356 = vunpack.c.l.b16 %v1954
    %v2357 = vunpack.c.h.b16 %v1954
    %v2358 = vunpack.c.l.b16 %v1955
    %v2359 = vunpack.c.h.b16 %v1955
    %v2360 = vunpack.c.l.b16 %v1956
    %v2361 = vunpack.c.h.b16 %v1956
    %v2362 = vunpack.c.l.b16 %v1957
    %v2363 = vunpack.c.h.b16 %v1957
    %v2364 = vunpack.c.l.b16 %v1958
    %v2365 = vunpack.c.h.b16 %v1958
    %v2366 = vunpack.c.l.b16 %v1959
    %v2367 = vunpack.c.h.b16 %v1959
    %v2368 = vpack.c.b16 %v2116, %v2112
    %v2369 = vpack.c.b16 %v2117, %v2113
    %v2370 = vpack.c.b16 %v2118, %v2114
    %v2371 = vpack.c.b16 %v2119, %v2115
    %v2372 = vpack.c.b16 %v2124, %v2120
    %v2373 = vpack.c.b16 %v2125, %v2121
    %v2374 = vpack.c.b16 %v2126, %v2122
    %v2375 = vpack.c.b16 %v2127, %v2123
    %v2376 = vpack.c.b16 %v2132, %v2128
    %v2377 = vpack.c.b16 %v2133, %v2129
    %v2378 = vpack.c.b16 %v2134, %v2130
    %v2379 = vpack.c.b16 %v2135, %v2131
    %v2380 = vpack.c.b16 %v2140, %v2136
    %v2381 = vpack.c.b16 %v2141, %v2137
    %v2382 = vpack.c.b16 %v2142, %v2138
    %v2383 = vpack.c.b16 %v2143, %v2139
    %v2384 = vpack.c.b16 %v2148, %v2144
    %v2385 = vpack.c.b16 %v2149, %v2145
    %v2386 = vpack.c.b16 %v2150, %v2146
    %v2387 = vpack.c.b16 %v2151, %v2147
    %v2388 = vpack.c.b16 %v2156, %v2152
    %v2389 = vpack.c.b16 %v2157, %v2153
    %v2390 = vpack.c.b16 %v2158, %v2154
    %v2391 = vpack.c.b16 %v2159, %v2155
    %v2392 = vpack.c.b16 %v2164, %v2160
    %v2393 = vpack.c.b16 %v2165, %v2161
    %v2394 = vpack.c.b16 %v2166, %v2162
    %v2395 = vpack.c.b16 %v2167, %v2163
    %v2396 = vpack.c.b16 %v2172, %v2168
    %v2397 = vpack.c.b16 %v2173, %v2169
    %v2398 = vpack.c.b16 %v2174, %v2170
    %v2399 = vpack.c.b16 %v2175, %v2171
    %v2400 = vpack.c.b16 %v2180, %v2176
    %v2401 = vpack.c.b16 %v2181, %v2177
    %v2402 = vpack.c.b16 %v2182, %v2178
    %v2403 = vpack.c.b16 %v2183, %v2179
    %v2404 = vpack.c.b16 %v2188, %v2184
    %v2405 = vpack.c.b16 %v2189, %v2185
    %v2406 = vpack.c.b16 %v2190, %v2186
    %v2407 = vpack.c.b16 %v2191, %v2187
    %v2408 = vpack.c.b16 %v2196, %v2192
    %v2409 = vpack.c.b16 %v2197, %v2193
    %v2410 = vpack.c.b16 %v2198, %v2194
    %v2411 = vpack.c.b16 %v2199, %v2195
    %v2412 = vpack.c.b16 %v2204, %v2200
    %v2413 = vpack.c.b16 %v2205, %v2201
    %v2414 = vpack.c.b16 %v2206, %v2202
    %v2415 = vpack.c.b16 %v2207, %v2203
    %v2416 = vpack.c.b16 %v2212, %v2208
    %v2417 = vpack.c.b16 %v2213, %v2209
    %v2418 = vpack.c.b16 %v2214, %v2210
    %v2419 = vpack.c.b16 %v2215, %v2211
    %v2420 = vpack.c.b16 %v2220, %v2216
    %v2421 = vpack.c.b16 %v2221, %v2217
    %v2422 = vpack.c.b16 %v2222, %v2218
    %v2423 = vpack.c.b16 %v2223, %v2219
    %v2424 = vpack.c.b16 %v2228, %v2224
    %v2425 = vpack.c.b16 %v2229, %v2225
    %v2426 = vpack.c.b16 %v2230, %v2226
    %v2427 = vpack.c.b16 %v2231, %v2227
    %v2428 = vpack.c.b16 %v2236, %v2232
    %v2429 = vpack.c.b16 %v2237, %v2233
    %v2430 = vpack.c.b16 %v2238, %v2234
    %v2431 = vpack.c.b16 %v2239, %v2235
    %v2432 = vpack.c.b16 %v2244, %v2240
    %v2433 = vpack.c.b16 %v2245, %v2241
    %v2434 = vpack.c.b16 %v2246, %v2242
    %v2435 = vpack.c.b16 %v2247, %v2243
    %v2436 = vpack.c.b16 %v2252, %v2248
    %v2437 = vpack.c.b16 %v2253, %v2249
    %v2438 = vpack.c.b16 %v2254, %v2250
    %v2439 = vpack.c.b16 %v2255, %v2251
    %v2440 = vpack.c.b16 %v2260, %v2256
    %v2441 = vpack.c.b16 %v2261, %v2257
    %v2442 = vpack.c.b16 %v2262, %v2258
    %v2443 = vpack.c.b16 %v2263, %v2259
    %v2444 = vpack.c.b16 %v2268, %v2264
    %v2445 = vpack.c.b16 %v2269, %v2265
    %v2446 = vpack.c.b16 %v2270, %v2266
    %v2447 = vpack.c.b16 %v2271, %v2267
    %v2448 = vpack.c.b16 %v2276, %v2272
    %v2449 = vpack.c.b16 %v2277, %v2273
    %v2450 = vpack.c.b16 %v2278, %v2274
    %v2451 = vpack.c.b16 %v2279, %v2275
    %v2452 = vpack.c.b16 %v2284, %v2280
    %v2453 = vpack.c.b16 %v2285, %v2281
    %v2454 = vpack.c.b16 %v2286, %v2282
    %v2455 = vpack.c.b16 %v2287, %v2283
    %v2456 = vpack.c.b16 %v2292, %v2288
    %v2457 = vpack.c.b16 %v2293, %v2289
    %v2458 = vpack.c.b16 %v2294, %v2290
    %v2459 = vpack.c.b16 %v2295, %v2291
    %v2460 = vpack.c.b16 %v2300, %v2296
    %v2461 = vpack.c.b16 %v2301, %v2297
    %v2462 = vpack.c.b16 %v2302, %v2298
    %v2463 = vpack.c.b16 %v2303, %v2299
    %v2464 = vpack.c.b16 %v2308, %v2304
    %v2465 = vpack.c.b16 %v2309, %v2305
    %v2466 = vpack.c.b16 %v2310, %v2306
    %v2467 = vpack.c.b16 %v2311, %v2307
    %v2468 = vpack.c.b16 %v2316, %v2312
    %v2469 = vpack.c.b16 %v2317, %v2313
    %v2470 = vpack.c.b16 %v2318, %v2314
    %v2471 = vpack.c.b16 %v2319, %v2315
    %v2472 = vpack.c.b16 %v2324, %v2320
    %v2473 = vpack.c.b16 %v2325, %v2321
    %v2474 = vpack.c.b16 %v2326, %v2322
    %v2475 = vpack.c.b16 %v2327, %v2323
    %v2476 = vpack.c.b16 %v2332, %v2328
    %v2477 = vpack.c.b16 %v2333, %v2329
    %v2478 = vpack.c.b16 %v2334, %v2330
    %v2479 = vpack.c.b16 %v2335, %v2331
    %v2480 = vpack.c.b16 %v2340, %v2336
    %v2481 = vpack.c.b16 %v2341, %v2337
    %v2482 = vpack.c.b16 %v2342, %v2338
    %v2483 = vpack.c.b16 %v2343, %v2339
    %v2484 = vpack.c.b16 %v2348, %v2344
    %v2485 = vpack.c.b16 %v2349, %v2345
    %v2486 = vpack.c.b16 %v2350, %v2346
    %v2487 = vpack.c.b16 %v2351, %v2347
    %v2488 = vpack.c.b16 %v2356, %v2352
    %v2489 = vpack.c.b16 %v2357, %v2353
    %v2490 = vpack.c.b16 %v2358, %v2354
    %v2491 = vpack.c.b16 %v2359, %v2355
    %v2492 = vpack.c.b16 %v2364, %v2360
    %v2493 = vpack.c.b16 %v2365, %v2361
    %v2494 = vpack.c.b16 %v2366, %v2362
    %v2495 = vpack.c.b16 %v2367, %v2363
    %2624 = vmatpush.bf16.msra.mxu0 %v2396
    %2625 = vmatpush.bf16.msra.mxu0 %v2392
    %2626 = vmatpush.bf16.msra.mxu0 %v2388
    %2627 = vmatpush.bf16.msra.mxu0 %v2384
    %2628 = vmatpush.bf16.msra.mxu0 %v2380
    %2629 = vmatpush.bf16.msra.mxu0 %v2376
    %2630 = vmatpush.bf16.msra.mxu0 %v2372
    %2631 = vmatpush.bf16.msra.mxu0 %v2368
    %2632 = vmatmul.bf16.gmra.mxu0 %v1976
    %v2633 = vpop.f32.mrf.mxu0
    %v2634 = vadd.f32 %v1962, %v2633
    %v2635 = vpop.f32.mrf.mxu0
    %2636 = vdwg.mxu0
    %2637 = vmatpush.bf16.msra.mxu0 %v2428
    %2638 = vmatpush.bf16.msra.mxu0 %v2424
    %2639 = vmatpush.bf16.msra.mxu0 %v2420
    %2640 = vmatpush.bf16.msra.mxu0 %v2416
    %2641 = vmatpush.bf16.msra.mxu0 %v2412
    %2642 = vmatpush.bf16.msra.mxu0 %v2408
    %2643 = vmatpush.bf16.msra.mxu0 %v2404
    %2644 = vmatpush.bf16.msra.mxu0 %v2400
    %2645 = vmatmul.bf16.gmra.mxu0 %v1977
    %v2646 = vpop.f32.mrf.mxu0
    %v2647 = vadd.f32 %v2634, %v2646
    %v2648 = vpop.f32.mrf.mxu0
    %2649 = vdwg.mxu0
    %2650 = vmatpush.bf16.msra.mxu0 %v2460
    %2651 = vmatpush.bf16.msra.mxu0 %v2456
    %2652 = vmatpush.bf16.msra.mxu0 %v2452
    %2653 = vmatpush.bf16.msra.mxu0 %v2448
    %2654 = vmatpush.bf16.msra.mxu0 %v2444
    %2655 = vmatpush.bf16.msra.mxu0 %v2440
    %2656 = vmatpush.bf16.msra.mxu0 %v2436
    %2657 = vmatpush.bf16.msra.mxu0 %v2432
    %2658 = vmatmul.bf16.gmra.mxu0 %v1978
    %v2659 = vpop.f32.mrf.mxu0
    %v2660 = vadd.f32 %v2647, %v2659
    %v2661 = vpop.f32.mrf.mxu0
    %2662 = vdwg.mxu0
    %2663 = vmatpush.bf16.msra.mxu0 %v2492
    %2664 = vmatpush.bf16.msra.mxu0 %v2488
    %2665 = vmatpush.bf16.msra.mxu0 %v2484
    %2666 = vmatpush.bf16.msra.mxu0 %v2480
    %2667 = vmatpush.bf16.msra.mxu0 %v2476
    %2668 = vmatpush.bf16.msra.mxu0 %v2472
    %2669 = vmatpush.bf16.msra.mxu0 %v2468
    %2670 = vmatpush.bf16.msra.mxu0 %v2464
    %2671 = vmatmul.bf16.gmra.mxu0 %v1979
    %v2672 = vpop.f32.mrf.mxu0
    %v2673 = vadd.f32 %v2660, %v2672
    %v2674 = vpop.f32.mrf.mxu0
    %2675 = vdwg.mxu0
    %2676 = vmatpush.bf16.msra.mxu0 %v2397
    %2677 = vmatpush.bf16.msra.mxu0 %v2393
    %2678 = vmatpush.bf16.msra.mxu0 %v2389
    %2679 = vmatpush.bf16.msra.mxu0 %v2385
    %2680 = vmatpush.bf16.msra.mxu0 %v2381
    %2681 = vmatpush.bf16.msra.mxu0 %v2377
    %2682 = vmatpush.bf16.msra.mxu0 %v2373
    %2683 = vmatpush.bf16.msra.mxu0 %v2369
    %2684 = vmatmul.bf16.gmra.mxu0 %v1976
    %v2685 = vpop.f32.mrf.mxu0
    %v2686 = vadd.f32 %v1963, %v2685
    %v2687 = vpop.f32.mrf.mxu0
    %2688 = vdwg.mxu0
    %2689 = vmatpush.bf16.msra.mxu0 %v2429
    %2690 = vmatpush.bf16.msra.mxu0 %v2425
    %2691 = vmatpush.bf16.msra.mxu0 %v2421
    %2692 = vmatpush.bf16.msra.mxu0 %v2417
    %2693 = vmatpush.bf16.msra.mxu0 %v2413
    %2694 = vmatpush.bf16.msra.mxu0 %v2409
    %2695 = vmatpush.bf16.msra.mxu0 %v2405
    %2696 = vmatpush.bf16.msra.mxu0 %v2401
    %2697 = vmatmul.bf16.gmra.mxu0 %v1977
    %v2698 = vpop.f32.mrf.mxu0
    %v2699 = vadd.f32 %v2686, %v2698
    %v2700 = vpop.f32.mrf.mxu0
    %2701 = vdwg.mxu0
    %2702 = vmatpush.bf16.msra.mxu0 %v2461
    %2703 = vmatpush.bf16.msra.mxu0 %v2457
    %2704 = vmatpush.bf16.msra.mxu0 %v2453
    %2705 = vmatpush.bf16.msra.mxu0 %v2449
    %2706 = vmatpush.bf16.msra.mxu0 %v2445
    %2707 = vmatpush.bf16.msra.mxu0 %v2441
    %2708 = vmatpush.bf16.msra.mxu0 %v2437
    %2709 = vmatpush.bf16.msra.mxu0 %v2433
    %2710 = vmatmul.bf16.gmra.mxu0 %v1978
    %v2711 = vpop.f32.mrf.mxu0
    %v2712 = vadd.f32 %v2699, %v2711
    %v2713 = vpop.f32.mrf.mxu0
    %2714 = vdwg.mxu0
    %2715 = vmatpush.bf16.msra.mxu0 %v2493
    %2716 = vmatpush.bf16.msra.mxu0 %v2489
    %2717 = vmatpush.bf16.msra.mxu0 %v2485
    %2718 = vmatpush.bf16.msra.mxu0 %v2481
    %2719 = vmatpush.bf16.msra.mxu0 %v2477
    %2720 = vmatpush.bf16.msra.mxu0 %v2473
    %2721 = vmatpush.bf16.msra.mxu0 %v2469
    %2722 = vmatpush.bf16.msra.mxu0 %v2465
    %2723 = vmatmul.bf16.gmra.mxu0 %v1979
    %v2724 = vpop.f32.mrf.mxu0
    %v2725 = vadd.f32 %v2712, %v2724
    %v2726 = vpop.f32.mrf.mxu0
    %2727 = vdwg.mxu0
    %2728 = vmatpush.bf16.msra.mxu0 %v2398
    %2729 = vmatpush.bf16.msra.mxu0 %v2394
    %2730 = vmatpush.bf16.msra.mxu0 %v2390
    %2731 = vmatpush.bf16.msra.mxu0 %v2386
    %2732 = vmatpush.bf16.msra.mxu0 %v2382
    %2733 = vmatpush.bf16.msra.mxu0 %v2378
    %2734 = vmatpush.bf16.msra.mxu0 %v2374
    %2735 = vmatpush.bf16.msra.mxu0 %v2370
    %2736 = vmatmul.bf16.gmra.mxu0 %v1976
    %v2737 = vpop.f32.mrf.mxu0
    %v2738 = vadd.f32 %v1964, %v2737
    %v2739 = vpop.f32.mrf.mxu0
    %2740 = vdwg.mxu0
    %2741 = vmatpush.bf16.msra.mxu0 %v2430
    %2742 = vmatpush.bf16.msra.mxu0 %v2426
    %2743 = vmatpush.bf16.msra.mxu0 %v2422
    %2744 = vmatpush.bf16.msra.mxu0 %v2418
    %2745 = vmatpush.bf16.msra.mxu0 %v2414
    %2746 = vmatpush.bf16.msra.mxu0 %v2410
    %2747 = vmatpush.bf16.msra.mxu0 %v2406
    %2748 = vmatpush.bf16.msra.mxu0 %v2402
    %2749 = vmatmul.bf16.gmra.mxu0 %v1977
    %v2750 = vpop.f32.mrf.mxu0
    %v2751 = vadd.f32 %v2738, %v2750
    %v2752 = vpop.f32.mrf.mxu0
    %2753 = vdwg.mxu0
    %2754 = vmatpush.bf16.msra.mxu0 %v2462
    %2755 = vmatpush.bf16.msra.mxu0 %v2458
    %2756 = vmatpush.bf16.msra.mxu0 %v2454
    %2757 = vmatpush.bf16.msra.mxu0 %v2450
    %2758 = vmatpush.bf16.msra.mxu0 %v2446
    %2759 = vmatpush.bf16.msra.mxu0 %v2442
    %2760 = vmatpush.bf16.msra.mxu0 %v2438
    %2761 = vmatpush.bf16.msra.mxu0 %v2434
    %2762 = vmatmul.bf16.gmra.mxu0 %v1978
    %v2763 = vpop.f32.mrf.mxu0
    %v2764 = vadd.f32 %v2751, %v2763
    %v2765 = vpop.f32.mrf.mxu0
    %2766 = vdwg.mxu0
    %2767 = vmatpush.bf16.msra.mxu0 %v2494
    %2768 = vmatpush.bf16.msra.mxu0 %v2490
    %2769 = vmatpush.bf16.msra.mxu0 %v2486
    %2770 = vmatpush.bf16.msra.mxu0 %v2482
    %2771 = vmatpush.bf16.msra.mxu0 %v2478
    %2772 = vmatpush.bf16.msra.mxu0 %v2474
    %2773 = vmatpush.bf16.msra.mxu0 %v2470
    %2774 = vmatpush.bf16.msra.mxu0 %v2466
    %2775 = vmatmul.bf16.gmra.mxu0 %v1979
    %v2776 = vpop.f32.mrf.mxu0
    %v2777 = vadd.f32 %v2764, %v2776
    %v2778 = vpop.f32.mrf.mxu0
    %2779 = vdwg.mxu0
    %2780 = vmatpush.bf16.msra.mxu0 %v2399
    %2781 = vmatpush.bf16.msra.mxu0 %v2395
    %2782 = vmatpush.bf16.msra.mxu0 %v2391
    %2783 = vmatpush.bf16.msra.mxu0 %v2387
    %2784 = vmatpush.bf16.msra.mxu0 %v2383
    %2785 = vmatpush.bf16.msra.mxu0 %v2379
    %2786 = vmatpush.bf16.msra.mxu0 %v2375
    %2787 = vmatpush.bf16.msra.mxu0 %v2371
    %2788 = vmatmul.bf16.gmra.mxu0 %v1976
    %v2789 = vpop.f32.mrf.mxu0
    %v2790 = vadd.f32 %v1965, %v2789
    %v2791 = vpop.f32.mrf.mxu0
    %2792 = vdwg.mxu0
    %2793 = vmatpush.bf16.msra.mxu0 %v2431
    %2794 = vmatpush.bf16.msra.mxu0 %v2427
    %2795 = vmatpush.bf16.msra.mxu0 %v2423
    %2796 = vmatpush.bf16.msra.mxu0 %v2419
    %2797 = vmatpush.bf16.msra.mxu0 %v2415
    %2798 = vmatpush.bf16.msra.mxu0 %v2411
    %2799 = vmatpush.bf16.msra.mxu0 %v2407
    %2800 = vmatpush.bf16.msra.mxu0 %v2403
    %2801 = vmatmul.bf16.gmra.mxu0 %v1977
    %v2802 = vpop.f32.mrf.mxu0
    %v2803 = vadd.f32 %v2790, %v2802
    %v2804 = vpop.f32.mrf.mxu0
    %2805 = vdwg.mxu0
    %2806 = vmatpush.bf16.msra.mxu0 %v2463
    %2807 = vmatpush.bf16.msra.mxu0 %v2459
    %2808 = vmatpush.bf16.msra.mxu0 %v2455
    %2809 = vmatpush.bf16.msra.mxu0 %v2451
    %2810 = vmatpush.bf16.msra.mxu0 %v2447
    %2811 = vmatpush.bf16.msra.mxu0 %v2443
    %2812 = vmatpush.bf16.msra.mxu0 %v2439
    %2813 = vmatpush.bf16.msra.mxu0 %v2435
    %2814 = vmatmul.bf16.gmra.mxu0 %v1978
    %v2815 = vpop.f32.mrf.mxu0
    %v2816 = vadd.f32 %v2803, %v2815
    %v2817 = vpop.f32.mrf.mxu0
    %2818 = vdwg.mxu0
    %2819 = vmatpush.bf16.msra.mxu0 %v2495
    %2820 = vmatpush.bf16.msra.mxu0 %v2491
    %2821 = vmatpush.bf16.msra.mxu0 %v2487
    %2822 = vmatpush.bf16.msra.mxu0 %v2483
    %2823 = vmatpush.bf16.msra.mxu0 %v2479
    %2824 = vmatpush.bf16.msra.mxu0 %v2475
    %2825 = vmatpush.bf16.msra.mxu0 %v2471
    %2826 = vmatpush.bf16.msra.mxu0 %v2467
    %2827 = vmatmul.bf16.gmra.mxu0 %v1979
    %v2828 = vpop.f32.mrf.mxu0
    %v2829 = vadd.f32 %v2816, %v2828
    %v2830 = vpop.f32.mrf.mxu0
    %2831 = vdwg.mxu0
    %v2832 = vmax.f32 %v2673, 0.0
    %v2833 = vmax.f32 %v2725, 0.0
    %v2834 = vmax.f32 %v2777, 0.0
    %v2835 = vmax.f32 %v2829, 0.0
    %v2836 = vpack.c.bf16 %v2833, %v2832
    %v2837 = vpack.c.bf16 %v2835, %v2834
    %2838 = vst [vmem:[#allocation2] sm:$0xff] %v2836
    %2839 = vst [vmem:[#allocation2 + $0x8] sm:$0xff] %v2837
    %v2840 = vld [vmem:[#allocation2] sm:$0xff]
    %v2841 = vld [vmem:[#allocation2 + $0x8] sm:$0xff]
    %v2842 = vld [vmem:[%s7] sm:$0xf]
    %v2843 = vld [vmem:[%s7 + $0x4] sm:$0xf]
    %v2844 = vld [vmem:[%s7 + $0x8] sm:$0xf]
    %v2845 = vld [vmem:[%s7 + $0xc] sm:$0xf]
    %v2846 = vld [vmem:[%s7 + $0x10] sm:$0xf]
    %v2847 = vld [vmem:[%s7 + $0x14] sm:$0xf]
    %v2848 = vld [vmem:[%s7 + $0x18] sm:$0xf]
    %v2849 = vld [vmem:[%s7 + $0x1c] sm:$0xf]
    %v2850 = vld [vmem:[%s7 + $0x20] sm:$0xf]
    %v2851 = vld [vmem:[%s7 + $0x24] sm:$0xf]
    %v2852 = vld [vmem:[%s7 + $0x28] sm:$0xf]
    %v2853 = vld [vmem:[%s7 + $0x2c] sm:$0xf]
    %v2854 = vld [vmem:[%s7 + $0x30] sm:$0xf]
    %v2855 = vld [vmem:[%s7 + $0x34] sm:$0xf]
    %v2856 = vld [vmem:[%s7 + $0x38] sm:$0xf]
    %v2857 = vld [vmem:[%s7 + $0x3c] sm:$0xf]
    %v2858 = vld [vmem:[%s7 + $0x40] sm:$0xf]
    %v2859 = vld [vmem:[%s7 + $0x44] sm:$0xf]
    %v2860 = vld [vmem:[%s7 + $0x48] sm:$0xf]
    %v2861 = vld [vmem:[%s7 + $0x4c] sm:$0xf]
    %v2862 = vld [vmem:[%s7 + $0x50] sm:$0xf]
    %v2863 = vld [vmem:[%s7 + $0x54] sm:$0xf]
    %v2864 = vld [vmem:[%s7 + $0x58] sm:$0xf]
    %v2865 = vld [vmem:[%s7 + $0x5c] sm:$0xf]
    %v2866 = vld [vmem:[%s7 + $0x60] sm:$0xf]
    %v2867 = vld [vmem:[%s7 + $0x64] sm:$0xf]
    %v2868 = vld [vmem:[%s7 + $0x68] sm:$0xf]
    %v2869 = vld [vmem:[%s7 + $0x6c] sm:$0xf]
    %v2870 = vld [vmem:[%s7 + $0x70] sm:$0xf]
    %v2871 = vld [vmem:[%s7 + $0x74] sm:$0xf]
    %v2872 = vld [vmem:[%s7 + $0x78] sm:$0xf]
    %v2873 = vld [vmem:[%s7 + $0x7c] sm:$0xf]
    %v2874 = vld [vmem:[%s7 + $0x80] sm:$0xf]
    %v2875 = vld [vmem:[%s7 + $0x84] sm:$0xf]
    %v2876 = vld [vmem:[%s7 + $0x88] sm:$0xf]
    %v2877 = vld [vmem:[%s7 + $0x8c] sm:$0xf]
    %v2878 = vld [vmem:[%s7 + $0x90] sm:$0xf]
    %v2879 = vld [vmem:[%s7 + $0x94] sm:$0xf]
    %v2880 = vld [vmem:[%s7 + $0x98] sm:$0xf]
    %v2881 = vld [vmem:[%s7 + $0x9c] sm:$0xf]
    %v2882 = vld [vmem:[%s7 + $0xa0] sm:$0xf]
    %v2883 = vld [vmem:[%s7 + $0xa4] sm:$0xf]
    %v2884 = vld [vmem:[%s7 + $0xa8] sm:$0xf]
    %v2885 = vld [vmem:[%s7 + $0xac] sm:$0xf]
    %v2886 = vld [vmem:[%s7 + $0xb0] sm:$0xf]
    %v2887 = vld [vmem:[%s7 + $0xb4] sm:$0xf]
    %v2888 = vld [vmem:[%s7 + $0xb8] sm:$0xf]
    %v2889 = vld [vmem:[%s7 + $0xbc] sm:$0xf]
    %v2890 = vld [vmem:[%s7 + $0xc0] sm:$0xf]
    %v2891 = vld [vmem:[%s7 + $0xc4] sm:$0xf]
    %v2892 = vld [vmem:[%s7 + $0xc8] sm:$0xf]
    %v2893 = vld [vmem:[%s7 + $0xcc] sm:$0xf]
    %v2894 = vld [vmem:[%s7 + $0xd0] sm:$0xf]
    %v2895 = vld [vmem:[%s7 + $0xd4] sm:$0xf]
    %v2896 = vld [vmem:[%s7 + $0xd8] sm:$0xf]
    %v2897 = vld [vmem:[%s7 + $0xdc] sm:$0xf]
    %v2898 = vld [vmem:[%s7 + $0xe0] sm:$0xf]
    %v2899 = vld [vmem:[%s7 + $0xe4] sm:$0xf]
    %v2900 = vld [vmem:[%s7 + $0xe8] sm:$0xf]
    %v2901 = vld [vmem:[%s7 + $0xec] sm:$0xf]
    %v2902 = vld [vmem:[%s7 + $0xf0] sm:$0xf]
    %v2903 = vld [vmem:[%s7 + $0xf4] sm:$0xf]
    %v2904 = vld [vmem:[%s7 + $0xf8] sm:$0xf]
    %v2905 = vld [vmem:[%s7 + $0xfc] sm:$0xf]
    %v2906 = vld [vmem:[%s8] sm:$0x1]
    %v2908 = vperm.slane %v2906, 0
    %v2912 = vunpack.c.l.b16 %v2840
    %v2913 = vunpack.c.h.b16 %v2840
    %v2914 = vunpack.c.l.b16 %v2841
    %v2915 = vunpack.c.h.b16 %v2841
    %v2916 = vpack.c.b16 %v2912, %v2912
    %v2917 = vpack.c.b16 %v2913, %v2913
    %v2918 = vpack.c.b16 %v2914, %v2914
    %v2919 = vpack.c.b16 %v2915, %v2915
    %v2988 = vunpack.c.l.b16 %v2842
    %v2989 = vunpack.c.l.b16 %v2843
    %v2990 = vunpack.c.l.b16 %v2844
    %v2991 = vunpack.c.l.b16 %v2845
    %v2992 = vunpack.c.l.b16 %v2846
    %v2993 = vunpack.c.l.b16 %v2847
    %v2994 = vunpack.c.l.b16 %v2848
    %v2995 = vunpack.c.l.b16 %v2849
    %v2996 = vunpack.c.l.b16 %v2850
    %v2997 = vunpack.c.l.b16 %v2851
    %v2998 = vunpack.c.l.b16 %v2852
    %v2999 = vunpack.c.l.b16 %v2853
    %v3000 = vunpack.c.l.b16 %v2854
    %v3001 = vunpack.c.l.b16 %v2855
    %v3002 = vunpack.c.l.b16 %v2856
    %v3003 = vunpack.c.l.b16 %v2857
    %v3004 = vunpack.c.l.b16 %v2858
    %v3005 = vunpack.c.l.b16 %v2859
    %v3006 = vunpack.c.l.b16 %v2860
    %v3007 = vunpack.c.l.b16 %v2861
    %v3008 = vunpack.c.l.b16 %v2862
    %v3009 = vunpack.c.l.b16 %v2863
    %v3010 = vunpack.c.l.b16 %v2864
    %v3011 = vunpack.c.l.b16 %v2865
    %v3012 = vunpack.c.l.b16 %v2866
    %v3013 = vunpack.c.l.b16 %v2867
    %v3014 = vunpack.c.l.b16 %v2868
    %v3015 = vunpack.c.l.b16 %v2869
    %v3016 = vunpack.c.l.b16 %v2870
    %v3017 = vunpack.c.l.b16 %v2871
    %v3018 = vunpack.c.l.b16 %v2872
    %v3019 = vunpack.c.l.b16 %v2873
    %v3020 = vunpack.c.l.b16 %v2874
    %v3021 = vunpack.c.l.b16 %v2875
    %v3022 = vunpack.c.l.b16 %v2876
    %v3023 = vunpack.c.l.b16 %v2877
    %v3024 = vunpack.c.l.b16 %v2878
    %v3025 = vunpack.c.l.b16 %v2879
    %v3026 = vunpack.c.l.b16 %v2880
    %v3027 = vunpack.c.l.b16 %v2881
    %v3028 = vunpack.c.l.b16 %v2882
    %v3029 = vunpack.c.l.b16 %v2883
    %v3030 = vunpack.c.l.b16 %v2884
    %v3031 = vunpack.c.l.b16 %v2885
    %v3032 = vunpack.c.l.b16 %v2886
    %v3033 = vunpack.c.l.b16 %v2887
    %v3034 = vunpack.c.l.b16 %v2888
    %v3035 = vunpack.c.l.b16 %v2889
    %v3036 = vunpack.c.l.b16 %v2890
    %v3037 = vunpack.c.l.b16 %v2891
    %v3038 = vunpack.c.l.b16 %v2892
    %v3039 = vunpack.c.l.b16 %v2893
    %v3040 = vunpack.c.l.b16 %v2894
    %v3041 = vunpack.c.l.b16 %v2895
    %v3042 = vunpack.c.l.b16 %v2896
    %v3043 = vunpack.c.l.b16 %v2897
    %v3044 = vunpack.c.l.b16 %v2898
    %v3045 = vunpack.c.l.b16 %v2899
    %v3046 = vunpack.c.l.b16 %v2900
    %v3047 = vunpack.c.l.b16 %v2901
    %v3048 = vunpack.c.l.b16 %v2902
    %v3049 = vunpack.c.l.b16 %v2903
    %v3050 = vunpack.c.l.b16 %v2904
    %v3051 = vunpack.c.l.b16 %v2905
    %v3052 = vpack.c.b16 %v2989, %v2988
    %v3053 = vpack.c.b16 %v2991, %v2990
    %v3054 = vpack.c.b16 %v2993, %v2992
    %v3055 = vpack.c.b16 %v2995, %v2994
    %v3056 = vpack.c.b16 %v2997, %v2996
    %v3057 = vpack.c.b16 %v2999, %v2998
    %v3058 = vpack.c.b16 %v3001, %v3000
    %v3059 = vpack.c.b16 %v3003, %v3002
    %v3060 = vpack.c.b16 %v3005, %v3004
    %v3061 = vpack.c.b16 %v3007, %v3006
    %v3062 = vpack.c.b16 %v3009, %v3008
    %v3063 = vpack.c.b16 %v3011, %v3010
    %v3064 = vpack.c.b16 %v3013, %v3012
    %v3065 = vpack.c.b16 %v3015, %v3014
    %v3066 = vpack.c.b16 %v3017, %v3016
    %v3067 = vpack.c.b16 %v3019, %v3018
    %v3068 = vpack.c.b16 %v3021, %v3020
    %v3069 = vpack.c.b16 %v3023, %v3022
    %v3070 = vpack.c.b16 %v3025, %v3024
    %v3071 = vpack.c.b16 %v3027, %v3026
    %v3072 = vpack.c.b16 %v3029, %v3028
    %v3073 = vpack.c.b16 %v3031, %v3030
    %v3074 = vpack.c.b16 %v3033, %v3032
    %v3075 = vpack.c.b16 %v3035, %v3034
    %v3076 = vpack.c.b16 %v3037, %v3036
    %v3077 = vpack.c.b16 %v3039, %v3038
    %v3078 = vpack.c.b16 %v3041, %v3040
    %v3079 = vpack.c.b16 %v3043, %v3042
    %v3080 = vpack.c.b16 %v3045, %v3044
    %v3081 = vpack.c.b16 %v3047, %v3046
    %v3082 = vpack.c.b16 %v3049, %v3048
    %v3083 = vpack.c.b16 %v3051, %v3050
    %3116 = vmatpush.bf16.msra.mxu0 %v3059
    %3117 = vmatpush.bf16.msra.mxu0 %v3058
    %3118 = vmatpush.bf16.msra.mxu0 %v3057
    %3119 = vmatpush.bf16.msra.mxu0 %v3056
    %3120 = vmatpush.bf16.msra.mxu0 %v3055
    %3121 = vmatpush.bf16.msra.mxu0 %v3054
    %3122 = vmatpush.bf16.msra.mxu0 %v3053
    %3123 = vmatpush.bf16.msra.mxu0 %v3052
    %3124 = vmatmul.bf16.gmra.mxu0 %v2916
    %v3125 = vpop.f32.mrf.mxu0
    %v3126 = vadd.f32 %v2908, %v3125
    %v3127 = vpop.f32.mrf.mxu0
    %3128 = vdwg.mxu0
    %3129 = vmatpush.bf16.msra.mxu0 %v3067
    %3130 = vmatpush.bf16.msra.mxu0 %v3066
    %3131 = vmatpush.bf16.msra.mxu0 %v3065
    %3132 = vmatpush.bf16.msra.mxu0 %v3064
    %3133 = vmatpush.bf16.msra.mxu0 %v3063
    %3134 = vmatpush.bf16.msra.mxu0 %v3062
    %3135 = vmatpush.bf16.msra.mxu0 %v3061
    %3136 = vmatpush.bf16.msra.mxu0 %v3060
    %3137 = vmatmul.bf16.gmra.mxu0 %v2917
    %v3138 = vpop.f32.mrf.mxu0
    %v3139 = vadd.f32 %v3126, %v3138
    %v3140 = vpop.f32.mrf.mxu0
    %3141 = vdwg.mxu0
    %3142 = vmatpush.bf16.msra.mxu0 %v3075
    %3143 = vmatpush.bf16.msra.mxu0 %v3074
    %3144 = vmatpush.bf16.msra.mxu0 %v3073
    %3145 = vmatpush.bf16.msra.mxu0 %v3072
    %3146 = vmatpush.bf16.msra.mxu0 %v3071
    %3147 = vmatpush.bf16.msra.mxu0 %v3070
    %3148 = vmatpush.bf16.msra.mxu0 %v3069
    %3149 = vmatpush.bf16.msra.mxu0 %v3068
    %3150 = vmatmul.bf16.gmra.mxu0 %v2918
    %v3151 = vpop.f32.mrf.mxu0
    %v3152 = vadd.f32 %v3139, %v3151
    %v3153 = vpop.f32.mrf.mxu0
    %3154 = vdwg.mxu0
    %3155 = vmatpush.bf16.msra.mxu0 %v3083
    %3156 = vmatpush.bf16.msra.mxu0 %v3082
    %3157 = vmatpush.bf16.msra.mxu0 %v3081
    %3158 = vmatpush.bf16.msra.mxu0 %v3080
    %3159 = vmatpush.bf16.msra.mxu0 %v3079
    %3160 = vmatpush.bf16.msra.mxu0 %v3078
    %3161 = vmatpush.bf16.msra.mxu0 %v3077
    %3162 = vmatpush.bf16.msra.mxu0 %v3076
    %3163 = vmatmul.bf16.gmra.mxu0 %v2919
    %v3164 = vpop.f32.mrf.mxu0
    %v3165 = vadd.f32 %v3152, %v3164
    %v3166 = vpop.f32.mrf.mxu0
    %3167 = vdwg.mxu0
    %vm3168 = vcmask 130048
    %3169 = vst.msk [vmem:[%s9] sm:$0xff] %vm3168, %v3165
    // Predicated region
    $region46: #{pc_encoder_forward.1} parent=1 // pred_check
      _
    $region47: #{pc_encoder_forward.1} parent=1 // pred_check_branch
      %3171 = sbr.rel (0) target = $region49
    $region48: #{pc_encoder_forward.1} parent=1 // pred_region
      _
    $region49: #{pc_encoder_forward.1} parent=1 // pred_fallthru
      _
    // Predicated region
    $region50: #{pc_encoder_forward.1} parent=1 // pred_check
      _
    $region51: #{pc_encoder_forward.1} parent=1 // pred_check_branch
      %3173 = sbr.rel (0) target = $region53
    $region52: #{pc_encoder_forward.1} parent=1 // pred_region
      _
    $region53: #{pc_encoder_forward.1} parent=1 // pred_fallthru
      _
    %3174 = vsyncpa [#allocation4], 1
    %3175 = vsyncpa [#allocation6], 1

</llo_original>
